<compile_context>
chip_gen: v6e
topology: v6e:2x2x1
jax: 0.10.0
libtpu: 0.0.40
codegen_flags: <defaults>
</compile_context>

<pallas_src>
import math
from functools import partial

import jax
import jax.numpy as jnp
from jax import lax
from jax.experimental import pallas as pl
from jax.experimental.pallas import tpu as pltpu

# ---------------- small GPT config (OpenAIGPTConfig analog) ----------------
N_EMBD = 128
N_HEAD = 4
N_LAYER = 2
N_POSITIONS = 16
LN_EPS = 1e-5                                       # config.layer_norm_epsilon
NEG_MIN = float(jnp.finfo(jnp.float32).min)         # torch.finfo(float32).min
CUSTOM_MASK_BIAS = -1e9      # numerically safe; identical softmax result (prob -> exactly 0)
CAUSAL_MASK_BIAS = -10000.0
MATMUL_DTYPE = jnp.bfloat16  # MXU-native operand dtype; accumulation stays f32


# ---------------- shared math helpers (f32 everywhere) ----------------
def _layer_norm(x, g, b, eps):
    mu = jnp.mean(x, axis=-1, keepdims=True)
    var = jnp.mean(jnp.square(x - mu), axis=-1, keepdims=True)
    return (x - mu) * lax.rsqrt(var + eps) * g + b


def _gelu_new(x):
    # HF ACT_FNS["gelu"] -> NewGELUActivation (tanh approximation)
    return 0.5 * x * (1.0 + jnp.tanh(math.sqrt(2.0 / math.pi) * (x + 0.044715 * x * x * x)))


# ---------------- fused all-layer Pallas kernel ----------------
def gpt_fused_kernel(x_ref, bias_ref, wqkv_ref, wfc_ref, wo_ref, wpj_ref, vec_ref,
                     out_ref, *, n_head, batch, seq):
    E = x_ref.shape[-1]
    d = E // n_head
    BH = batch * n_head
    layer = pl.program_id(0)

    # Layer 0: load the (position-embedded) activations into the resident block.
    # NOTE: this write must stay ABOVE the `h = out_ref[...]` read (Ref effect order).
    @pl.when(layer == 0)
    def _():
        out_ref[...] = x_ref[...]

    h = out_ref[...]                                  # (B*L, E) f32, VMEM-resident

    # Per-layer parameters (weights bf16, vectors f32).
    wqkv = wqkv_ref[0]                                # (E, 3E), 1/sqrt(d) pre-folded into q cols
    wfc = wfc_ref[0]                                  # (E, 4E)
    wo = wo_ref[0]                                    # (E, E)
    wpj = wpj_ref[0]                                  # (4E, E)
    vec = vec_ref[0]                                  # (16, E) f32: one parameter vector per row
    bq = vec[0:1, :]
    bk = vec[1:2, :]
    bv = vec[2:3, :]
    bo = vec[3:4, :]
    bpj = vec[4:5, :]
    ln1g = vec[5:6, :]
    ln1b = vec[6:7, :]
    ln2g = vec[7:8, :]
    ln2b = vec[8:9, :]
    bfc = vec[9:13, :].reshape(1, 4 * E)              # reassemble (1, 4E) fc bias

    # ---- c_attn: single (B*L, E) x (E, 3E) matmul for the whole batch ----
    qkv = jnp.dot(h.astype(MATMUL_DTYPE), wqkv, preferred_element_type=jnp.float32)
    q = qkv[:, 0:E] + bq                              # scale already folded into wq / bq
    k = qkv[:, E:2 * E] + bk
    v = qkv[:, 2 * E:3 * E] + bv

    # ---- head split once for all batches/heads: (B*L, E) -> (B*H, L, d) ----
    def to_heads(t):
        t = t.reshape(batch, seq, n_head, d)
        t = jnp.transpose(t, (0, 2, 1, 3))            # (B, H, L, d)
        return t.reshape(BH, seq, d)

    qh, kh, vh = to_heads(q), to_heads(k), to_heads(v)

    # ---- batched attention over all (batch, head) pairs; f32 scores ----
    s = jnp.einsum('zqd,zkd->zqk', qh, kh,
                   preferred_element_type=jnp.float32)            # (BH, L, L)
    s = s + bias_ref[...]                             # causal + custom additive bias
    s = s - jnp.max(s, axis=-1, keepdims=True)
    p = jnp.exp(s)
    p = p * pl.reciprocal(jnp.sum(p, axis=-1, keepdims=True), approx=True)
    # TODO(synk): attn_dropout / head_mask are identity (eval mode, no head mask).
    c = jnp.einsum('zqk,zkd->zqd', p, vh,
                   preferred_element_type=jnp.float32)            # (BH, L, d)
    a = jnp.transpose(c.reshape(batch, n_head, seq, d),
                      (0, 2, 1, 3)).reshape(batch * seq, E)       # merge heads back

    # ---- c_proj + ln_1 ----
    a = jnp.dot(a.astype(MATMUL_DTYPE), wo, preferred_element_type=jnp.float32) + bo
    # TODO(synk): resid_dropout is identity (eval mode).
    n = _layer_norm(h + a, ln1g, ln1b, LN_EPS)

    # ---- MLP: gelu(c_fc) -> c_proj, then ln_2 ----
    hid = _gelu_new(jnp.dot(n.astype(MATMUL_DTYPE), wfc,
                            preferred_element_type=jnp.float32) + bfc)
    m = jnp.dot(hid.astype(MATMUL_DTYPE), wpj, preferred_element_type=jnp.float32) + bpj
    out_ref[...] = _layer_norm(n + m, ln2g, ln2b, LN_EPS)


# ---------------- one-time parameter packing (hoisted out of per-call path) ----------------
def pack_params(params):
    E = N_EMBD
    d = E // N_HEAD
    scale = 1.0 / math.sqrt(d)
    wqkv_l, wfc_l, wo_l, wpj_l, vec_l = [], [], [], [], []
    for p in params["blocks"]:
        # Fold 1/sqrt(d) into the q columns of wqkv and bq (done once, in f32).
        wq = p["wqkv"][:, :E] * scale
        wqkv_l.append(jnp.concatenate([wq, p["wqkv"][:, E:]], axis=1))          # (E, 3E)
        wfc_l.append(p["wfc"])                                                  # (E, 4E)
        wo_l.append(p["wo"])                                                    # (E, E)
        wpj_l.append(p["wpj"])                                                  # (4E, E)
        bq = p["bqkv"][:, :E] * scale
        bk = p["bqkv"][:, E:2 * E]
        bv = p["bqkv"][:, 2 * E:]
        rows = jnp.concatenate(
            [bq, bk, bv, p["bo"], p["bpj"],
             p["ln1g"], p["ln1b"], p["ln2g"], p["ln2b"],
             p["bfc"].reshape(4, E),
             jnp.zeros((3, E), jnp.float32)], axis=0)                           # (16, E)
        vec_l.append(rows)
    return dict(
        wpe=params["wpe"].astype(jnp.float32),
        WQKV=jnp.stack(wqkv_l).astype(MATMUL_DTYPE),      # (L, E, 3E)
        WFC=jnp.stack(wfc_l).astype(MATMUL_DTYPE),        # (L, E, 4E)
        WO=jnp.stack(wo_l).astype(MATMUL_DTYPE),          # (L, E, E)
        WPJ=jnp.stack(wpj_l).astype(MATMUL_DTYPE),        # (L, 4E, E)
        VEC=jnp.stack(vec_l).astype(jnp.float32),         # (L, 16, E)
    )


# ---------------- full GPT.forward (Pallas-backed, jitted) ----------------
def _gpt_forward(x, packed, custom_mask=None, position_ids=None, batch_first=False):
    # x: (L, B, E) if not batch_first else (B, L, E)
    if not batch_first:
        x = jnp.transpose(x, (1, 0, 2))
    B, L, E = x.shape
    H = N_HEAD
    if position_ids is None:
        position_ids = jnp.arange(L)
    h = x + packed["wpe"][position_ids][None]          # inputs_embeds + position_embeds
    # TODO(synk): embedding dropout is identity (eval mode); geglu path unused (afn="gelu").
    h2d = h.reshape(B * L, E).astype(jnp.float32)

    # Additive bias (causal + custom key mask), precomputed once per call (fused by jit).
    row = lax.broadcasted_iota(jnp.int32, (L, L), 0)
    col = lax.broadcasted_iota(jnp.int32, (L, L), 1)
    causal_bias = jnp.where(col <= row, 0.0, CAUSAL_MASK_BIAS).astype(jnp.float32)
    if custom_mask is not None:
        if custom_mask.ndim == 3:
            custom_mask = custom_mask[:, 0, :]
        key_bias = (1.0 - custom_mask.astype(jnp.float32)) * CUSTOM_MASK_BIAS
    else:
        key_bias = jnp.zeros((B, L), jnp.float32)
    bias = causal_bias[None, :, :] + key_bias[:, None, :]                 # (B, L, L)
    bias_bh = jnp.broadcast_to(bias[:, None], (B, H, L, L)).reshape(B * H, L, L)

    WQKV, WFC, WO, WPJ, VEC = (packed["WQKV"], packed["WFC"], packed["WO"],
                               packed["WPJ"], packed["VEC"])
    n_layer = WQKV.shape[0]

    out2d = pl.pallas_call(
        partial(gpt_fused_kernel, n_head=H, batch=B, seq=L),
        out_shape=jax.ShapeDtypeStruct((B * L, E), jnp.float32),
        grid=(n_layer,),
        in_specs=[
            pl.BlockSpec((B * L, E), lambda l: (0, 0)),          # h0 (read at layer 0)
            pl.BlockSpec((B * H, L, L), lambda l: (0, 0, 0)),    # additive mask bias
            pl.BlockSpec((1, E, 3 * E), lambda l: (l, 0, 0)),    # wqkv per layer
            pl.BlockSpec((1, E, 4 * E), lambda l: (l, 0, 0)),    # wfc per layer
            pl.BlockSpec((1, E, E), lambda l: (l, 0, 0)),        # wo per layer
            pl.BlockSpec((1, 4 * E, E), lambda l: (l, 0, 0)),    # wpj per layer
            pl.BlockSpec((1, 16, E), lambda l: (l, 0, 0)),       # biases + LN params (row-packed)
        ],
        # Constant output index -> h stays resident in VMEM across layers,
        # written back to HBM only once after the last layer.
        out_specs=pl.BlockSpec((B * L, E), lambda l: (0, 0)),
        compiler_params=pltpu.CompilerParams(
            dimension_semantics=("arbitrary",),                  # layer loop is sequential
            vmem_limit_bytes=32 * 1024 * 1024),
    )(h2d, bias_bh, WQKV, WFC, WO, WPJ, VEC)

    out = out2d.reshape(B, L, E)
    if not batch_first:
        out = jnp.transpose(out, (1, 0, 2))
    return out


gpt_forward = jax.jit(_gpt_forward, static_argnames=("batch_first",))


# ---------------- pure-JAX reference (mirrors PyTorch semantics) ----------------
def gpt_reference(x, params, *, custom_mask, batch_first=False, matmul_dtype=jnp.float32):
    hp = lax.Precision.HIGHEST
    cast = lambda a: a.astype(matmul_dtype)
    if not batch_first:
        x = jnp.transpose(x, (1, 0, 2))
    B, L, E = x.shape
    d = E // N_HEAD
    h = x + params["wpe"][:L][None]
    mask_bias = (1.0 - custom_mask.astype(jnp.float32)) * NEG_MIN      # (B, L)
    causal = jnp.tril(jnp.ones((L, L), jnp.float32))
    for p in params["blocks"]:
        qkv = jnp.einsum("ble,ef->blf", cast(h), cast(p["wqkv"]),
                         preferred_element_type=jnp.float32) + p["bqkv"][0]
        q, k, v = jnp.split(qkv, 3, axis=-1)
        q = q.reshape(B, L, N_HEAD, d).transpose(0, 2, 1, 3)
        k = k.reshape(B, L, N_HEAD, d).transpose(0, 2, 1, 3)
        v = v.reshape(B, L, N_HEAD, d).transpose(0, 2, 1, 3)
        w = jnp.einsum("bhld,bhmd->bhlm", q, k, precision=hp) / math.sqrt(d)
        w = w * causal + CAUSAL_MASK_BIAS * (1.0 - causal)
        w = w + mask_bias[:, None, None, :]
        w = jax.nn.softmax(w, axis=-1)
        a = jnp.einsum("bhlm,bhmd->bhld", w, v, precision=hp)
        a = a.transpose(0, 2, 1, 3).reshape(B, L, E)
        a = jnp.einsum("ble,ef->blf", cast(a), cast(p["wo"]),
                       preferred_element_type=jnp.float32) + p["bo"][0]
        n = _layer_norm(h + a, p["ln1g"][0], p["ln1b"][0], LN_EPS)
        m = _gelu_new(jnp.einsum("ble,ef->blf", cast(n), cast(p["wfc"]),
                                 preferred_element_type=jnp.float32) + p["bfc"][0])
        m = jnp.einsum("blf,fe->ble", cast(m), cast(p["wpj"]),
                       preferred_element_type=jnp.float32) + p["bpj"][0]
        h = _layer_norm(n + m, p["ln2g"][0], p["ln2b"][0], LN_EPS)
    return h if batch_first else jnp.transpose(h, (1, 0, 2))


# ---------------- deterministic parameter init ----------------
def init_params(key):
    E = N_EMBD

    def normal(k, shape):
        return 0.02 * jax.random.normal(k, shape, jnp.float32)

    keys = jax.random.split(key, 1 + 4 * N_LAYER)
    params = {"wpe": normal(keys[0], (N_POSITIONS, E)), "blocks": []}
    for i in range(N_LAYER):
        k1, k2, k3, k4 = keys[1 + 4 * i: 1 + 4 * (i + 1)]
        params["blocks"].append(dict(
            wqkv=normal(k1, (E, 3 * E)), bqkv=jnp.zeros((1, 3 * E), jnp.float32),
            wo=normal(k2, (E, E)),       bo=jnp.zeros((1, E), jnp.float32),
            ln1g=jnp.ones((1, E), jnp.float32), ln1b=jnp.zeros((1, E), jnp.float32),
            wfc=normal(k3, (E, 4 * E)),  bfc=jnp.zeros((1, 4 * E), jnp.float32),
            wpj=normal(k4, (4 * E, E)),  bpj=jnp.zeros((1, E), jnp.float32),
            ln2g=jnp.ones((1, E), jnp.float32), ln2b=jnp.zeros((1, E), jnp.float32),
        ))
    return params


if __name__ == "__main__":
    key = jax.random.PRNGKey(0)
    k_x, k_p = jax.random.split(key)

    B, L = 2, 8
    params = init_params(k_p)
    packed = jax.block_until_ready(pack_params(params))   # packed ONCE, reused every call

    # default GPT.forward convention: batch_first=False -> x is (L, B, E)
    x = jax.random.normal(k_x, (L, B, N_EMBD), jnp.float32)
    # custom_mask: (B, L) bool; block last key position for batch 1
    custom_mask = jnp.ones((B, L), jnp.bool_).at[1, L - 1].set(False)

    out = jax.block_until_ready(
        gpt_forward(x, packed, custom_mask=custom_mask, batch_first=False))

    assert out.shape == (L, B, N_EMBD), out.shape
    assert bool(jnp.all(jnp.isfinite(out)))

    # 1) Tight check vs a JAX reference using the kernel's matmul precision (bf16 ops, f32 acc).
    ref_bf16 = jax.block_until_ready(
        gpt_reference(x, params, custom_mask=custom_mask, batch_first=False,
                      matmul_dtype=MATMUL_DTYPE))
    err_b = float(jnp.max(jnp.abs(out - ref_bf16)))
    assert bool(jnp.allclose(out, ref_bf16, atol=1e-2, rtol=1e-2)), err_b

    # 2) Loose check vs the full-f32 reference mirroring the PyTorch module semantics.
    ref_f32 = jax.block_until_ready(
        gpt_reference(x, params, custom_mask=custom_mask, batch_first=False,
                      matmul_dtype=jnp.float32))
    err_f = float(jnp.max(jnp.abs(out - ref_f32)))
    assert bool(jnp.allclose(out, ref_f32, atol=5e-2, rtol=5e-2)), err_f

    print("KERNEL_OK")
</pallas_src>

<mosaic_0001>
module attributes {stable_mosaic.version = 11 : i64} {
  func.func @gpt_fused_kernel(%arg0: i32, %arg1: memref<16x128xf32, #tpu.memory_space<vmem>>, %arg2: memref<8x8x8xf32, #tpu.memory_space<vmem>>, %arg3: memref<1x128x384xbf16, #tpu.memory_space<vmem>>, %arg4: memref<1x128x512xbf16, #tpu.memory_space<vmem>>, %arg5: memref<1x128x128xbf16, #tpu.memory_space<vmem>>, %arg6: memref<1x512x128xbf16, #tpu.memory_space<vmem>>, %arg7: memref<1x16x128xf32, #tpu.memory_space<vmem>>, %arg8: memref<16x128xf32, #tpu.memory_space<vmem>>) attributes {dimension_semantics = [#tpu.dimension_semantics<arbitrary>], iteration_bounds = array<i64: 2>, scalar_prefetch = 0 : i64, scratch_operands = 0 : i64, tpu.core_type = #tpu.core_type<tc>, window_params = [{pipeline_mode = #tpu.pipeline_mode<synchronous>, transform_indices = @transform_0, window_bounds = array<i64: 16, 128>}, {pipeline_mode = #tpu.pipeline_mode<synchronous>, transform_indices = @transform_1, window_bounds = array<i64: 8, 8, 8>}, {transform_indices = @transform_2, window_bounds = array<i64: 1, 128, 384>}, {transform_indices = @transform_3, window_bounds = array<i64: 1, 128, 512>}, {transform_indices = @transform_4, window_bounds = array<i64: 1, 128, 128>}, {transform_indices = @transform_5, window_bounds = array<i64: 1, 512, 128>}, {transform_indices = @transform_6, window_bounds = array<i64: 1, 16, 128>}, {pipeline_mode = #tpu.pipeline_mode<synchronous>, transform_indices = @transform_7, window_bounds = array<i64: 16, 128>}]} {
    %c0_i32 = arith.constant 0 : i32
    %0 = arith.cmpi eq, %arg0, %c0_i32 : i32
    %1 = arith.extui %0 : i1 to i32
    %c0_i32_0 = arith.constant 0 : i32
    %2 = arith.cmpi ne, %1, %c0_i32_0 : i32
    scf.if %2 {
      %c0_43 = arith.constant 0 : index
      %c0_44 = arith.constant 0 : index
      %134 = vector.load %arg1[%c0_43, %c0_44] : memref<16x128xf32, #tpu.memory_space<vmem>>, vector<16x128xf32>
      %c0_45 = arith.constant 0 : index
      %c0_46 = arith.constant 0 : index
      %135 = vector.load %arg8[%c0_45, %c0_46] : memref<16x128xf32, #tpu.memory_space<vmem>>, vector<16x128xf32>
      tpu.vector_store %arg8[%c0_45, %c0_46], %134 {strides = array<i32>} : memref<16x128xf32, #tpu.memory_space<vmem>>, vector<16x128xf32>,
    } else {
    }
    %c0 = arith.constant 0 : index
    %c0_1 = arith.constant 0 : index
    %3 = vector.load %arg8[%c0, %c0_1] : memref<16x128xf32, #tpu.memory_space<vmem>>, vector<16x128xf32>
    %c0_2 = arith.constant 0 : index
    %c0_3 = arith.constant 0 : index
    %c0_4 = arith.constant 0 : index
    %4 = vector.load %arg3[%c0_2, %c0_3, %c0_4] : memref<1x128x384xbf16, #tpu.memory_space<vmem>>, vector<1x128x384xbf16>
    %5 = vector.shape_cast %4 : vector<1x128x384xbf16> to vector<128x384xbf16>
    %c0_5 = arith.constant 0 : index
    %c0_6 = arith.constant 0 : index
    %c0_7 = arith.constant 0 : index
    %6 = vector.load %arg4[%c0_5, %c0_6, %c0_7] : memref<1x128x512xbf16, #tpu.memory_space<vmem>>, vector<1x128x512xbf16>
    %7 = vector.shape_cast %6 : vector<1x128x512xbf16> to vector<128x512xbf16>
    %c0_8 = arith.constant 0 : index
    %c0_9 = arith.constant 0 : index
    %c0_10 = arith.constant 0 : index
    %8 = vector.load %arg5[%c0_8, %c0_9, %c0_10] : memref<1x128x128xbf16, #tpu.memory_space<vmem>>, vector<1x128x128xbf16>
    %9 = vector.shape_cast %8 : vector<1x128x128xbf16> to vector<128x128xbf16>
    %c0_11 = arith.constant 0 : index
    %c0_12 = arith.constant 0 : index
    %c0_13 = arith.constant 0 : index
    %10 = vector.load %arg6[%c0_11, %c0_12, %c0_13] : memref<1x512x128xbf16, #tpu.memory_space<vmem>>, vector<1x512x128xbf16>
    %11 = vector.shape_cast %10 : vector<1x512x128xbf16> to vector<512x128xbf16>
    %c0_14 = arith.constant 0 : index
    %c0_15 = arith.constant 0 : index
    %c0_16 = arith.constant 0 : index
    %12 = vector.load %arg7[%c0_14, %c0_15, %c0_16] : memref<1x16x128xf32, #tpu.memory_space<vmem>>, vector<1x16x128xf32>
    %13 = vector.shape_cast %12 : vector<1x16x128xf32> to vector<16x128xf32>
    %14 = vector.extract_strided_slice %13 {offsets = [0, 0], sizes = [1, 128], strides = [1, 1]} : vector<16x128xf32> to vector<1x128xf32>
    %15 = vector.extract_strided_slice %13 {offsets = [1, 0], sizes = [1, 128], strides = [1, 1]} : vector<16x128xf32> to vector<1x128xf32>
    %16 = vector.extract_strided_slice %13 {offsets = [2, 0], sizes = [1, 128], strides = [1, 1]} : vector<16x128xf32> to vector<1x128xf32>
    %17 = vector.extract_strided_slice %13 {offsets = [3, 0], sizes = [1, 128], strides = [1, 1]} : vector<16x128xf32> to vector<1x128xf32>
    %18 = vector.extract_strided_slice %13 {offsets = [4, 0], sizes = [1, 128], strides = [1, 1]} : vector<16x128xf32> to vector<1x128xf32>
    %19 = vector.extract_strided_slice %13 {offsets = [5, 0], sizes = [1, 128], strides = [1, 1]} : vector<16x128xf32> to vector<1x128xf32>
    %20 = vector.extract_strided_slice %13 {offsets = [6, 0], sizes = [1, 128], strides = [1, 1]} : vector<16x128xf32> to vector<1x128xf32>
    %21 = vector.extract_strided_slice %13 {offsets = [7, 0], sizes = [1, 128], strides = [1, 1]} : vector<16x128xf32> to vector<1x128xf32>
    %22 = vector.extract_strided_slice %13 {offsets = [8, 0], sizes = [1, 128], strides = [1, 1]} : vector<16x128xf32> to vector<1x128xf32>
    %23 = vector.extract_strided_slice %13 {offsets = [9, 0], sizes = [4, 128], strides = [1, 1]} : vector<16x128xf32> to vector<4x128xf32>
    %24 = vector.shape_cast %23 : vector<4x128xf32> to vector<1x512xf32>
    %25 = arith.truncf %3 : vector<16x128xf32> to vector<16x128xbf16>
    %cst = arith.constant dense<0.000000e+00> : vector<16x384xf32>
    %26 = tpu.matmul %25, %5, %cst {dimension_numbers = #tpu.dot_dimension_numbers<[1], [0], [0], [1], [0, 0, 1, 1], [], []>} : vector<16x128xbf16>, vector<128x384xbf16>, vector<16x384xf32> -> vector<16x384xf32>
    %27 = vector.extract_strided_slice %26 {offsets = [0, 0], sizes = [16, 128], strides = [1, 1]} : vector<16x384xf32> to vector<16x128xf32>
    %28 = vector.broadcast %14 : vector<1x128xf32> to vector<16x128xf32>
    %29 = arith.addf %27, %28 : vector<16x128xf32>
    %30 = vector.extract_strided_slice %26 {offsets = [0, 128], sizes = [16, 128], strides = [1, 1]} : vector<16x384xf32> to vector<16x128xf32>
    %31 = vector.broadcast %15 : vector<1x128xf32> to vector<16x128xf32>
    %32 = arith.addf %30, %31 : vector<16x128xf32>
    %33 = vector.extract_strided_slice %26 {offsets = [0, 256], sizes = [16, 128], strides = [1, 1]} : vector<16x384xf32> to vector<16x128xf32>
    %34 = vector.broadcast %16 : vector<1x128xf32> to vector<16x128xf32>
    %35 = arith.addf %33, %34 : vector<16x128xf32>
    %36 = vector.shape_cast %29 : vector<16x128xf32> to vector<2x8x4x32xf32>
    %37 = tpu.transpose %36, [0, 2, 1, 3] : vector<2x8x4x32xf32> -> vector<2x4x8x32xf32>
    %38 = vector.shape_cast %37 : vector<2x4x8x32xf32> to vector<8x8x32xf32>
    %39 = vector.shape_cast %32 : vector<16x128xf32> to vector<2x8x4x32xf32>
    %40 = tpu.transpose %39, [0, 2, 1, 3] : vector<2x8x4x32xf32> -> vector<2x4x8x32xf32>
    %41 = vector.shape_cast %40 : vector<2x4x8x32xf32> to vector<8x8x32xf32>
    %42 = vector.shape_cast %35 : vector<16x128xf32> to vector<2x8x4x32xf32>
    %43 = tpu.transpose %42, [0, 2, 1, 3] : vector<2x8x4x32xf32> -> vector<2x4x8x32xf32>
    %44 = vector.shape_cast %43 : vector<2x4x8x32xf32> to vector<8x8x32xf32>
    "tpu.trace_start"() <{level = 10 : i32, message = "zqd,zkd->zqk"}> : () -> ()
    %cst_17 = arith.constant dense<0.000000e+00> : vector<8x8x8xf32>
    %45 = tpu.matmul %38, %41, %cst_17 {dimension_numbers = #tpu.dot_dimension_numbers<[2], [2], [1], [1], [0, 0, 0, 1, 1, 1], [0], [0]>} : vector<8x8x32xf32>, vector<8x8x32xf32>, vector<8x8x8xf32> -> vector<8x8x8xf32>
    "tpu.trace_stop"() : () -> ()
    %c0_18 = arith.constant 0 : index
    %c0_19 = arith.constant 0 : index
    %c0_20 = arith.constant 0 : index
    %46 = vector.load %arg2[%c0_18, %c0_19, %c0_20] : memref<8x8x8xf32, #tpu.memory_space<vmem>>, vector<8x8x8xf32>
    %47 = arith.addf %45, %46 : vector<8x8x8xf32>
    %cst_21 = arith.constant dense<0xFF800000> : vector<8x8xf32>
    %48 = vector.multi_reduction <maximumf>, %47, %cst_21 [2] : vector<8x8x8xf32> to vector<8x8xf32>
    %49 = vector.shape_cast %48 : vector<8x8xf32> to vector<8x8x1xf32>
    %50 = vector.broadcast %49 : vector<8x8x1xf32> to vector<8x8x8xf32>
    %51 = arith.subf %47, %50 : vector<8x8x8xf32>
    %52 = math.exp %51 : vector<8x8x8xf32>
    %cst_22 = arith.constant dense<0.000000e+00> : vector<8x8xf32>
    %53 = vector.multi_reduction <add>, %52, %cst_22 [2] : vector<8x8x8xf32> to vector<8x8xf32>
    %54 = vector.shape_cast %53 : vector<8x8xf32> to vector<8x8x1xf32>
    %55 = tpu.reciprocal %54 {approx = true} : vector<8x8x1xf32> -> vector<8x8x1xf32>
    %56 = vector.broadcast %55 : vector<8x8x1xf32> to vector<8x8x8xf32>
    %57 = arith.mulf %52, %56 : vector<8x8x8xf32>
    "tpu.trace_start"() <{level = 10 : i32, message = "zqk,zkd->zqd"}> : () -> ()
    %cst_23 = arith.constant dense<0.000000e+00> : vector<8x8x32xf32>
    %58 = tpu.matmul %57, %44, %cst_23 {dimension_numbers = #tpu.dot_dimension_numbers<[2], [1], [1], [2], [0, 0, 0, 1, 1, 2], [0], [0]>} : vector<8x8x8xf32>, vector<8x8x32xf32>, vector<8x8x32xf32> -> vector<8x8x32xf32>
    "tpu.trace_stop"() : () -> ()
    %59 = vector.shape_cast %58 : vector<8x8x32xf32> to vector<2x4x8x32xf32>
    %60 = tpu.transpose %59, [0, 2, 1, 3] : vector<2x4x8x32xf32> -> vector<2x8x4x32xf32>
    %61 = vector.shape_cast %60 : vector<2x8x4x32xf32> to vector<16x128xf32>
    %62 = arith.truncf %61 : vector<16x128xf32> to vector<16x128xbf16>
    %cst_24 = arith.constant dense<0.000000e+00> : vector<16x128xf32>
    %63 = tpu.matmul %62, %9, %cst_24 {dimension_numbers = #tpu.dot_dimension_numbers<[1], [0], [0], [1], [0, 0, 1, 1], [], []>} : vector<16x128xbf16>, vector<128x128xbf16>, vector<16x128xf32> -> vector<16x128xf32>
    %64 = vector.broadcast %17 : vector<1x128xf32> to vector<16x128xf32>
    %65 = arith.addf %63, %64 : vector<16x128xf32>
    %66 = arith.addf %3, %65 : vector<16x128xf32>
    %cst_25 = arith.constant dense<0.000000e+00> : vector<16xf32>
    %67 = vector.multi_reduction <add>, %66, %cst_25 [1] : vector<16x128xf32> to vector<16xf32>
    %68 = vector.shape_cast %67 : vector<16xf32> to vector<16x1xf32>
    %cst_26 = arith.constant 1.280000e+02 : f32
    %69 = vector.broadcast %cst_26 : f32 to vector<16x1xf32>
    %70 = arith.divf %68, %69 : vector<16x1xf32>
    %71 = vector.broadcast %70 : vector<16x1xf32> to vector<16x128xf32>
    %72 = arith.subf %66, %71 : vector<16x128xf32>
    %73 = arith.mulf %72, %72 : vector<16x128xf32>
    %cst_27 = arith.constant dense<0.000000e+00> : vector<16xf32>
    %74 = vector.multi_reduction <add>, %73, %cst_27 [1] : vector<16x128xf32> to vector<16xf32>
    %75 = vector.shape_cast %74 : vector<16xf32> to vector<16x1xf32>
    %cst_28 = arith.constant 1.280000e+02 : f32
    %76 = vector.broadcast %cst_28 : f32 to vector<16x1xf32>
    %77 = arith.divf %75, %76 : vector<16x1xf32>
    %78 = vector.broadcast %70 : vector<16x1xf32> to vector<16x128xf32>
    %79 = arith.subf %66, %78 : vector<16x128xf32>
    %cst_29 = arith.constant 9.99999974E-6 : f32
    %80 = vector.broadcast %cst_29 : f32 to vector<16x1xf32>
    %81 = arith.addf %77, %80 : vector<16x1xf32>
    %82 = math.rsqrt %81 : vector<16x1xf32>
    %83 = vector.broadcast %82 : vector<16x1xf32> to vector<16x128xf32>
    %84 = arith.mulf %79, %83 : vector<16x128xf32>
    %85 = vector.broadcast %19 : vector<1x128xf32> to vector<16x128xf32>
    %86 = arith.mulf %84, %85 : vector<16x128xf32>
    %87 = vector.broadcast %20 : vector<1x128xf32> to vector<16x128xf32>
    %88 = arith.addf %86, %87 : vector<16x128xf32>
    %89 = arith.truncf %88 : vector<16x128xf32> to vector<16x128xbf16>
    %cst_30 = arith.constant dense<0.000000e+00> : vector<16x512xf32>
    %90 = tpu.matmul %89, %7, %cst_30 {dimension_numbers = #tpu.dot_dimension_numbers<[1], [0], [0], [1], [0, 0, 1, 1], [], []>} : vector<16x128xbf16>, vector<128x512xbf16>, vector<16x512xf32> -> vector<16x512xf32>
    %91 = vector.broadcast %24 : vector<1x512xf32> to vector<16x512xf32>
    %92 = arith.addf %90, %91 : vector<16x512xf32>
    %cst_31 = arith.constant 5.000000e-01 : f32
    %93 = vector.broadcast %cst_31 : f32 to vector<16x512xf32>
    %94 = arith.mulf %93, %92 : vector<16x512xf32>
    %cst_32 = arith.constant 4.471500e-02 : f32
    %95 = vector.broadcast %cst_32 : f32 to vector<16x512xf32>
    %96 = arith.mulf %95, %92 : vector<16x512xf32>
    %97 = arith.mulf %96, %92 : vector<16x512xf32>
    %98 = arith.mulf %97, %92 : vector<16x512xf32>
    %99 = arith.addf %92, %98 : vector<16x512xf32>
    %cst_33 = arith.constant 0.797884583 : f32
    %100 = vector.broadcast %cst_33 : f32 to vector<16x512xf32>
    %101 = arith.mulf %100, %99 : vector<16x512xf32>
    %102 = math.tanh %101 : vector<16x512xf32>
    %cst_34 = arith.constant 1.000000e+00 : f32
    %103 = vector.broadcast %cst_34 : f32 to vector<16x512xf32>
    %104 = arith.addf %103, %102 : vector<16x512xf32>
    %105 = arith.mulf %94, %104 : vector<16x512xf32>
    %106 = arith.truncf %105 : vector<16x512xf32> to vector<16x512xbf16>
    %cst_35 = arith.constant dense<0.000000e+00> : vector<16x128xf32>
    %107 = tpu.matmul %106, %11, %cst_35 {dimension_numbers = #tpu.dot_dimension_numbers<[1], [0], [0], [1], [0, 0, 1, 1], [], []>} : vector<16x512xbf16>, vector<512x128xbf16>, vector<16x128xf32> -> vector<16x128xf32>
    %108 = vector.broadcast %18 : vector<1x128xf32> to vector<16x128xf32>
    %109 = arith.addf %107, %108 : vector<16x128xf32>
    %110 = arith.addf %88, %109 : vector<16x128xf32>
    %cst_36 = arith.constant dense<0.000000e+00> : vector<16xf32>
    %111 = vector.multi_reduction <add>, %110, %cst_36 [1] : vector<16x128xf32> to vector<16xf32>
    %112 = vector.shape_cast %111 : vector<16xf32> to vector<16x1xf32>
    %cst_37 = arith.constant 1.280000e+02 : f32
    %113 = vector.broadcast %cst_37 : f32 to vector<16x1xf32>
    %114 = arith.divf %112, %113 : vector<16x1xf32>
    %115 = vector.broadcast %114 : vector<16x1xf32> to vector<16x128xf32>
    %116 = arith.subf %110, %115 : vector<16x128xf32>
    %117 = arith.mulf %116, %116 : vector<16x128xf32>
    %cst_38 = arith.constant dense<0.000000e+00> : vector<16xf32>
    %118 = vector.multi_reduction <add>, %117, %cst_38 [1] : vector<16x128xf32> to vector<16xf32>
    %119 = vector.shape_cast %118 : vector<16xf32> to vector<16x1xf32>
    %cst_39 = arith.constant 1.280000e+02 : f32
    %120 = vector.broadcast %cst_39 : f32 to vector<16x1xf32>
    %121 = arith.divf %119, %120 : vector<16x1xf32>
    %122 = vector.broadcast %114 : vector<16x1xf32> to vector<16x128xf32>
    %123 = arith.subf %110, %122 : vector<16x128xf32>
    %cst_40 = arith.constant 9.99999974E-6 : f32
    %124 = vector.broadcast %cst_40 : f32 to vector<16x1xf32>
    %125 = arith.addf %121, %124 : vector<16x1xf32>
    %126 = math.rsqrt %125 : vector<16x1xf32>
    %127 = vector.broadcast %126 : vector<16x1xf32> to vector<16x128xf32>
    %128 = arith.mulf %123, %127 : vector<16x128xf32>
    %129 = vector.broadcast %21 : vector<1x128xf32> to vector<16x128xf32>
    %130 = arith.mulf %128, %129 : vector<16x128xf32>
    %131 = vector.broadcast %22 : vector<1x128xf32> to vector<16x128xf32>
    %132 = arith.addf %130, %131 : vector<16x128xf32>
    %c0_41 = arith.constant 0 : index
    %c0_42 = arith.constant 0 : index
    %133 = vector.load %arg8[%c0_41, %c0_42] : memref<16x128xf32, #tpu.memory_space<vmem>>, vector<16x128xf32>
    tpu.vector_store %arg8[%c0_41, %c0_42], %132 {strides = array<i32>} : memref<16x128xf32, #tpu.memory_space<vmem>>, vector<16x128xf32>,
    return
  }
  func.func @transform_0(%arg0: i32) -> (i32, i32) {
    %c0_i32 = arith.constant 0 : i32
    %c0_i32_0 = arith.constant 0 : i32
    %c0_i32_1 = arith.constant 0 : i32
    return %c0_i32, %c0_i32_0 : i32, i32
  }
  func.func @transform_1(%arg0: i32) -> (i32, i32, i32) {
    %c0_i32 = arith.constant 0 : i32
    %c0_i32_0 = arith.constant 0 : i32
    %c0_i32_1 = arith.constant 0 : i32
    %c0_i32_2 = arith.constant 0 : i32
    return %c0_i32, %c0_i32_0, %c0_i32_1 : i32, i32, i32
  }
  func.func @transform_2(%arg0: i32) -> (i32, i32, i32) {
    %c0_i32 = arith.constant 0 : i32
    %c0_i32_0 = arith.constant 0 : i32
    %c0_i32_1 = arith.constant 0 : i32
    return %arg0, %c0_i32, %c0_i32_0 : i32, i32, i32
  }
  func.func @transform_3(%arg0: i32) -> (i32, i32, i32) {
    %c0_i32 = arith.constant 0 : i32
    %c0_i32_0 = arith.constant 0 : i32
    %c0_i32_1 = arith.constant 0 : i32
    return %arg0, %c0_i32, %c0_i32_0 : i32, i32, i32
  }
  func.func @transform_4(%arg0: i32) -> (i32, i32, i32) {
    %c0_i32 = arith.constant 0 : i32
    %c0_i32_0 = arith.constant 0 : i32
    %c0_i32_1 = arith.constant 0 : i32
    return %arg0, %c0_i32, %c0_i32_0 : i32, i32, i32
  }
  func.func @transform_5(%arg0: i32) -> (i32, i32, i32) {
    %c0_i32 = arith.constant 0 : i32
    %c0_i32_0 = arith.constant 0 : i32
    %c0_i32_1 = arith.constant 0 : i32
    return %arg0, %c0_i32, %c0_i32_0 : i32, i32, i32
  }
  func.func @transform_6(%arg0: i32) -> (i32, i32, i32) {
    %c0_i32 = arith.constant 0 : i32
    %c0_i32_0 = arith.constant 0 : i32
    %c0_i32_1 = arith.constant 0 : i32
    return %arg0, %c0_i32, %c0_i32_0 : i32, i32, i32
  }
  func.func @transform_7(%arg0: i32) -> (i32, i32) {
    %c0_i32 = arith.constant 0 : i32
    %c0_i32_0 = arith.constant 0 : i32
    %c0_i32_1 = arith.constant 0 : i32
    return %c0_i32, %c0_i32_0 : i32, i32
  }
}

</mosaic_0001>

<llo_original>
// kernel: _gpt_forward.1
$region0: #{_gpt_forward.1}
  #allocation0 [shape = 'u32[]', space=smem, size = 0x4, offset = 0x4, fixed_abs, tag = 'smem constant byte address 0x4 - core index']
  #allocation1 [shape = 'u32[144,128]{1,0:T(1,128)}', space=vmem, size = 0x12000, scoped, tag = 'internal scratch']
  %s0 = inlined_call_operand.vmem [shape: f32[16,128], index: 0, kind: input, shape index: {}]
  %s1 = inlined_call_operand.vmem [shape: f32[8,8,8], index: 1, kind: input, shape index: {}]
  %s2 = inlined_call_operand.hbm [shape: bf16[2,128,384], index: 2, kind: input, shape index: {}]
  %s3 = inlined_call_operand.hbm [shape: bf16[2,128,512], index: 3, kind: input, shape index: {}]
  %s4 = inlined_call_operand.vmem [shape: bf16[2,128,128], index: 4, kind: input, shape index: {}]
  %s5 = inlined_call_operand.hbm [shape: bf16[2,512,128], index: 5, kind: input, shape index: {}]
  %s6 = inlined_call_operand.vmem [shape: f32[2,16,128], index: 6, kind: input, shape index: {}]
  %s7 = inlined_call_operand.vmem [shape: f32[16,128], index: 7, kind: output, shape index: {}]
  %s8 = sld [smem:[#allocation0]]
  $region77: #{_gpt_forward.1} parent=0
    _
  %s10 = ssub.s32 1, %s8
  %s11 = scalar_select 0, %s10, %s8
  $region1: #{_gpt_forward.1} parent=0
    #allocation2 [shape = 'u8[196608]{0}', space=vmem, size = 0x30000, scoped, tag = 'input window, operand 2']
    #allocation3 [shape = 's32[2]{0}', space=sflag, size = 0x8, scoped, tag = 'scoped memory for _gpt_forward.1']
    #allocation4 [shape = 'u8[262144]{0}', space=vmem, size = 0x40000, scoped, tag = 'input window, operand 3']
    #allocation5 [shape = 's32[2]{0}', space=sflag, size = 0x8, scoped, tag = 'scoped memory for _gpt_forward.1']
    #allocation6 [shape = 'u8[262144]{0}', space=vmem, size = 0x40000, scoped, tag = 'input window, operand 5']
    %12 = vsyncpa [#allocation3], 0
    %s13 = scalar_lea.sflag [#allocation3], 1
    %14 = vsyncpa %s13, 0
    %15 = vsyncpa [#allocation5], 0
    %s16 = scalar_lea.sflag [#allocation5], 1
    %17 = vsyncpa %s16, 0
    loop: start=0, step=1, limit=4
    $region2: #{_gpt_forward.1} parent=1 // loop_pre_header
      _
    $region3: #{_gpt_forward.1} parent=1 // loop_header
      %s19 = sphi 0, %s23
      %p20 = scmp.ge.s32.totalorder %s19, 4
      %s27 = sphi 0, %s27
      %s29 = sphi 0, %s27
      %s30 = sphi 0, %s29
      %s44 = sphi 0, %s30
      %s48 = sphi 0, %s48
      %s50 = sphi 0, %s48
      %s51 = sphi 0, %s50
      %s65 = sphi 0, %s51
      %s71 = sphi 0, %s73
      %s74 = sphi 0, %s71
      %s75 = sphi 0, %s74
      %s91 = sphi 0, %s75
      %s97 = sphi 0, %s99
      %s100 = sphi 0, %s97
      %s101 = sphi 0, %s100
      %s117 = sphi 0, %s101
      %s123 = sphi 0, %s125
      %s126 = sphi 0, %s123
      %s127 = sphi 0, %s126
      %s143 = sphi 0, %s127
      %s149 = sphi 0, %s151
      %s152 = sphi 0, %s149
      %s153 = sphi 0, %s152
      %s169 = sphi 0, %s153
      %s175 = sphi 0, %s177
      %s178 = sphi 0, %s175
      %s179 = sphi 0, %s178
      %s195 = sphi 0, %s179
      %s199 = sphi 0, %s199
      %s201 = sphi 0, %s199
      %s202 = sphi 0, %s201
      %s216 = sphi 0, %s202
    $region4: #{_gpt_forward.1} parent=1 // loop_header_branch
      %22 = sbr.rel (%p20) target = $region8
    $region5: #{_gpt_forward.1} parent=1 // loop_body
      %s24 = ssub.s32 %s19, 1
      %s25 = ssub.s32 %s19, 2
      %s26 = sadd.s32 %s19, 1
      %s28 = sadd.s32 %s27, 1
      %p31 = scmp.eq.s32.totalorder %s19, 1
      %p32 = scmp.ne.s32.totalorder %s27, %s29
      %p33 = scmp.eq.s32.totalorder %s19, 0
      %p34 = por %p32, %p33
      %p35 = scmp.ne.s32.totalorder %s27, %s29
      %p36 = scmp.eq.s32.totalorder %s24, 1
      %p37 = por %p35, %p36
      %p38 = scmp.ne.s32.totalorder %s29, %s30
      %p39 = scmp.eq.s32.totalorder %s24, 0
      %p40 = por %p38, %p39
      %p41 = scmp.ne.s32.totalorder %s29, %s30
      %p42 = scmp.eq.s32.totalorder %s25, 1
      %p43 = por %p41, %p42
      %p45 = scmp.ne.s32.totalorder %s30, %s44
      %p46 = scmp.eq.s32.totalorder %s25, 0
      %p47 = por %p45, %p46
      %s49 = sadd.s32 %s48, 1
      %p52 = scmp.eq.s32.totalorder %s19, 1
      %p53 = scmp.ne.s32.totalorder %s48, %s50
      %p54 = scmp.eq.s32.totalorder %s19, 0
      %p55 = por %p53, %p54
      %p56 = scmp.ne.s32.totalorder %s48, %s50
      %p57 = scmp.eq.s32.totalorder %s24, 1
      %p58 = por %p56, %p57
      %p59 = scmp.ne.s32.totalorder %s50, %s51
      %p60 = scmp.eq.s32.totalorder %s24, 0
      %p61 = por %p59, %p60
      %p62 = scmp.ne.s32.totalorder %s50, %s51
      %p63 = scmp.eq.s32.totalorder %s25, 1
      %p64 = por %p62, %p63
      %p66 = scmp.ne.s32.totalorder %s51, %s65
      %p67 = scmp.eq.s32.totalorder %s25, 0
      %p68 = por %p66, %p67
      %s69 = ssub.s32 %s19, %s26
      %p70 = scmp.eq.s32.totalorder %s69, 0
      %s72 = sadd.s32 %s71, 1
      %s73 = scalar_select %p70, %s71, %s72
      %p76 = pneg %p70
      %p77 = scmp.eq.s32.totalorder %s19, 1
      %p78 = por %p76, %p77
      %p79 = scmp.ne.s32.totalorder %s71, %s74
      %p80 = scmp.eq.s32.totalorder %s19, 0
      %p81 = por %p79, %p80
      %p82 = scmp.ne.s32.totalorder %s71, %s74
      %p83 = scmp.eq.s32.totalorder %s24, 1
      %p84 = por %p82, %p83
      %p85 = scmp.ne.s32.totalorder %s74, %s75
      %p86 = scmp.eq.s32.totalorder %s24, 0
      %p87 = por %p85, %p86
      %p88 = scmp.ne.s32.totalorder %s74, %s75
      %p89 = scmp.eq.s32.totalorder %s25, 1
      %p90 = por %p88, %p89
      %p92 = scmp.ne.s32.totalorder %s75, %s91
      %p93 = scmp.eq.s32.totalorder %s25, 0
      %p94 = por %p92, %p93
      %s95 = ssub.s32 %s19, %s26
      %p96 = scmp.eq.s32.totalorder %s95, 0
      %s98 = sadd.s32 %s97, 1
      %s99 = scalar_select %p96, %s97, %s98
      %p102 = pneg %p96
      %p103 = scmp.eq.s32.totalorder %s19, 1
      %p104 = por %p102, %p103
      %p105 = scmp.ne.s32.totalorder %s97, %s100
      %p106 = scmp.eq.s32.totalorder %s19, 0
      %p107 = por %p105, %p106
      %p108 = scmp.ne.s32.totalorder %s97, %s100
      %p109 = scmp.eq.s32.totalorder %s24, 1
      %p110 = por %p108, %p109
      %p111 = scmp.ne.s32.totalorder %s100, %s101
      %p112 = scmp.eq.s32.totalorder %s24, 0
      %p113 = por %p111, %p112
      %p114 = scmp.ne.s32.totalorder %s100, %s101
      %p115 = scmp.eq.s32.totalorder %s25, 1
      %p116 = por %p114, %p115
      %p118 = scmp.ne.s32.totalorder %s101, %s117
      %p119 = scmp.eq.s32.totalorder %s25, 0
      %p120 = por %p118, %p119
      %s121 = ssub.s32 %s19, %s26
      %p122 = scmp.eq.s32.totalorder %s121, 0
      %s124 = sadd.s32 %s123, 1
      %s125 = scalar_select %p122, %s123, %s124
      %p128 = pneg %p122
      %p129 = scmp.eq.s32.totalorder %s19, 1
      %p130 = por %p128, %p129
      %p131 = scmp.ne.s32.totalorder %s123, %s126
      %p132 = scmp.eq.s32.totalorder %s19, 0
      %p133 = por %p131, %p132
      %p134 = scmp.ne.s32.totalorder %s123, %s126
      %p135 = scmp.eq.s32.totalorder %s24, 1
      %p136 = por %p134, %p135
      %p137 = scmp.ne.s32.totalorder %s126, %s127
      %p138 = scmp.eq.s32.totalorder %s24, 0
      %p139 = por %p137, %p138
      %p140 = scmp.ne.s32.totalorder %s126, %s127
      %p141 = scmp.eq.s32.totalorder %s25, 1
      %p142 = por %p140, %p141
      %p144 = scmp.ne.s32.totalorder %s127, %s143
      %p145 = scmp.eq.s32.totalorder %s25, 0
      %p146 = por %p144, %p145
      %s147 = ssub.s32 %s19, %s26
      %p148 = scmp.eq.s32.totalorder %s147, 0
      %s150 = sadd.s32 %s149, 1
      %s151 = scalar_select %p148, %s149, %s150
      %p154 = pneg %p148
      %p155 = scmp.eq.s32.totalorder %s19, 1
      %p156 = por %p154, %p155
      %p157 = scmp.ne.s32.totalorder %s149, %s152
      %p158 = scmp.eq.s32.totalorder %s19, 0
      %p159 = por %p157, %p158
      %p160 = scmp.ne.s32.totalorder %s149, %s152
      %p161 = scmp.eq.s32.totalorder %s24, 1
      %p162 = por %p160, %p161
      %p163 = scmp.ne.s32.totalorder %s152, %s153
      %p164 = scmp.eq.s32.totalorder %s24, 0
      %p165 = por %p163, %p164
      %p166 = scmp.ne.s32.totalorder %s152, %s153
      %p167 = scmp.eq.s32.totalorder %s25, 1
      %p168 = por %p166, %p167
      %p170 = scmp.ne.s32.totalorder %s153, %s169
      %p171 = scmp.eq.s32.totalorder %s25, 0
      %p172 = por %p170, %p171
      %s173 = ssub.s32 %s19, %s26
      %p174 = scmp.eq.s32.totalorder %s173, 0
      %s176 = sadd.s32 %s175, 1
      %s177 = scalar_select %p174, %s175, %s176
      %p180 = pneg %p174
      %p181 = scmp.eq.s32.totalorder %s19, 1
      %p182 = por %p180, %p181
      %p183 = scmp.ne.s32.totalorder %s175, %s178
      %p184 = scmp.eq.s32.totalorder %s19, 0
      %p185 = por %p183, %p184
      %p186 = scmp.ne.s32.totalorder %s175, %s178
      %p187 = scmp.eq.s32.totalorder %s24, 1
      %p188 = por %p186, %p187
      %p189 = scmp.ne.s32.totalorder %s178, %s179
      %p190 = scmp.eq.s32.totalorder %s24, 0
      %p191 = por %p189, %p190
      %p192 = scmp.ne.s32.totalorder %s178, %s179
      %p193 = scmp.eq.s32.totalorder %s25, 1
      %p194 = por %p192, %p193
      %p196 = scmp.ne.s32.totalorder %s179, %s195
      %p197 = scmp.eq.s32.totalorder %s25, 0
      %p198 = por %p196, %p197
      %s200 = sadd.s32 %s199, 1
      %p203 = scmp.eq.s32.totalorder %s19, 1
      %p204 = scmp.ne.s32.totalorder %s199, %s201
      %p205 = scmp.eq.s32.totalorder %s19, 0
      %p206 = por %p204, %p205
      %p207 = scmp.ne.s32.totalorder %s199, %s201
      %p208 = scmp.eq.s32.totalorder %s24, 1
      %p209 = por %p207, %p208
      %p210 = scmp.ne.s32.totalorder %s201, %s202
      %p211 = scmp.eq.s32.totalorder %s24, 0
      %p212 = por %p210, %p211
      %p213 = scmp.ne.s32.totalorder %s201, %s202
      %p214 = scmp.eq.s32.totalorder %s25, 1
      %p215 = por %p213, %p214
      %p217 = scmp.ne.s32.totalorder %s202, %s216
      %p218 = scmp.eq.s32.totalorder %s25, 0
      %p219 = por %p217, %p218
      %p220 = scmp.le.s32.totalorder 1, %s19
      %p221 = scmp.lt.s32.totalorder %s19, 3
      %p222 = pnand %p220, %p221
      %p223 = pneg %p222
      // Predicated region
      $region9: #{_gpt_forward.1} parent=5 // pred_check
        _
      $region10: #{_gpt_forward.1} parent=5 // pred_check_branch
        %225 = sbr.rel (%p222) target = $region12
      $region11: #{_gpt_forward.1} parent=5 // pred_region
        %s226 = ssub.s32 %s19, 1
        // Predicated region
        $region13: #{_gpt_forward.1} parent=11 // pred_check
          %p227 = pneg %p40
        $region14: #{_gpt_forward.1} parent=11 // pred_check_branch
          %229 = sbr.rel (%p227) target = $region16
        $region15: #{_gpt_forward.1} parent=11 // pred_region
          _
        $region16: #{_gpt_forward.1} parent=11 // pred_fallthru
          _
        // Predicated region
        $region17: #{_gpt_forward.1} parent=11 // pred_check
          %p230 = pneg %p61
        $region18: #{_gpt_forward.1} parent=11 // pred_check_branch
          %232 = sbr.rel (%p230) target = $region20
        $region19: #{_gpt_forward.1} parent=11 // pred_region
          _
        $region20: #{_gpt_forward.1} parent=11 // pred_fallthru
          _
      $region12: #{_gpt_forward.1} parent=5 // pred_fallthru
        _
      %p233 = scmp.lt.s32.totalorder %s19, 2
      // Predicated region
      $region21: #{_gpt_forward.1} parent=5 // pred_check
        %p234 = pneg %p233
      $region22: #{_gpt_forward.1} parent=5 // pred_check_branch
        %236 = sbr.rel (%p234) target = $region24
      $region23: #{_gpt_forward.1} parent=5 // pred_region
        // Predicated region
        $region25: #{_gpt_forward.1} parent=23 // pred_check
          %p237 = pneg %p81
        $region26: #{_gpt_forward.1} parent=23 // pred_check_branch
          %239 = sbr.rel (%p237) target = $region28
        $region27: #{_gpt_forward.1} parent=23 // pred_region
          %s240 = sand.u32 %s71, 1
          %s241 = scalar_lea.sflag [#allocation3], %s240
          %s242 = sand.u32 %s71, 1
          %s243 = smul.addr %s242, 192
          %s244 = scalar_lea.vmem [#allocation2], %s243
          %s246 = ssub.s32 3072, 3072
          %247 = vsyncadd %s241, %s246
          %s248 = smul.addr %s19, 48
          %s249 = smul.addr %s248, 64
          %s250 = scalar_lea.hbm %s2, %s249
          %s251 = sshll.u32 %s244, 4
          %s252 = int_to_ptr.vmem [resolvable:$true] %s251
          %257 = dma.hbm_to_vmem [thread:$0]  %s250, 3072, %s252, %s241, 192, 192, 12
        $region28: #{_gpt_forward.1} parent=23 // pred_fallthru
          _
        // Predicated region
        $region29: #{_gpt_forward.1} parent=23 // pred_check
          %p258 = pneg %p107
        $region30: #{_gpt_forward.1} parent=23 // pred_check_branch
          %260 = sbr.rel (%p258) target = $region32
        $region31: #{_gpt_forward.1} parent=23 // pred_region
          %s261 = sand.u32 %s19, 1
          %s262 = scalar_lea.sflag [#allocation5], %s261
          %s263 = sand.u32 %s97, 1
          %s264 = smul.addr %s263, 256
          %s265 = scalar_lea.vmem [#allocation4], %s264
          %s267 = ssub.s32 4096, 4096
          %268 = vsyncadd %s262, %s267
          %s269 = smul.addr %s19, 64
          %s270 = smul.addr %s269, 64
          %s271 = scalar_lea.hbm %s3, %s270
          %s272 = sshll.u32 %s265, 4
          %s273 = int_to_ptr.vmem [resolvable:$true] %s272
          %278 = dma.hbm_to_vmem [thread:$0]  %s271, 4096, %s273, %s262, 256, 256, 16
        $region32: #{_gpt_forward.1} parent=23 // pred_fallthru
          _
        // Predicated region
        $region33: #{_gpt_forward.1} parent=23 // pred_check
          %p279 = pneg %p133
        $region34: #{_gpt_forward.1} parent=23 // pred_check_branch
          %281 = sbr.rel (%p279) target = $region36
        $region35: #{_gpt_forward.1} parent=23 // pred_region
          %p282 = scmp.lt.s32.totalorder %s19, 1
          %s283 = scalar_select %p282, %s19, 1
          %s284 = smul.addr %s283, 16
          %s285 = smul.addr %s284, 4
          %s286 = scalar_lea.vmem %s4, %s285
        $region36: #{_gpt_forward.1} parent=23 // pred_fallthru
          _
        // Predicated region
        $region37: #{_gpt_forward.1} parent=23 // pred_check
          %p287 = pneg %p159
        $region38: #{_gpt_forward.1} parent=23 // pred_check_branch
          %289 = sbr.rel (%p287) target = $region40
        $region39: #{_gpt_forward.1} parent=23 // pred_region
          %s290 = sand.u32 %s19, 1
          %s291 = scalar_lea.sflag [#allocation5], %s290
          %s292 = sand.u32 %s149, 1
          %s293 = smul.addr %s292, 256
          %s294 = scalar_lea.vmem [#allocation6], %s293
          %s296 = ssub.s32 4096, 4096
          %297 = vsyncadd %s291, %s296
          %s298 = smul.addr %s19, 64
          %s299 = smul.addr %s298, 64
          %s300 = scalar_lea.hbm %s5, %s299
          %s301 = sshll.u32 %s294, 4
          %s302 = int_to_ptr.vmem [resolvable:$true] %s301
          %307 = dma.hbm_to_vmem [thread:$0]  %s300, 4096, %s302, %s291, 64, 64, 4
        $region40: #{_gpt_forward.1} parent=23 // pred_fallthru
          _
        // Predicated region
        $region41: #{_gpt_forward.1} parent=23 // pred_check
          %p308 = pneg %p185
        $region42: #{_gpt_forward.1} parent=23 // pred_check_branch
          %310 = sbr.rel (%p308) target = $region44
        $region43: #{_gpt_forward.1} parent=23 // pred_region
          %p311 = scmp.lt.s32.totalorder %s19, 1
          %s312 = scalar_select %p311, %s19, 1
          %s313 = smul.addr %s312, 2
          %s314 = smul.addr %s313, 8
          %s315 = scalar_lea.vmem %s6, %s314
        $region44: #{_gpt_forward.1} parent=23 // pred_fallthru
          _
      $region24: #{_gpt_forward.1} parent=5 // pred_fallthru
        _
      %p316 = scmp.le.s32.totalorder 1, %s19
      %p317 = scmp.lt.s32.totalorder %s19, 3
      %p318 = pnand %p316, %p317
      %p319 = pneg %p318
      // Predicated region
      $region45: #{_gpt_forward.1} parent=5 // pred_check
        _
      $region46: #{_gpt_forward.1} parent=5 // pred_check_branch
        %321 = sbr.rel (%p318) target = $region48
      $region47: #{_gpt_forward.1} parent=5 // pred_region
        %s322 = ssub.s32 %s19, 1
        %s323 = sand.u32 %s74, 1
        %s324 = scalar_lea.sflag [#allocation3], %s323
        %s325 = sand.u32 %s74, 1
        %s326 = smul.addr %s325, 192
        %s327 = scalar_lea.vmem [#allocation2], %s326
        // Predicated region
        $region49: #{_gpt_forward.1} parent=47 // pred_check
          %p328 = pneg %p87
        $region50: #{_gpt_forward.1} parent=47 // pred_check_branch
          %330 = sbr.rel (%p328) target = $region52
        $region51: #{_gpt_forward.1} parent=47 // pred_region
          %331 = dma.done %s324, 3072
        $region52: #{_gpt_forward.1} parent=47 // pred_fallthru
          _
        %s332 = sand.u32 %s24, 1
        %s333 = scalar_lea.sflag [#allocation5], %s332
        %s334 = sand.u32 %s100, 1
        %s335 = smul.addr %s334, 256
        %s336 = scalar_lea.vmem [#allocation4], %s335
        // Predicated region
        $region53: #{_gpt_forward.1} parent=47 // pred_check
          %p337 = pneg %p113
        $region54: #{_gpt_forward.1} parent=47 // pred_check_branch
          %339 = sbr.rel (%p337) target = $region56
        $region55: #{_gpt_forward.1} parent=47 // pred_region
          %340 = dma.done %s333, 4096
        $region56: #{_gpt_forward.1} parent=47 // pred_fallthru
          _
        %s341 = sand.u32 %s24, 1
        %s342 = scalar_lea.sflag [#allocation5], %s341
        %s343 = sand.u32 %s152, 1
        %s344 = smul.addr %s343, 256
        %s345 = scalar_lea.vmem [#allocation6], %s344
        // Predicated region
        $region57: #{_gpt_forward.1} parent=47 // pred_check
          %p346 = pneg %p165
        $region58: #{_gpt_forward.1} parent=47 // pred_check_branch
          %348 = sbr.rel (%p346) target = $region60
        $region59: #{_gpt_forward.1} parent=47 // pred_region
          %349 = dma.done %s342, 4096
        $region60: #{_gpt_forward.1} parent=47 // pred_fallthru
          _
        %p350 = pneg %p40
        %p351 = pneg %p37
        %p352 = pneg %p61
        %p353 = pneg %p58
        %s354 = sand.u32 %s74, 1
        %s355 = scalar_lea.sflag [#allocation3], %s354
        %s356 = sand.u32 %s74, 1
        %s357 = smul.addr %s356, 192
        %s358 = scalar_lea.vmem [#allocation2], %s357
        %p359 = pneg %p87
        %p360 = pneg %p84
        %s361 = sand.u32 %s24, 1
        %s362 = scalar_lea.sflag [#allocation5], %s361
        %s363 = sand.u32 %s100, 1
        %s364 = smul.addr %s363, 256
        %s365 = scalar_lea.vmem [#allocation4], %s364
        %p366 = pneg %p113
        %p367 = pneg %p110
        %p368 = scmp.lt.s32.totalorder %s24, 1
        %s369 = scalar_select %p368, %s24, 1
        %s370 = smul.addr %s369, 16
        %s371 = smul.addr %s370, 4
        %s372 = scalar_lea.vmem %s4, %s371
        %p373 = pneg %p139
        %p374 = pneg %p136
        %s375 = sand.u32 %s24, 1
        %s376 = scalar_lea.sflag [#allocation5], %s375
        %s377 = sand.u32 %s152, 1
        %s378 = smul.addr %s377, 256
        %s379 = scalar_lea.vmem [#allocation6], %s378
        %p380 = pneg %p165
        %p381 = pneg %p162
        %p382 = scmp.lt.s32.totalorder %s24, 1
        %s383 = scalar_select %p382, %s24, 1
        %s384 = smul.addr %s383, 2
        %s385 = smul.addr %s384, 8
        %s386 = scalar_lea.vmem %s6, %s385
        %p387 = pneg %p191
        %p388 = pneg %p188
        %p389 = pneg %p212
        %p390 = pneg %p209
        %p391 = scmp.lt.s32.totalorder %s24, 1
        %s392 = scalar_select %p391, %s24, 1
        %s393 = smul.addr %s392, 16
        %s394 = smul.addr %s393, 4
        %s395 = scalar_lea.vmem %s4, %s394
        %p396 = scmp.lt.s32.totalorder %s24, 1
        %s397 = scalar_select %p396, %s24, 1
        %s398 = smul.addr %s397, 2
        %s399 = smul.addr %s398, 8
        %s400 = scalar_lea.vmem %s6, %s399
        %p402 = scmp.eq.s32.totalorder %s24, 0
        // Predicated region
        $region61: #{_gpt_forward.1} parent=47 // pred_check
          %p403 = pneg %p402
        $region62: #{_gpt_forward.1} parent=47 // pred_check_branch
          %405 = sbr.rel (%p403) target = $region64
        $region63: #{_gpt_forward.1} parent=47 // pred_region
          %v406 = vld [vmem:[%s0] sm:$0xff]
          %v407 = vld [vmem:[%s0 + $0x8] sm:$0xff]
          %408 = vst [vmem:[%s7] sm:$0xff] %v406
          %409 = vst [vmem:[%s7 + $0x8] sm:$0xff] %v407
        $region64: #{_gpt_forward.1} parent=47 // pred_fallthru
          _
        %v410 = vld [vmem:[%s7] sm:$0xff]
        %v411 = vld [vmem:[%s7 + $0x8] sm:$0xff]
        %v412 = vld [vmem:[%s327] sm:$0xff]
        %v413 = vld [vmem:[%s327 + $0x8] sm:$0xf]
        %v414 = vld [vmem:[%s327 + $0xc] sm:$0xff]
        %v415 = vld [vmem:[%s327 + $0x14] sm:$0xf]
        %v416 = vld [vmem:[%s327 + $0x18] sm:$0xff]
        %v417 = vld [vmem:[%s327 + $0x20] sm:$0xf]
        %v418 = vld [vmem:[%s327 + $0x24] sm:$0xff]
        %v419 = vld [vmem:[%s327 + $0x2c] sm:$0xf]
        %v420 = vld [vmem:[%s327 + $0x30] sm:$0xff]
        %v421 = vld [vmem:[%s327 + $0x38] sm:$0xf]
        %v422 = vld [vmem:[%s327 + $0x3c] sm:$0xff]
        %v423 = vld [vmem:[%s327 + $0x44] sm:$0xf]
        %v424 = vld [vmem:[%s327 + $0x48] sm:$0xff]
        %v425 = vld [vmem:[%s327 + $0x50] sm:$0xf]
        %v426 = vld [vmem:[%s327 + $0x54] sm:$0xff]
        %v427 = vld [vmem:[%s327 + $0x5c] sm:$0xf]
        %v428 = vld [vmem:[%s327 + $0x60] sm:$0xff]
        %v429 = vld [vmem:[%s327 + $0x68] sm:$0xf]
        %v430 = vld [vmem:[%s327 + $0x6c] sm:$0xff]
        %v431 = vld [vmem:[%s327 + $0x74] sm:$0xf]
        %v432 = vld [vmem:[%s327 + $0x78] sm:$0xff]
        %v433 = vld [vmem:[%s327 + $0x80] sm:$0xf]
        %v434 = vld [vmem:[%s327 + $0x84] sm:$0xff]
        %v435 = vld [vmem:[%s327 + $0x8c] sm:$0xf]
        %v436 = vld [vmem:[%s327 + $0x90] sm:$0xff]
        %v437 = vld [vmem:[%s327 + $0x98] sm:$0xf]
        %v438 = vld [vmem:[%s327 + $0x9c] sm:$0xff]
        %v439 = vld [vmem:[%s327 + $0xa4] sm:$0xf]
        %v440 = vld [vmem:[%s327 + $0xa8] sm:$0xff]
        %v441 = vld [vmem:[%s327 + $0xb0] sm:$0xf]
        %v442 = vld [vmem:[%s327 + $0xb4] sm:$0xff]
        %v443 = vld [vmem:[%s327 + $0xbc] sm:$0xf]
        %v444 = vld [vmem:[%s336] sm:$0xff]
        %v445 = vld [vmem:[%s336 + $0x8] sm:$0xff]
        %v446 = vld [vmem:[%s336 + $0x10] sm:$0xff]
        %v447 = vld [vmem:[%s336 + $0x18] sm:$0xff]
        %v448 = vld [vmem:[%s336 + $0x20] sm:$0xff]
        %v449 = vld [vmem:[%s336 + $0x28] sm:$0xff]
        %v450 = vld [vmem:[%s336 + $0x30] sm:$0xff]
        %v451 = vld [vmem:[%s336 + $0x38] sm:$0xff]
        %v452 = vld [vmem:[%s336 + $0x40] sm:$0xff]
        %v453 = vld [vmem:[%s336 + $0x48] sm:$0xff]
        %v454 = vld [vmem:[%s336 + $0x50] sm:$0xff]
        %v455 = vld [vmem:[%s336 + $0x58] sm:$0xff]
        %v456 = vld [vmem:[%s336 + $0x60] sm:$0xff]
        %v457 = vld [vmem:[%s336 + $0x68] sm:$0xff]
        %v458 = vld [vmem:[%s336 + $0x70] sm:$0xff]
        %v459 = vld [vmem:[%s336 + $0x78] sm:$0xff]
        %v460 = vld [vmem:[%s336 + $0x80] sm:$0xff]
        %v461 = vld [vmem:[%s336 + $0x88] sm:$0xff]
        %v462 = vld [vmem:[%s336 + $0x90] sm:$0xff]
        %v463 = vld [vmem:[%s336 + $0x98] sm:$0xff]
        %v464 = vld [vmem:[%s336 + $0xa0] sm:$0xff]
        %v465 = vld [vmem:[%s336 + $0xa8] sm:$0xff]
        %v466 = vld [vmem:[%s336 + $0xb0] sm:$0xff]
        %v467 = vld [vmem:[%s336 + $0xb8] sm:$0xff]
        %v468 = vld [vmem:[%s336 + $0xc0] sm:$0xff]
        %v469 = vld [vmem:[%s336 + $0xc8] sm:$0xff]
        %v470 = vld [vmem:[%s336 + $0xd0] sm:$0xff]
        %v471 = vld [vmem:[%s336 + $0xd8] sm:$0xff]
        %v472 = vld [vmem:[%s336 + $0xe0] sm:$0xff]
        %v473 = vld [vmem:[%s336 + $0xe8] sm:$0xff]
        %v474 = vld [vmem:[%s336 + $0xf0] sm:$0xff]
        %v475 = vld [vmem:[%s336 + $0xf8] sm:$0xff]
        %v476 = vld [vmem:[%s395] sm:$0xf]
        %v477 = vld [vmem:[%s395 + $0x4] sm:$0xf]
        %v478 = vld [vmem:[%s395 + $0x8] sm:$0xf]
        %v479 = vld [vmem:[%s395 + $0xc] sm:$0xf]
        %v480 = vld [vmem:[%s395 + $0x10] sm:$0xf]
        %v481 = vld [vmem:[%s395 + $0x14] sm:$0xf]
        %v482 = vld [vmem:[%s395 + $0x18] sm:$0xf]
        %v483 = vld [vmem:[%s395 + $0x1c] sm:$0xf]
        %v484 = vld [vmem:[%s395 + $0x20] sm:$0xf]
        %v485 = vld [vmem:[%s395 + $0x24] sm:$0xf]
        %v486 = vld [vmem:[%s395 + $0x28] sm:$0xf]
        %v487 = vld [vmem:[%s395 + $0x2c] sm:$0xf]
        %v488 = vld [vmem:[%s395 + $0x30] sm:$0xf]
        %v489 = vld [vmem:[%s395 + $0x34] sm:$0xf]
        %v490 = vld [vmem:[%s395 + $0x38] sm:$0xf]
        %v491 = vld [vmem:[%s395 + $0x3c] sm:$0xf]
        %v492 = vld [vmem:[%s345] sm:$0xf]
        %v493 = vld [vmem:[%s345 + $0x4] sm:$0xf]
        %v494 = vld [vmem:[%s345 + $0x8] sm:$0xf]
        %v495 = vld [vmem:[%s345 + $0xc] sm:$0xf]
        %v496 = vld [vmem:[%s345 + $0x10] sm:$0xf]
        %v497 = vld [vmem:[%s345 + $0x14] sm:$0xf]
        %v498 = vld [vmem:[%s345 + $0x18] sm:$0xf]
        %v499 = vld [vmem:[%s345 + $0x1c] sm:$0xf]
        %v500 = vld [vmem:[%s345 + $0x20] sm:$0xf]
        %v501 = vld [vmem:[%s345 + $0x24] sm:$0xf]
        %v502 = vld [vmem:[%s345 + $0x28] sm:$0xf]
        %v503 = vld [vmem:[%s345 + $0x2c] sm:$0xf]
        %v504 = vld [vmem:[%s345 + $0x30] sm:$0xf]
        %v505 = vld [vmem:[%s345 + $0x34] sm:$0xf]
        %v506 = vld [vmem:[%s345 + $0x38] sm:$0xf]
        %v507 = vld [vmem:[%s345 + $0x3c] sm:$0xf]
        %v508 = vld [vmem:[%s345 + $0x40] sm:$0xf]
        %v509 = vld [vmem:[%s345 + $0x44] sm:$0xf]
        %v510 = vld [vmem:[%s345 + $0x48] sm:$0xf]
        %v511 = vld [vmem:[%s345 + $0x4c] sm:$0xf]
        %v512 = vld [vmem:[%s345 + $0x50] sm:$0xf]
        %v513 = vld [vmem:[%s345 + $0x54] sm:$0xf]
        %v514 = vld [vmem:[%s345 + $0x58] sm:$0xf]
        %v515 = vld [vmem:[%s345 + $0x5c] sm:$0xf]
        %v516 = vld [vmem:[%s345 + $0x60] sm:$0xf]
        %v517 = vld [vmem:[%s345 + $0x64] sm:$0xf]
        %v518 = vld [vmem:[%s345 + $0x68] sm:$0xf]
        %v519 = vld [vmem:[%s345 + $0x6c] sm:$0xf]
        %v520 = vld [vmem:[%s345 + $0x70] sm:$0xf]
        %v521 = vld [vmem:[%s345 + $0x74] sm:$0xf]
        %v522 = vld [vmem:[%s345 + $0x78] sm:$0xf]
        %v523 = vld [vmem:[%s345 + $0x7c] sm:$0xf]
        %v524 = vld [vmem:[%s345 + $0x80] sm:$0xf]
        %v525 = vld [vmem:[%s345 + $0x84] sm:$0xf]
        %v526 = vld [vmem:[%s345 + $0x88] sm:$0xf]
        %v527 = vld [vmem:[%s345 + $0x8c] sm:$0xf]
        %v528 = vld [vmem:[%s345 + $0x90] sm:$0xf]
        %v529 = vld [vmem:[%s345 + $0x94] sm:$0xf]
        %v530 = vld [vmem:[%s345 + $0x98] sm:$0xf]
        %v531 = vld [vmem:[%s345 + $0x9c] sm:$0xf]
        %v532 = vld [vmem:[%s345 + $0xa0] sm:$0xf]
        %v533 = vld [vmem:[%s345 + $0xa4] sm:$0xf]
        %v534 = vld [vmem:[%s345 + $0xa8] sm:$0xf]
        %v535 = vld [vmem:[%s345 + $0xac] sm:$0xf]
        %v536 = vld [vmem:[%s345 + $0xb0] sm:$0xf]
        %v537 = vld [vmem:[%s345 + $0xb4] sm:$0xf]
        %v538 = vld [vmem:[%s345 + $0xb8] sm:$0xf]
        %v539 = vld [vmem:[%s345 + $0xbc] sm:$0xf]
        %v540 = vld [vmem:[%s345 + $0xc0] sm:$0xf]
        %v541 = vld [vmem:[%s345 + $0xc4] sm:$0xf]
        %v542 = vld [vmem:[%s345 + $0xc8] sm:$0xf]
        %v543 = vld [vmem:[%s345 + $0xcc] sm:$0xf]
        %v544 = vld [vmem:[%s345 + $0xd0] sm:$0xf]
        %v545 = vld [vmem:[%s345 + $0xd4] sm:$0xf]
        %v546 = vld [vmem:[%s345 + $0xd8] sm:$0xf]
        %v547 = vld [vmem:[%s345 + $0xdc] sm:$0xf]
        %v548 = vld [vmem:[%s345 + $0xe0] sm:$0xf]
        %v549 = vld [vmem:[%s345 + $0xe4] sm:$0xf]
        %v550 = vld [vmem:[%s345 + $0xe8] sm:$0xf]
        %v551 = vld [vmem:[%s345 + $0xec] sm:$0xf]
        %v552 = vld [vmem:[%s345 + $0xf0] sm:$0xf]
        %v553 = vld [vmem:[%s345 + $0xf4] sm:$0xf]
        %v554 = vld [vmem:[%s345 + $0xf8] sm:$0xf]
        %v555 = vld [vmem:[%s345 + $0xfc] sm:$0xf]
        %v556 = vld [vmem:[%s400] sm:$0xff]
        %v557 = vld [vmem:[%s400 + $0x8] sm:$0xff]
        %v559 = vrot.slane %v557, 1
        %v562 = vunpack.c.l.s4 1935823168
        %v563 = vunpack.c.0.s8 %v562
        %v564 = vlaneseq
        %v565 = vshrl.u32 %v564, 7
        %v566 = vsub.s32 %v563, %v565
        %v567 = vrot.slane %v559, %v566
        %v568 = vpack.c.bf16 %v411, %v410
        %v601 = vunpack.c.l.b16 %v412
        %v602 = vunpack.c.h.b16 %v412
        %v603 = vunpack.c.l.b16 %v413
        %v604 = vunpack.c.l.b16 %v414
        %v605 = vunpack.c.h.b16 %v414
        %v606 = vunpack.c.l.b16 %v415
        %v607 = vunpack.c.l.b16 %v416
        %v608 = vunpack.c.h.b16 %v416
        %v609 = vunpack.c.l.b16 %v417
        %v610 = vunpack.c.l.b16 %v418
        %v611 = vunpack.c.h.b16 %v418
        %v612 = vunpack.c.l.b16 %v419
        %v613 = vunpack.c.l.b16 %v420
        %v614 = vunpack.c.h.b16 %v420
        %v615 = vunpack.c.l.b16 %v421
        %v616 = vunpack.c.l.b16 %v422
        %v617 = vunpack.c.h.b16 %v422
        %v618 = vunpack.c.l.b16 %v423
        %v619 = vunpack.c.l.b16 %v424
        %v620 = vunpack.c.h.b16 %v424
        %v621 = vunpack.c.l.b16 %v425
        %v622 = vunpack.c.l.b16 %v426
        %v623 = vunpack.c.h.b16 %v426
        %v624 = vunpack.c.l.b16 %v427
        %v625 = vunpack.c.l.b16 %v428
        %v626 = vunpack.c.h.b16 %v428
        %v627 = vunpack.c.l.b16 %v429
        %v628 = vunpack.c.l.b16 %v430
        %v629 = vunpack.c.h.b16 %v430
        %v630 = vunpack.c.l.b16 %v431
        %v631 = vunpack.c.l.b16 %v432
        %v632 = vunpack.c.h.b16 %v432
        %v633 = vunpack.c.l.b16 %v433
        %v634 = vunpack.c.l.b16 %v434
        %v635 = vunpack.c.h.b16 %v434
        %v636 = vunpack.c.l.b16 %v435
        %v637 = vunpack.c.l.b16 %v436
        %v638 = vunpack.c.h.b16 %v436
        %v639 = vunpack.c.l.b16 %v437
        %v640 = vunpack.c.l.b16 %v438
        %v641 = vunpack.c.h.b16 %v438
        %v642 = vunpack.c.l.b16 %v439
        %v643 = vunpack.c.l.b16 %v440
        %v644 = vunpack.c.h.b16 %v440
        %v645 = vunpack.c.l.b16 %v441
        %v646 = vunpack.c.l.b16 %v442
        %v647 = vunpack.c.h.b16 %v442
        %v648 = vunpack.c.l.b16 %v443
        %v649 = vpack.c.b16 %v604, %v601
        %v650 = vpack.c.b16 %v605, %v602
        %v651 = vpack.c.b16 %v606, %v603
        %v652 = vpack.c.b16 %v610, %v607
        %v653 = vpack.c.b16 %v611, %v608
        %v654 = vpack.c.b16 %v612, %v609
        %v655 = vpack.c.b16 %v616, %v613
        %v656 = vpack.c.b16 %v617, %v614
        %v657 = vpack.c.b16 %v618, %v615
        %v658 = vpack.c.b16 %v622, %v619
        %v659 = vpack.c.b16 %v623, %v620
        %v660 = vpack.c.b16 %v624, %v621
        %v661 = vpack.c.b16 %v628, %v625
        %v662 = vpack.c.b16 %v629, %v626
        %v663 = vpack.c.b16 %v630, %v627
        %v664 = vpack.c.b16 %v634, %v631
        %v665 = vpack.c.b16 %v635, %v632
        %v666 = vpack.c.b16 %v636, %v633
        %v667 = vpack.c.b16 %v640, %v637
        %v668 = vpack.c.b16 %v641, %v638
        %v669 = vpack.c.b16 %v642, %v639
        %v670 = vpack.c.b16 %v646, %v643
        %v671 = vpack.c.b16 %v647, %v644
        %v672 = vpack.c.b16 %v648, %v645
        %697 = vmatprep.subr.bf16.mxu0 %v671
        %698 = vmatpush1.bf16.msra.mxu0 %v670
        %699 = vmatprep.subr.bf16.mxu0 %v668
        %700 = vmatpush1.bf16.msra.mxu0 %v667
        %701 = vmatprep.subr.bf16.mxu0 %v665
        %702 = vmatpush1.bf16.msra.mxu0 %v664
        %703 = vmatprep.subr.bf16.mxu0 %v662
        %704 = vmatpush1.bf16.msra.mxu0 %v661
        %705 = vmatprep.subr.bf16.mxu0 %v659
        %706 = vmatpush1.bf16.msra.mxu0 %v658
        %707 = vmatprep.subr.bf16.mxu0 %v656
        %708 = vmatpush1.bf16.msra.mxu0 %v655
        %709 = vmatprep.subr.bf16.mxu0 %v653
        %710 = vmatpush1.bf16.msra.mxu0 %v652
        %711 = vmatprep.subr.bf16.mxu0 %v650
        %712 = vmatpush1.bf16.msra.mxu0 %v649
        %713 = vmatprep.subr.bf16.mxu0 0
        %714 = vmatpush2.bf16.msra.mxu0 0
        %715 = vmatprep.subr.bf16.mxu0 0
        %716 = vmatpush2.bf16.msra.mxu0 0
        %717 = vmatprep.subr.bf16.mxu0 0
        %718 = vmatpush2.bf16.msra.mxu0 0
        %719 = vmatprep.subr.bf16.mxu0 0
        %720 = vmatpush2.bf16.msra.mxu0 0
        %721 = vmatprep.subr.bf16.mxu0 0
        %722 = vmatpush2.bf16.msra.mxu0 0
        %723 = vmatprep.subr.bf16.mxu0 0
        %724 = vmatpush2.bf16.msra.mxu0 0
        %725 = vmatprep.subr.bf16.mxu0 0
        %726 = vmatpush2.bf16.msra.mxu0 0
        %727 = vmatprep.subr.bf16.mxu0 0
        %728 = vmatpush2.bf16.msra.mxu0 0
        %729 = vmatprep.mubr.bf16.mxu0 0
        %730 = vmatmul.mubr.bf16.gmra.mxu0 %v568
        %v731 = vpop.f32.mrf.mxu0
        %v732 = vadd.f32 0.0, %v731
        %v733 = vpop.f32.mrf.mxu0
        %v734 = vadd.f32 0.0, %v733
        %v735 = vpop.f32.mrf.mxu0
        %v736 = vadd.f32 0.0, %v735
        %v737 = vpop.f32.mrf.mxu0
        %v738 = vadd.f32 0.0, %v737
        %739 = vdwg.mxu0
        %740 = vmatprep.subr.bf16.mxu0 0
        %741 = vmatpush1.bf16.msra.mxu0 %v672
        %742 = vmatprep.subr.bf16.mxu0 0
        %743 = vmatpush1.bf16.msra.mxu0 %v669
        %744 = vmatprep.subr.bf16.mxu0 0
        %745 = vmatpush1.bf16.msra.mxu0 %v666
        %746 = vmatprep.subr.bf16.mxu0 0
        %747 = vmatpush1.bf16.msra.mxu0 %v663
        %748 = vmatprep.subr.bf16.mxu0 0
        %749 = vmatpush1.bf16.msra.mxu0 %v660
        %750 = vmatprep.subr.bf16.mxu0 0
        %751 = vmatpush1.bf16.msra.mxu0 %v657
        %752 = vmatprep.subr.bf16.mxu0 0
        %753 = vmatpush1.bf16.msra.mxu0 %v654
        %754 = vmatprep.subr.bf16.mxu0 0
        %755 = vmatpush1.bf16.msra.mxu0 %v651
        %756 = vmatprep.subr.bf16.mxu0 0
        %757 = vmatpush2.bf16.msra.mxu0 0
        %758 = vmatprep.subr.bf16.mxu0 0
        %759 = vmatpush2.bf16.msra.mxu0 0
        %760 = vmatprep.subr.bf16.mxu0 0
        %761 = vmatpush2.bf16.msra.mxu0 0
        %762 = vmatprep.subr.bf16.mxu0 0
        %763 = vmatpush2.bf16.msra.mxu0 0
        %764 = vmatprep.subr.bf16.mxu0 0
        %765 = vmatpush2.bf16.msra.mxu0 0
        %766 = vmatprep.subr.bf16.mxu0 0
        %767 = vmatpush2.bf16.msra.mxu0 0
        %768 = vmatprep.subr.bf16.mxu0 0
        %769 = vmatpush2.bf16.msra.mxu0 0
        %770 = vmatprep.subr.bf16.mxu0 0
        %771 = vmatpush2.bf16.msra.mxu0 0
        %772 = vmatprep.mubr.bf16.mxu0 0
        %773 = vmatmul.mubr.bf16.gmra.mxu0 %v568
        %v774 = vpop.f32.mrf.mxu0
        %v775 = vadd.f32 0.0, %v774
        %v776 = vpop.f32.mrf.mxu0
        %v777 = vpop.f32.mrf.mxu0
        %v778 = vadd.f32 0.0, %v777
        %v779 = vpop.f32.mrf.mxu0
        %780 = vdwg.mxu0
        %v781 = vlaneseq
        %v782 = vshrl.u32 %v781, 7
        %v783 = vsub.s32 0, %v782
        %v784 = vrot.slane %v556, %v783
        %v785 = vadd.f32 %v732, %v784
        %v786 = vadd.f32 %v736, %v784
        %v787 = vlaneseq
        %v788 = vshrl.u32 %v787, 7
        %v789 = vsub.s32 1, %v788
        %v790 = vrot.slane %v556, %v789
        %v791 = vadd.f32 %v734, %v790
        %v792 = vadd.f32 %v738, %v790
        %v793 = vlaneseq
        %v794 = vshrl.u32 %v793, 7
        %v795 = vsub.s32 2, %v794
        %v796 = vrot.slane %v556, %v795
        %v797 = vadd.f32 %v775, %v796
        %v798 = vadd.f32 %v778, %v796
        %801 = vrot.lane.b32.xlu0 %v785, 96
        %v802 = vpop.permute.xlu0 %801
        %803 = vrot.lane.b32.xlu0 %v786, 96
        %v804 = vpop.permute.xlu0 %803
        %807 = vrot.lane.b32.xlu0 %v785, 64
        %v808 = vpop.permute.xlu0 %807
        %809 = vrot.lane.b32.xlu0 %v786, 64
        %v810 = vpop.permute.xlu0 %809
        %813 = vrot.lane.b32.xlu0 %v785, 32
        %v814 = vpop.permute.xlu0 %813
        %815 = vrot.lane.b32.xlu0 %v786, 32
        %v816 = vpop.permute.xlu0 %815
        %v819 = vcombine.low %v785, %v808
        %v820 = vcombine.high %v785, %v808
        %v822 = vunpack.c.l.s4 1983009808
        %v823 = vunpack.c.0.s8 %v822
        %v824 = vlaneseq
        %v825 = vshrl.u32 %v824, 7
        %v826 = vsub.s32 %v823, %v825
        %v827 = vrot.slane %v819, %v826
        %v829 = vunpack.c.l.s4 1983009808
        %v830 = vunpack.c.0.s8 %v829
        %v831 = vlaneseq
        %v832 = vshrl.u32 %v831, 7
        %v833 = vsub.s32 %v830, %v832
        %v834 = vrot.slane %v820, %v833
        %v835 = vcombine.low %v802, %v814
        %v836 = vcombine.high %v802, %v814
        %v838 = vunpack.c.l.s4 1983009808
        %v839 = vunpack.c.0.s8 %v838
        %v840 = vlaneseq
        %v841 = vshrl.u32 %v840, 7
        %v842 = vsub.s32 %v839, %v841
        %v843 = vrot.slane %v835, %v842
        %v845 = vunpack.c.l.s4 1983009808
        %v846 = vunpack.c.0.s8 %v845
        %v847 = vlaneseq
        %v848 = vshrl.u32 %v847, 7
        %v849 = vsub.s32 %v846, %v848
        %v850 = vrot.slane %v836, %v849
        %v851 = vcombine.low %v827, %v843
        %v852 = vcombine.high %v827, %v843
        %v854 = vunpack.c.l.s4 1934713408
        %v855 = vunpack.c.0.s8 %v854
        %v856 = vlaneseq
        %v857 = vshrl.u32 %v856, 7
        %v858 = vsub.s32 %v855, %v857
        %v859 = vrot.slane %v851, %v858
        %v861 = vunpack.c.l.s4 1934713408
        %v862 = vunpack.c.0.s8 %v861
        %v863 = vlaneseq
        %v864 = vshrl.u32 %v863, 7
        %v865 = vsub.s32 %v862, %v864
        %v866 = vrot.slane %v852, %v865
        %v867 = vcombine.low %v834, %v850
        %v868 = vcombine.high %v834, %v850
        %v870 = vunpack.c.l.s4 1934713408
        %v871 = vunpack.c.0.s8 %v870
        %v872 = vlaneseq
        %v873 = vshrl.u32 %v872, 7
        %v874 = vsub.s32 %v871, %v873
        %v875 = vrot.slane %v867, %v874
        %v877 = vunpack.c.l.s4 1934713408
        %v878 = vunpack.c.0.s8 %v877
        %v879 = vlaneseq
        %v880 = vshrl.u32 %v879, 7
        %v881 = vsub.s32 %v878, %v880
        %v882 = vrot.slane %v868, %v881
        %v883 = vcombine.high %v859, 0.0
        %v884 = vcombine.high %v866, 0.0
        %v885 = vcombine.high %v875, 0.0
        %v886 = vcombine.high %v882, 0.0
        %v887 = vcombine.low %v786, %v810
        %v888 = vcombine.high %v786, %v810
        %v890 = vunpack.c.l.s4 1983009808
        %v891 = vunpack.c.0.s8 %v890
        %v892 = vlaneseq
        %v893 = vshrl.u32 %v892, 7
        %v894 = vsub.s32 %v891, %v893
        %v895 = vrot.slane %v887, %v894
        %v897 = vunpack.c.l.s4 1983009808
        %v898 = vunpack.c.0.s8 %v897
        %v899 = vlaneseq
        %v900 = vshrl.u32 %v899, 7
        %v901 = vsub.s32 %v898, %v900
        %v902 = vrot.slane %v888, %v901
        %v903 = vcombine.low %v804, %v816
        %v904 = vcombine.high %v804, %v816
        %v906 = vunpack.c.l.s4 1983009808
        %v907 = vunpack.c.0.s8 %v906
        %v908 = vlaneseq
        %v909 = vshrl.u32 %v908, 7
        %v910 = vsub.s32 %v907, %v909
        %v911 = vrot.slane %v903, %v910
        %v913 = vunpack.c.l.s4 1983009808
        %v914 = vunpack.c.0.s8 %v913
        %v915 = vlaneseq
        %v916 = vshrl.u32 %v915, 7
        %v917 = vsub.s32 %v914, %v916
        %v918 = vrot.slane %v904, %v917
        %v919 = vcombine.low %v895, %v911
        %v920 = vcombine.high %v895, %v911
        %v922 = vunpack.c.l.s4 1934713408
        %v923 = vunpack.c.0.s8 %v922
        %v924 = vlaneseq
        %v925 = vshrl.u32 %v924, 7
        %v926 = vsub.s32 %v923, %v925
        %v927 = vrot.slane %v919, %v926
        %v929 = vunpack.c.l.s4 1934713408
        %v930 = vunpack.c.0.s8 %v929
        %v931 = vlaneseq
        %v932 = vshrl.u32 %v931, 7
        %v933 = vsub.s32 %v930, %v932
        %v934 = vrot.slane %v920, %v933
        %v935 = vcombine.low %v902, %v918
        %v936 = vcombine.high %v902, %v918
        %v938 = vunpack.c.l.s4 1934713408
        %v939 = vunpack.c.0.s8 %v938
        %v940 = vlaneseq
        %v941 = vshrl.u32 %v940, 7
        %v942 = vsub.s32 %v939, %v941
        %v943 = vrot.slane %v935, %v942
        %v945 = vunpack.c.l.s4 1934713408
        %v946 = vunpack.c.0.s8 %v945
        %v947 = vlaneseq
        %v948 = vshrl.u32 %v947, 7
        %v949 = vsub.s32 %v946, %v948
        %v950 = vrot.slane %v936, %v949
        %v951 = vcombine.high %v927, 0.0
        %v952 = vcombine.high %v934, 0.0
        %v953 = vcombine.high %v943, 0.0
        %v954 = vcombine.high %v950, 0.0
        %v955 = vcombine.low %v859, %v866
        %v957 = vunpack.c.l.s4 1983009808
        %v958 = vunpack.c.0.s8 %v957
        %v959 = vlaneseq
        %v960 = vshrl.u32 %v959, 7
        %v961 = vsub.s32 %v958, %v960
        %v962 = vrot.slane %v955, %v961
        %v963 = vcombine.low %v883, %v884
        %v965 = vunpack.c.l.s4 1983009808
        %v966 = vunpack.c.0.s8 %v965
        %v967 = vlaneseq
        %v968 = vshrl.u32 %v967, 7
        %v969 = vsub.s32 %v966, %v968
        %v970 = vrot.slane %v963, %v969
        %v971 = vcombine.low %v875, %v882
        %v973 = vunpack.c.l.s4 1983009808
        %v974 = vunpack.c.0.s8 %v973
        %v975 = vlaneseq
        %v976 = vshrl.u32 %v975, 7
        %v977 = vsub.s32 %v974, %v976
        %v978 = vrot.slane %v971, %v977
        %v979 = vcombine.low %v885, %v886
        %v981 = vunpack.c.l.s4 1983009808
        %v982 = vunpack.c.0.s8 %v981
        %v983 = vlaneseq
        %v984 = vshrl.u32 %v983, 7
        %v985 = vsub.s32 %v982, %v984
        %v986 = vrot.slane %v979, %v985
        %v987 = vcombine.low %v962, %v970
        %v988 = vcombine.high %v962, %v970
        %v990 = vunpack.c.l.s4 1934713408
        %v991 = vunpack.c.0.s8 %v990
        %v992 = vlaneseq
        %v993 = vshrl.u32 %v992, 7
        %v994 = vsub.s32 %v991, %v993
        %v995 = vrot.slane %v987, %v994
        %v997 = vunpack.c.l.s4 1934713408
        %v998 = vunpack.c.0.s8 %v997
        %v999 = vlaneseq
        %v1000 = vshrl.u32 %v999, 7
        %v1001 = vsub.s32 %v998, %v1000
        %v1002 = vrot.slane %v988, %v1001
        %v1003 = vcombine.low %v978, %v986
        %v1004 = vcombine.high %v978, %v986
        %v1006 = vunpack.c.l.s4 1934713408
        %v1007 = vunpack.c.0.s8 %v1006
        %v1008 = vlaneseq
        %v1009 = vshrl.u32 %v1008, 7
        %v1010 = vsub.s32 %v1007, %v1009
        %v1011 = vrot.slane %v1003, %v1010
        %v1013 = vunpack.c.l.s4 1934713408
        %v1014 = vunpack.c.0.s8 %v1013
        %v1015 = vlaneseq
        %v1016 = vshrl.u32 %v1015, 7
        %v1017 = vsub.s32 %v1014, %v1016
        %v1018 = vrot.slane %v1004, %v1017
        %v1019 = vcombine.low %v995, %v1011
        %v1020 = vcombine.high %v995, %v1011
        %v1021 = vcombine.low %v1002, %v1018
        %v1022 = vcombine.high %v1002, %v1018
        %v1023 = vcombine.low %v927, %v934
        %v1025 = vunpack.c.l.s4 1983009808
        %v1026 = vunpack.c.0.s8 %v1025
        %v1027 = vlaneseq
        %v1028 = vshrl.u32 %v1027, 7
        %v1029 = vsub.s32 %v1026, %v1028
        %v1030 = vrot.slane %v1023, %v1029
        %v1031 = vcombine.low %v951, %v952
        %v1033 = vunpack.c.l.s4 1983009808
        %v1034 = vunpack.c.0.s8 %v1033
        %v1035 = vlaneseq
        %v1036 = vshrl.u32 %v1035, 7
        %v1037 = vsub.s32 %v1034, %v1036
        %v1038 = vrot.slane %v1031, %v1037
        %v1039 = vcombine.low %v943, %v950
        %v1041 = vunpack.c.l.s4 1983009808
        %v1042 = vunpack.c.0.s8 %v1041
        %v1043 = vlaneseq
        %v1044 = vshrl.u32 %v1043, 7
        %v1045 = vsub.s32 %v1042, %v1044
        %v1046 = vrot.slane %v1039, %v1045
        %v1047 = vcombine.low %v953, %v954
        %v1049 = vunpack.c.l.s4 1983009808
        %v1050 = vunpack.c.0.s8 %v1049
        %v1051 = vlaneseq
        %v1052 = vshrl.u32 %v1051, 7
        %v1053 = vsub.s32 %v1050, %v1052
        %v1054 = vrot.slane %v1047, %v1053
        %v1055 = vcombine.low %v1030, %v1038
        %v1056 = vcombine.high %v1030, %v1038
        %v1058 = vunpack.c.l.s4 1934713408
        %v1059 = vunpack.c.0.s8 %v1058
        %v1060 = vlaneseq
        %v1061 = vshrl.u32 %v1060, 7
        %v1062 = vsub.s32 %v1059, %v1061
        %v1063 = vrot.slane %v1055, %v1062
        %v1065 = vunpack.c.l.s4 1934713408
        %v1066 = vunpack.c.0.s8 %v1065
        %v1067 = vlaneseq
        %v1068 = vshrl.u32 %v1067, 7
        %v1069 = vsub.s32 %v1066, %v1068
        %v1070 = vrot.slane %v1056, %v1069
        %v1071 = vcombine.low %v1046, %v1054
        %v1072 = vcombine.high %v1046, %v1054
        %v1074 = vunpack.c.l.s4 1934713408
        %v1075 = vunpack.c.0.s8 %v1074
        %v1076 = vlaneseq
        %v1077 = vshrl.u32 %v1076, 7
        %v1078 = vsub.s32 %v1075, %v1077
        %v1079 = vrot.slane %v1071, %v1078
        %v1081 = vunpack.c.l.s4 1934713408
        %v1082 = vunpack.c.0.s8 %v1081
        %v1083 = vlaneseq
        %v1084 = vshrl.u32 %v1083, 7
        %v1085 = vsub.s32 %v1082, %v1084
        %v1086 = vrot.slane %v1072, %v1085
        %v1087 = vcombine.low %v1063, %v1079
        %v1088 = vcombine.high %v1063, %v1079
        %v1089 = vcombine.low %v1070, %v1086
        %v1090 = vcombine.high %v1070, %v1086
        %1093 = vrot.lane.b32.xlu0 %v791, 96
        %v1094 = vpop.permute.xlu0 %1093
        %1095 = vrot.lane.b32.xlu0 %v792, 96
        %v1096 = vpop.permute.xlu0 %1095
        %1099 = vrot.lane.b32.xlu0 %v791, 64
        %v1100 = vpop.permute.xlu0 %1099
        %1101 = vrot.lane.b32.xlu0 %v792, 64
        %v1102 = vpop.permute.xlu0 %1101
        %1105 = vrot.lane.b32.xlu0 %v791, 32
        %v1106 = vpop.permute.xlu0 %1105
        %1107 = vrot.lane.b32.xlu0 %v792, 32
        %v1108 = vpop.permute.xlu0 %1107
        %v1111 = vcombine.low %v791, %v1100
        %v1112 = vcombine.high %v791, %v1100
        %v1114 = vunpack.c.l.s4 1983009808
        %v1115 = vunpack.c.0.s8 %v1114
        %v1116 = vlaneseq
        %v1117 = vshrl.u32 %v1116, 7
        %v1118 = vsub.s32 %v1115, %v1117
        %v1119 = vrot.slane %v1111, %v1118
        %v1121 = vunpack.c.l.s4 1983009808
        %v1122 = vunpack.c.0.s8 %v1121
        %v1123 = vlaneseq
        %v1124 = vshrl.u32 %v1123, 7
        %v1125 = vsub.s32 %v1122, %v1124
        %v1126 = vrot.slane %v1112, %v1125
        %v1127 = vcombine.low %v1094, %v1106
        %v1128 = vcombine.high %v1094, %v1106
        %v1130 = vunpack.c.l.s4 1983009808
        %v1131 = vunpack.c.0.s8 %v1130
        %v1132 = vlaneseq
        %v1133 = vshrl.u32 %v1132, 7
        %v1134 = vsub.s32 %v1131, %v1133
        %v1135 = vrot.slane %v1127, %v1134
        %v1137 = vunpack.c.l.s4 1983009808
        %v1138 = vunpack.c.0.s8 %v1137
        %v1139 = vlaneseq
        %v1140 = vshrl.u32 %v1139, 7
        %v1141 = vsub.s32 %v1138, %v1140
        %v1142 = vrot.slane %v1128, %v1141
        %v1143 = vcombine.low %v1119, %v1135
        %v1144 = vcombine.high %v1119, %v1135
        %v1146 = vunpack.c.l.s4 1934713408
        %v1147 = vunpack.c.0.s8 %v1146
        %v1148 = vlaneseq
        %v1149 = vshrl.u32 %v1148, 7
        %v1150 = vsub.s32 %v1147, %v1149
        %v1151 = vrot.slane %v1143, %v1150
        %v1153 = vunpack.c.l.s4 1934713408
        %v1154 = vunpack.c.0.s8 %v1153
        %v1155 = vlaneseq
        %v1156 = vshrl.u32 %v1155, 7
        %v1157 = vsub.s32 %v1154, %v1156
        %v1158 = vrot.slane %v1144, %v1157
        %v1159 = vcombine.low %v1126, %v1142
        %v1160 = vcombine.high %v1126, %v1142
        %v1162 = vunpack.c.l.s4 1934713408
        %v1163 = vunpack.c.0.s8 %v1162
        %v1164 = vlaneseq
        %v1165 = vshrl.u32 %v1164, 7
        %v1166 = vsub.s32 %v1163, %v1165
        %v1167 = vrot.slane %v1159, %v1166
        %v1169 = vunpack.c.l.s4 1934713408
        %v1170 = vunpack.c.0.s8 %v1169
        %v1171 = vlaneseq
        %v1172 = vshrl.u32 %v1171, 7
        %v1173 = vsub.s32 %v1170, %v1172
        %v1174 = vrot.slane %v1160, %v1173
        %v1175 = vcombine.high %v1151, 0.0
        %v1176 = vcombine.high %v1158, 0.0
        %v1177 = vcombine.high %v1167, 0.0
        %v1178 = vcombine.high %v1174, 0.0
        %v1179 = vcombine.low %v792, %v1102
        %v1180 = vcombine.high %v792, %v1102
        %v1182 = vunpack.c.l.s4 1983009808
        %v1183 = vunpack.c.0.s8 %v1182
        %v1184 = vlaneseq
        %v1185 = vshrl.u32 %v1184, 7
        %v1186 = vsub.s32 %v1183, %v1185
        %v1187 = vrot.slane %v1179, %v1186
        %v1189 = vunpack.c.l.s4 1983009808
        %v1190 = vunpack.c.0.s8 %v1189
        %v1191 = vlaneseq
        %v1192 = vshrl.u32 %v1191, 7
        %v1193 = vsub.s32 %v1190, %v1192
        %v1194 = vrot.slane %v1180, %v1193
        %v1195 = vcombine.low %v1096, %v1108
        %v1196 = vcombine.high %v1096, %v1108
        %v1198 = vunpack.c.l.s4 1983009808
        %v1199 = vunpack.c.0.s8 %v1198
        %v1200 = vlaneseq
        %v1201 = vshrl.u32 %v1200, 7
        %v1202 = vsub.s32 %v1199, %v1201
        %v1203 = vrot.slane %v1195, %v1202
        %v1205 = vunpack.c.l.s4 1983009808
        %v1206 = vunpack.c.0.s8 %v1205
        %v1207 = vlaneseq
        %v1208 = vshrl.u32 %v1207, 7
        %v1209 = vsub.s32 %v1206, %v1208
        %v1210 = vrot.slane %v1196, %v1209
        %v1211 = vcombine.low %v1187, %v1203
        %v1212 = vcombine.high %v1187, %v1203
        %v1214 = vunpack.c.l.s4 1934713408
        %v1215 = vunpack.c.0.s8 %v1214
        %v1216 = vlaneseq
        %v1217 = vshrl.u32 %v1216, 7
        %v1218 = vsub.s32 %v1215, %v1217
        %v1219 = vrot.slane %v1211, %v1218
        %v1221 = vunpack.c.l.s4 1934713408
        %v1222 = vunpack.c.0.s8 %v1221
        %v1223 = vlaneseq
        %v1224 = vshrl.u32 %v1223, 7
        %v1225 = vsub.s32 %v1222, %v1224
        %v1226 = vrot.slane %v1212, %v1225
        %v1227 = vcombine.low %v1194, %v1210
        %v1228 = vcombine.high %v1194, %v1210
        %v1230 = vunpack.c.l.s4 1934713408
        %v1231 = vunpack.c.0.s8 %v1230
        %v1232 = vlaneseq
        %v1233 = vshrl.u32 %v1232, 7
        %v1234 = vsub.s32 %v1231, %v1233
        %v1235 = vrot.slane %v1227, %v1234
        %v1237 = vunpack.c.l.s4 1934713408
        %v1238 = vunpack.c.0.s8 %v1237
        %v1239 = vlaneseq
        %v1240 = vshrl.u32 %v1239, 7
        %v1241 = vsub.s32 %v1238, %v1240
        %v1242 = vrot.slane %v1228, %v1241
        %v1243 = vcombine.high %v1219, 0.0
        %v1244 = vcombine.high %v1226, 0.0
        %v1245 = vcombine.high %v1235, 0.0
        %v1246 = vcombine.high %v1242, 0.0
        %v1247 = vcombine.low %v1151, %v1158
        %v1249 = vunpack.c.l.s4 1983009808
        %v1250 = vunpack.c.0.s8 %v1249
        %v1251 = vlaneseq
        %v1252 = vshrl.u32 %v1251, 7
        %v1253 = vsub.s32 %v1250, %v1252
        %v1254 = vrot.slane %v1247, %v1253
        %v1255 = vcombine.low %v1175, %v1176
        %v1257 = vunpack.c.l.s4 1983009808
        %v1258 = vunpack.c.0.s8 %v1257
        %v1259 = vlaneseq
        %v1260 = vshrl.u32 %v1259, 7
        %v1261 = vsub.s32 %v1258, %v1260
        %v1262 = vrot.slane %v1255, %v1261
        %v1263 = vcombine.low %v1167, %v1174
        %v1265 = vunpack.c.l.s4 1983009808
        %v1266 = vunpack.c.0.s8 %v1265
        %v1267 = vlaneseq
        %v1268 = vshrl.u32 %v1267, 7
        %v1269 = vsub.s32 %v1266, %v1268
        %v1270 = vrot.slane %v1263, %v1269
        %v1271 = vcombine.low %v1177, %v1178
        %v1273 = vunpack.c.l.s4 1983009808
        %v1274 = vunpack.c.0.s8 %v1273
        %v1275 = vlaneseq
        %v1276 = vshrl.u32 %v1275, 7
        %v1277 = vsub.s32 %v1274, %v1276
        %v1278 = vrot.slane %v1271, %v1277
        %v1279 = vcombine.low %v1254, %v1262
        %v1280 = vcombine.high %v1254, %v1262
        %v1282 = vunpack.c.l.s4 1934713408
        %v1283 = vunpack.c.0.s8 %v1282
        %v1284 = vlaneseq
        %v1285 = vshrl.u32 %v1284, 7
        %v1286 = vsub.s32 %v1283, %v1285
        %v1287 = vrot.slane %v1279, %v1286
        %v1289 = vunpack.c.l.s4 1934713408
        %v1290 = vunpack.c.0.s8 %v1289
        %v1291 = vlaneseq
        %v1292 = vshrl.u32 %v1291, 7
        %v1293 = vsub.s32 %v1290, %v1292
        %v1294 = vrot.slane %v1280, %v1293
        %v1295 = vcombine.low %v1270, %v1278
        %v1296 = vcombine.high %v1270, %v1278
        %v1298 = vunpack.c.l.s4 1934713408
        %v1299 = vunpack.c.0.s8 %v1298
        %v1300 = vlaneseq
        %v1301 = vshrl.u32 %v1300, 7
        %v1302 = vsub.s32 %v1299, %v1301
        %v1303 = vrot.slane %v1295, %v1302
        %v1305 = vunpack.c.l.s4 1934713408
        %v1306 = vunpack.c.0.s8 %v1305
        %v1307 = vlaneseq
        %v1308 = vshrl.u32 %v1307, 7
        %v1309 = vsub.s32 %v1306, %v1308
        %v1310 = vrot.slane %v1296, %v1309
        %v1311 = vcombine.low %v1287, %v1303
        %v1312 = vcombine.high %v1287, %v1303
        %v1313 = vcombine.low %v1294, %v1310
        %v1314 = vcombine.high %v1294, %v1310
        %v1315 = vcombine.low %v1219, %v1226
        %v1317 = vunpack.c.l.s4 1983009808
        %v1318 = vunpack.c.0.s8 %v1317
        %v1319 = vlaneseq
        %v1320 = vshrl.u32 %v1319, 7
        %v1321 = vsub.s32 %v1318, %v1320
        %v1322 = vrot.slane %v1315, %v1321
        %v1323 = vcombine.low %v1243, %v1244
        %v1325 = vunpack.c.l.s4 1983009808
        %v1326 = vunpack.c.0.s8 %v1325
        %v1327 = vlaneseq
        %v1328 = vshrl.u32 %v1327, 7
        %v1329 = vsub.s32 %v1326, %v1328
        %v1330 = vrot.slane %v1323, %v1329
        %v1331 = vcombine.low %v1235, %v1242
        %v1333 = vunpack.c.l.s4 1983009808
        %v1334 = vunpack.c.0.s8 %v1333
        %v1335 = vlaneseq
        %v1336 = vshrl.u32 %v1335, 7
        %v1337 = vsub.s32 %v1334, %v1336
        %v1338 = vrot.slane %v1331, %v1337
        %v1339 = vcombine.low %v1245, %v1246
        %v1341 = vunpack.c.l.s4 1983009808
        %v1342 = vunpack.c.0.s8 %v1341
        %v1343 = vlaneseq
        %v1344 = vshrl.u32 %v1343, 7
        %v1345 = vsub.s32 %v1342, %v1344
        %v1346 = vrot.slane %v1339, %v1345
        %v1347 = vcombine.low %v1322, %v1330
        %v1348 = vcombine.high %v1322, %v1330
        %v1350 = vunpack.c.l.s4 1934713408
        %v1351 = vunpack.c.0.s8 %v1350
        %v1352 = vlaneseq
        %v1353 = vshrl.u32 %v1352, 7
        %v1354 = vsub.s32 %v1351, %v1353
        %v1355 = vrot.slane %v1347, %v1354
        %v1357 = vunpack.c.l.s4 1934713408
        %v1358 = vunpack.c.0.s8 %v1357
        %v1359 = vlaneseq
        %v1360 = vshrl.u32 %v1359, 7
        %v1361 = vsub.s32 %v1358, %v1360
        %v1362 = vrot.slane %v1348, %v1361
        %v1363 = vcombine.low %v1338, %v1346
        %v1364 = vcombine.high %v1338, %v1346
        %v1366 = vunpack.c.l.s4 1934713408
        %v1367 = vunpack.c.0.s8 %v1366
        %v1368 = vlaneseq
        %v1369 = vshrl.u32 %v1368, 7
        %v1370 = vsub.s32 %v1367, %v1369
        %v1371 = vrot.slane %v1363, %v1370
        %v1373 = vunpack.c.l.s4 1934713408
        %v1374 = vunpack.c.0.s8 %v1373
        %v1375 = vlaneseq
        %v1376 = vshrl.u32 %v1375, 7
        %v1377 = vsub.s32 %v1374, %v1376
        %v1378 = vrot.slane %v1364, %v1377
        %v1379 = vcombine.low %v1355, %v1371
        %v1380 = vcombine.high %v1355, %v1371
        %v1381 = vcombine.low %v1362, %v1378
        %v1382 = vcombine.high %v1362, %v1378
        %1385 = vrot.lane.b32.xlu0 %v797, 96
        %v1386 = vpop.permute.xlu0 %1385
        %1387 = vrot.lane.b32.xlu0 %v798, 96
        %v1388 = vpop.permute.xlu0 %1387
        %1391 = vrot.lane.b32.xlu0 %v797, 64
        %v1392 = vpop.permute.xlu0 %1391
        %1393 = vrot.lane.b32.xlu0 %v798, 64
        %v1394 = vpop.permute.xlu0 %1393
        %1397 = vrot.lane.b32.xlu0 %v797, 32
        %v1398 = vpop.permute.xlu0 %1397
        %1399 = vrot.lane.b32.xlu0 %v798, 32
        %v1400 = vpop.permute.xlu0 %1399
        %v1403 = vcombine.low %v797, %v1392
        %v1404 = vcombine.high %v797, %v1392
        %v1406 = vunpack.c.l.s4 1983009808
        %v1407 = vunpack.c.0.s8 %v1406
        %v1408 = vlaneseq
        %v1409 = vshrl.u32 %v1408, 7
        %v1410 = vsub.s32 %v1407, %v1409
        %v1411 = vrot.slane %v1403, %v1410
        %v1413 = vunpack.c.l.s4 1983009808
        %v1414 = vunpack.c.0.s8 %v1413
        %v1415 = vlaneseq
        %v1416 = vshrl.u32 %v1415, 7
        %v1417 = vsub.s32 %v1414, %v1416
        %v1418 = vrot.slane %v1404, %v1417
        %v1419 = vcombine.low %v1386, %v1398
        %v1420 = vcombine.high %v1386, %v1398
        %v1422 = vunpack.c.l.s4 1983009808
        %v1423 = vunpack.c.0.s8 %v1422
        %v1424 = vlaneseq
        %v1425 = vshrl.u32 %v1424, 7
        %v1426 = vsub.s32 %v1423, %v1425
        %v1427 = vrot.slane %v1419, %v1426
        %v1429 = vunpack.c.l.s4 1983009808
        %v1430 = vunpack.c.0.s8 %v1429
        %v1431 = vlaneseq
        %v1432 = vshrl.u32 %v1431, 7
        %v1433 = vsub.s32 %v1430, %v1432
        %v1434 = vrot.slane %v1420, %v1433
        %v1435 = vcombine.low %v1411, %v1427
        %v1436 = vcombine.high %v1411, %v1427
        %v1438 = vunpack.c.l.s4 1934713408
        %v1439 = vunpack.c.0.s8 %v1438
        %v1440 = vlaneseq
        %v1441 = vshrl.u32 %v1440, 7
        %v1442 = vsub.s32 %v1439, %v1441
        %v1443 = vrot.slane %v1435, %v1442
        %v1445 = vunpack.c.l.s4 1934713408
        %v1446 = vunpack.c.0.s8 %v1445
        %v1447 = vlaneseq
        %v1448 = vshrl.u32 %v1447, 7
        %v1449 = vsub.s32 %v1446, %v1448
        %v1450 = vrot.slane %v1436, %v1449
        %v1451 = vcombine.low %v1418, %v1434
        %v1452 = vcombine.high %v1418, %v1434
        %v1454 = vunpack.c.l.s4 1934713408
        %v1455 = vunpack.c.0.s8 %v1454
        %v1456 = vlaneseq
        %v1457 = vshrl.u32 %v1456, 7
        %v1458 = vsub.s32 %v1455, %v1457
        %v1459 = vrot.slane %v1451, %v1458
        %v1461 = vunpack.c.l.s4 1934713408
        %v1462 = vunpack.c.0.s8 %v1461
        %v1463 = vlaneseq
        %v1464 = vshrl.u32 %v1463, 7
        %v1465 = vsub.s32 %v1462, %v1464
        %v1466 = vrot.slane %v1452, %v1465
        %v1467 = vcombine.high %v1443, 0.0
        %v1468 = vcombine.high %v1450, 0.0
        %v1469 = vcombine.high %v1459, 0.0
        %v1470 = vcombine.high %v1466, 0.0
        %v1471 = vcombine.low %v798, %v1394
        %v1472 = vcombine.high %v798, %v1394
        %v1474 = vunpack.c.l.s4 1983009808
        %v1475 = vunpack.c.0.s8 %v1474
        %v1476 = vlaneseq
        %v1477 = vshrl.u32 %v1476, 7
        %v1478 = vsub.s32 %v1475, %v1477
        %v1479 = vrot.slane %v1471, %v1478
        %v1481 = vunpack.c.l.s4 1983009808
        %v1482 = vunpack.c.0.s8 %v1481
        %v1483 = vlaneseq
        %v1484 = vshrl.u32 %v1483, 7
        %v1485 = vsub.s32 %v1482, %v1484
        %v1486 = vrot.slane %v1472, %v1485
        %v1487 = vcombine.low %v1388, %v1400
        %v1488 = vcombine.high %v1388, %v1400
        %v1490 = vunpack.c.l.s4 1983009808
        %v1491 = vunpack.c.0.s8 %v1490
        %v1492 = vlaneseq
        %v1493 = vshrl.u32 %v1492, 7
        %v1494 = vsub.s32 %v1491, %v1493
        %v1495 = vrot.slane %v1487, %v1494
        %v1497 = vunpack.c.l.s4 1983009808
        %v1498 = vunpack.c.0.s8 %v1497
        %v1499 = vlaneseq
        %v1500 = vshrl.u32 %v1499, 7
        %v1501 = vsub.s32 %v1498, %v1500
        %v1502 = vrot.slane %v1488, %v1501
        %v1503 = vcombine.low %v1479, %v1495
        %v1504 = vcombine.high %v1479, %v1495
        %v1506 = vunpack.c.l.s4 1934713408
        %v1507 = vunpack.c.0.s8 %v1506
        %v1508 = vlaneseq
        %v1509 = vshrl.u32 %v1508, 7
        %v1510 = vsub.s32 %v1507, %v1509
        %v1511 = vrot.slane %v1503, %v1510
        %v1513 = vunpack.c.l.s4 1934713408
        %v1514 = vunpack.c.0.s8 %v1513
        %v1515 = vlaneseq
        %v1516 = vshrl.u32 %v1515, 7
        %v1517 = vsub.s32 %v1514, %v1516
        %v1518 = vrot.slane %v1504, %v1517
        %v1519 = vcombine.low %v1486, %v1502
        %v1520 = vcombine.high %v1486, %v1502
        %v1522 = vunpack.c.l.s4 1934713408
        %v1523 = vunpack.c.0.s8 %v1522
        %v1524 = vlaneseq
        %v1525 = vshrl.u32 %v1524, 7
        %v1526 = vsub.s32 %v1523, %v1525
        %v1527 = vrot.slane %v1519, %v1526
        %v1529 = vunpack.c.l.s4 1934713408
        %v1530 = vunpack.c.0.s8 %v1529
        %v1531 = vlaneseq
        %v1532 = vshrl.u32 %v1531, 7
        %v1533 = vsub.s32 %v1530, %v1532
        %v1534 = vrot.slane %v1520, %v1533
        %v1535 = vcombine.high %v1511, 0.0
        %v1536 = vcombine.high %v1518, 0.0
        %v1537 = vcombine.high %v1527, 0.0
        %v1538 = vcombine.high %v1534, 0.0
        %v1539 = vcombine.low %v1443, %v1450
        %v1541 = vunpack.c.l.s4 1983009808
        %v1542 = vunpack.c.0.s8 %v1541
        %v1543 = vlaneseq
        %v1544 = vshrl.u32 %v1543, 7
        %v1545 = vsub.s32 %v1542, %v1544
        %v1546 = vrot.slane %v1539, %v1545
        %v1547 = vcombine.low %v1467, %v1468
        %v1549 = vunpack.c.l.s4 1983009808
        %v1550 = vunpack.c.0.s8 %v1549
        %v1551 = vlaneseq
        %v1552 = vshrl.u32 %v1551, 7
        %v1553 = vsub.s32 %v1550, %v1552
        %v1554 = vrot.slane %v1547, %v1553
        %v1555 = vcombine.low %v1459, %v1466
        %v1557 = vunpack.c.l.s4 1983009808
        %v1558 = vunpack.c.0.s8 %v1557
        %v1559 = vlaneseq
        %v1560 = vshrl.u32 %v1559, 7
        %v1561 = vsub.s32 %v1558, %v1560
        %v1562 = vrot.slane %v1555, %v1561
        %v1563 = vcombine.low %v1469, %v1470
        %v1565 = vunpack.c.l.s4 1983009808
        %v1566 = vunpack.c.0.s8 %v1565
        %v1567 = vlaneseq
        %v1568 = vshrl.u32 %v1567, 7
        %v1569 = vsub.s32 %v1566, %v1568
        %v1570 = vrot.slane %v1563, %v1569
        %v1571 = vcombine.low %v1546, %v1554
        %v1572 = vcombine.high %v1546, %v1554
        %v1574 = vunpack.c.l.s4 1934713408
        %v1575 = vunpack.c.0.s8 %v1574
        %v1576 = vlaneseq
        %v1577 = vshrl.u32 %v1576, 7
        %v1578 = vsub.s32 %v1575, %v1577
        %v1579 = vrot.slane %v1571, %v1578
        %v1581 = vunpack.c.l.s4 1934713408
        %v1582 = vunpack.c.0.s8 %v1581
        %v1583 = vlaneseq
        %v1584 = vshrl.u32 %v1583, 7
        %v1585 = vsub.s32 %v1582, %v1584
        %v1586 = vrot.slane %v1572, %v1585
        %v1587 = vcombine.low %v1562, %v1570
        %v1588 = vcombine.high %v1562, %v1570
        %v1590 = vunpack.c.l.s4 1934713408
        %v1591 = vunpack.c.0.s8 %v1590
        %v1592 = vlaneseq
        %v1593 = vshrl.u32 %v1592, 7
        %v1594 = vsub.s32 %v1591, %v1593
        %v1595 = vrot.slane %v1587, %v1594
        %v1597 = vunpack.c.l.s4 1934713408
        %v1598 = vunpack.c.0.s8 %v1597
        %v1599 = vlaneseq
        %v1600 = vshrl.u32 %v1599, 7
        %v1601 = vsub.s32 %v1598, %v1600
        %v1602 = vrot.slane %v1588, %v1601
        %v1603 = vcombine.low %v1579, %v1595
        %v1604 = vcombine.high %v1579, %v1595
        %v1605 = vcombine.low %v1586, %v1602
        %v1606 = vcombine.high %v1586, %v1602
        %v1607 = vcombine.low %v1511, %v1518
        %v1609 = vunpack.c.l.s4 1983009808
        %v1610 = vunpack.c.0.s8 %v1609
        %v1611 = vlaneseq
        %v1612 = vshrl.u32 %v1611, 7
        %v1613 = vsub.s32 %v1610, %v1612
        %v1614 = vrot.slane %v1607, %v1613
        %v1615 = vcombine.low %v1535, %v1536
        %v1617 = vunpack.c.l.s4 1983009808
        %v1618 = vunpack.c.0.s8 %v1617
        %v1619 = vlaneseq
        %v1620 = vshrl.u32 %v1619, 7
        %v1621 = vsub.s32 %v1618, %v1620
        %v1622 = vrot.slane %v1615, %v1621
        %v1623 = vcombine.low %v1527, %v1534
        %v1625 = vunpack.c.l.s4 1983009808
        %v1626 = vunpack.c.0.s8 %v1625
        %v1627 = vlaneseq
        %v1628 = vshrl.u32 %v1627, 7
        %v1629 = vsub.s32 %v1626, %v1628
        %v1630 = vrot.slane %v1623, %v1629
        %v1631 = vcombine.low %v1537, %v1538
        %v1633 = vunpack.c.l.s4 1983009808
        %v1634 = vunpack.c.0.s8 %v1633
        %v1635 = vlaneseq
        %v1636 = vshrl.u32 %v1635, 7
        %v1637 = vsub.s32 %v1634, %v1636
        %v1638 = vrot.slane %v1631, %v1637
        %v1639 = vcombine.low %v1614, %v1622
        %v1640 = vcombine.high %v1614, %v1622
        %v1642 = vunpack.c.l.s4 1934713408
        %v1643 = vunpack.c.0.s8 %v1642
        %v1644 = vlaneseq
        %v1645 = vshrl.u32 %v1644, 7
        %v1646 = vsub.s32 %v1643, %v1645
        %v1647 = vrot.slane %v1639, %v1646
        %v1649 = vunpack.c.l.s4 1934713408
        %v1650 = vunpack.c.0.s8 %v1649
        %v1651 = vlaneseq
        %v1652 = vshrl.u32 %v1651, 7
        %v1653 = vsub.s32 %v1650, %v1652
        %v1654 = vrot.slane %v1640, %v1653
        %v1655 = vcombine.low %v1630, %v1638
        %v1656 = vcombine.high %v1630, %v1638
        %v1658 = vunpack.c.l.s4 1934713408
        %v1659 = vunpack.c.0.s8 %v1658
        %v1660 = vlaneseq
        %v1661 = vshrl.u32 %v1660, 7
        %v1662 = vsub.s32 %v1659, %v1661
        %v1663 = vrot.slane %v1655, %v1662
        %v1665 = vunpack.c.l.s4 1934713408
        %v1666 = vunpack.c.0.s8 %v1665
        %v1667 = vlaneseq
        %v1668 = vshrl.u32 %v1667, 7
        %v1669 = vsub.s32 %v1666, %v1668
        %v1670 = vrot.slane %v1656, %v1669
        %v1671 = vcombine.low %v1647, %v1663
        %v1672 = vcombine.high %v1647, %v1663
        %v1673 = vcombine.low %v1654, %v1670
        %v1674 = vcombine.high %v1654, %v1670
        %v1675 = vld [vmem:[%s1] sm:$0xff]
        %v1676 = vld [vmem:[%s1 + $0x8] sm:$0xff]
        %v1677 = vld [vmem:[%s1 + $0x10] sm:$0xff]
        %v1678 = vld [vmem:[%s1 + $0x18] sm:$0xff]
        %v1679 = vld [vmem:[%s1 + $0x20] sm:$0xff]
        %v1680 = vld [vmem:[%s1 + $0x28] sm:$0xff]
        %v1681 = vld [vmem:[%s1 + $0x30] sm:$0xff]
        %v1682 = vld [vmem:[%s1 + $0x38] sm:$0xff]
        %vm1683 = vcmask 261120
        %v1685 = vsel %vm1683, %v1019, 0
        %v1688 = vsel %vm1683, %v1311, 0
        %1690 = vmatprep.subr.mxu0 0.0
        %1691 = vmatpush1.xpose.msra.mxu0 0.0
        %1692 = vmatprep.subr.mxu0 0.0
        %1693 = vmatpush1.xpose.msra.mxu0 0.0
        %1694 = vmatprep.subr.mxu0 0.0
        %1695 = vmatpush1.xpose.msra.mxu0 0.0
        %1696 = vmatprep.subr.mxu0 0.0
        %1697 = vmatpush1.xpose.msra.mxu0 0.0
        %1698 = vmatprep.subr.mxu0 0.0
        %1699 = vmatpush1.xpose.msra.mxu0 0.0
        %1700 = vmatprep.subr.mxu0 0.0
        %1701 = vmatpush1.xpose.msra.mxu0 0.0
        %1702 = vmatprep.subr.mxu0 0.0
        %1703 = vmatpush1.xpose.msra.mxu0 0.0
        %1704 = vmatprep.subr.mxu0 0.0
        %1705 = vmatpush1.xpose.msra.mxu0 0.0
        %1706 = vmatprep.subr.mxu0 0.0
        %1707 = vmatpush1.xpose.msra.mxu0 0.0
        %1708 = vmatprep.subr.mxu0 0.0
        %1709 = vmatpush1.xpose.msra.mxu0 0.0
        %1710 = vmatprep.subr.mxu0 0.0
        %1711 = vmatpush1.xpose.msra.mxu0 0.0
        %1712 = vmatprep.subr.mxu0 0.0
        %1713 = vmatpush1.xpose.msra.mxu0 0.0
        %1714 = vmatprep.subr.mxu0 0.0
        %1715 = vmatpush1.xpose.msra.mxu0 0.0
        %1716 = vmatprep.subr.mxu0 0.0
        %1717 = vmatpush1.xpose.msra.mxu0 0.0
        %1718 = vmatprep.subr.mxu0 0.0
        %1719 = vmatpush1.xpose.msra.mxu0 0.0
        %1720 = vmatprep.subr.mxu0 0.0
        %1721 = vmatpush1.xpose.msra.mxu0 %v1688
        %1722 = vmatprep.subr.mxu0 0.0
        %1723 = vmatpush2.xpose.msra.mxu0 0.0
        %1724 = vmatprep.subr.mxu0 0.0
        %1725 = vmatpush2.xpose.msra.mxu0 0.0
        %1726 = vmatprep.subr.mxu0 0.0
        %1727 = vmatpush2.xpose.msra.mxu0 0.0
        %1728 = vmatprep.subr.mxu0 0.0
        %1729 = vmatpush2.xpose.msra.mxu0 0.0
        %1730 = vmatprep.subr.mxu0 0.0
        %1731 = vmatpush2.xpose.msra.mxu0 0.0
        %1732 = vmatprep.subr.mxu0 0.0
        %1733 = vmatpush2.xpose.msra.mxu0 0.0
        %1734 = vmatprep.subr.mxu0 0.0
        %1735 = vmatpush2.xpose.msra.mxu0 0.0
        %1736 = vmatprep.subr.mxu0 0.0
        %1737 = vmatpush2.xpose.msra.mxu0 0.0
        %1738 = vmatprep.subr.mxu0 0.0
        %1739 = vmatpush2.xpose.msra.mxu0 0.0
        %1740 = vmatprep.subr.mxu0 0.0
        %1741 = vmatpush2.xpose.msra.mxu0 0.0
        %1742 = vmatprep.subr.mxu0 0.0
        %1743 = vmatpush2.xpose.msra.mxu0 0.0
        %1744 = vmatprep.subr.mxu0 0.0
        %1745 = vmatpush2.xpose.msra.mxu0 0.0
        %1746 = vmatprep.subr.mxu0 0.0
        %1747 = vmatpush2.xpose.msra.mxu0 0.0
        %1748 = vmatprep.subr.mxu0 0.0
        %1749 = vmatpush2.xpose.msra.mxu0 0.0
        %1750 = vmatprep.subr.mxu0 0.0
        %1751 = vmatpush2.xpose.msra.mxu0 0.0
        %1752 = vmatprep.subr.mxu0 0.0
        %1753 = vmatpush2.xpose.msra.mxu0 0.0
        %1754 = vmatprep.mubr.f32.mxu0 0.0
        %1755 = vmatmul.mubr.f32.gmra.mxu0 %v1685
        %v1756 = vpop.f32.mrf.mxu0
        %v1757 = vadd.f32 %v1675, %v1756
        %v1758 = vpop.f32.mrf.mxu0
        %1759 = vdwg.mxu0
        %v1761 = vsel %vm1683, %v1020, 0
        %v1764 = vsel %vm1683, %v1312, 0
        %1766 = vmatprep.subr.mxu0 0.0
        %1767 = vmatpush1.xpose.msra.mxu0 0.0
        %1768 = vmatprep.subr.mxu0 0.0
        %1769 = vmatpush1.xpose.msra.mxu0 0.0
        %1770 = vmatprep.subr.mxu0 0.0
        %1771 = vmatpush1.xpose.msra.mxu0 0.0
        %1772 = vmatprep.subr.mxu0 0.0
        %1773 = vmatpush1.xpose.msra.mxu0 0.0
        %1774 = vmatprep.subr.mxu0 0.0
        %1775 = vmatpush1.xpose.msra.mxu0 0.0
        %1776 = vmatprep.subr.mxu0 0.0
        %1777 = vmatpush1.xpose.msra.mxu0 0.0
        %1778 = vmatprep.subr.mxu0 0.0
        %1779 = vmatpush1.xpose.msra.mxu0 0.0
        %1780 = vmatprep.subr.mxu0 0.0
        %1781 = vmatpush1.xpose.msra.mxu0 0.0
        %1782 = vmatprep.subr.mxu0 0.0
        %1783 = vmatpush1.xpose.msra.mxu0 0.0
        %1784 = vmatprep.subr.mxu0 0.0
        %1785 = vmatpush1.xpose.msra.mxu0 0.0
        %1786 = vmatprep.subr.mxu0 0.0
        %1787 = vmatpush1.xpose.msra.mxu0 0.0
        %1788 = vmatprep.subr.mxu0 0.0
        %1789 = vmatpush1.xpose.msra.mxu0 0.0
        %1790 = vmatprep.subr.mxu0 0.0
        %1791 = vmatpush1.xpose.msra.mxu0 0.0
        %1792 = vmatprep.subr.mxu0 0.0
        %1793 = vmatpush1.xpose.msra.mxu0 0.0
        %1794 = vmatprep.subr.mxu0 0.0
        %1795 = vmatpush1.xpose.msra.mxu0 0.0
        %1796 = vmatprep.subr.mxu0 0.0
        %1797 = vmatpush1.xpose.msra.mxu0 %v1764
        %1798 = vmatprep.subr.mxu0 0.0
        %1799 = vmatpush2.xpose.msra.mxu0 0.0
        %1800 = vmatprep.subr.mxu0 0.0
        %1801 = vmatpush2.xpose.msra.mxu0 0.0
        %1802 = vmatprep.subr.mxu0 0.0
        %1803 = vmatpush2.xpose.msra.mxu0 0.0
        %1804 = vmatprep.subr.mxu0 0.0
        %1805 = vmatpush2.xpose.msra.mxu0 0.0
        %1806 = vmatprep.subr.mxu0 0.0
        %1807 = vmatpush2.xpose.msra.mxu0 0.0
        %1808 = vmatprep.subr.mxu0 0.0
        %1809 = vmatpush2.xpose.msra.mxu0 0.0
        %1810 = vmatprep.subr.mxu0 0.0
        %1811 = vmatpush2.xpose.msra.mxu0 0.0
        %1812 = vmatprep.subr.mxu0 0.0
        %1813 = vmatpush2.xpose.msra.mxu0 0.0
        %1814 = vmatprep.subr.mxu0 0.0
        %1815 = vmatpush2.xpose.msra.mxu0 0.0
        %1816 = vmatprep.subr.mxu0 0.0
        %1817 = vmatpush2.xpose.msra.mxu0 0.0
        %1818 = vmatprep.subr.mxu0 0.0
        %1819 = vmatpush2.xpose.msra.mxu0 0.0
        %1820 = vmatprep.subr.mxu0 0.0
        %1821 = vmatpush2.xpose.msra.mxu0 0.0
        %1822 = vmatprep.subr.mxu0 0.0
        %1823 = vmatpush2.xpose.msra.mxu0 0.0
        %1824 = vmatprep.subr.mxu0 0.0
        %1825 = vmatpush2.xpose.msra.mxu0 0.0
        %1826 = vmatprep.subr.mxu0 0.0
        %1827 = vmatpush2.xpose.msra.mxu0 0.0
        %1828 = vmatprep.subr.mxu0 0.0
        %1829 = vmatpush2.xpose.msra.mxu0 0.0
        %1830 = vmatprep.mubr.f32.mxu0 0.0
        %1831 = vmatmul.mubr.f32.gmra.mxu0 %v1761
        %v1832 = vpop.f32.mrf.mxu0
        %v1833 = vadd.f32 %v1676, %v1832
        %v1834 = vpop.f32.mrf.mxu0
        %1835 = vdwg.mxu0
        %v1837 = vsel %vm1683, %v1021, 0
        %v1840 = vsel %vm1683, %v1313, 0
        %1842 = vmatprep.subr.mxu0 0.0
        %1843 = vmatpush1.xpose.msra.mxu0 0.0
        %1844 = vmatprep.subr.mxu0 0.0
        %1845 = vmatpush1.xpose.msra.mxu0 0.0
        %1846 = vmatprep.subr.mxu0 0.0
        %1847 = vmatpush1.xpose.msra.mxu0 0.0
        %1848 = vmatprep.subr.mxu0 0.0
        %1849 = vmatpush1.xpose.msra.mxu0 0.0
        %1850 = vmatprep.subr.mxu0 0.0
        %1851 = vmatpush1.xpose.msra.mxu0 0.0
        %1852 = vmatprep.subr.mxu0 0.0
        %1853 = vmatpush1.xpose.msra.mxu0 0.0
        %1854 = vmatprep.subr.mxu0 0.0
        %1855 = vmatpush1.xpose.msra.mxu0 0.0
        %1856 = vmatprep.subr.mxu0 0.0
        %1857 = vmatpush1.xpose.msra.mxu0 0.0
        %1858 = vmatprep.subr.mxu0 0.0
        %1859 = vmatpush1.xpose.msra.mxu0 0.0
        %1860 = vmatprep.subr.mxu0 0.0
        %1861 = vmatpush1.xpose.msra.mxu0 0.0
        %1862 = vmatprep.subr.mxu0 0.0
        %1863 = vmatpush1.xpose.msra.mxu0 0.0
        %1864 = vmatprep.subr.mxu0 0.0
        %1865 = vmatpush1.xpose.msra.mxu0 0.0
        %1866 = vmatprep.subr.mxu0 0.0
        %1867 = vmatpush1.xpose.msra.mxu0 0.0
        %1868 = vmatprep.subr.mxu0 0.0
        %1869 = vmatpush1.xpose.msra.mxu0 0.0
        %1870 = vmatprep.subr.mxu0 0.0
        %1871 = vmatpush1.xpose.msra.mxu0 0.0
        %1872 = vmatprep.subr.mxu0 0.0
        %1873 = vmatpush1.xpose.msra.mxu0 %v1840
        %1874 = vmatprep.subr.mxu0 0.0
        %1875 = vmatpush2.xpose.msra.mxu0 0.0
        %1876 = vmatprep.subr.mxu0 0.0
        %1877 = vmatpush2.xpose.msra.mxu0 0.0
        %1878 = vmatprep.subr.mxu0 0.0
        %1879 = vmatpush2.xpose.msra.mxu0 0.0
        %1880 = vmatprep.subr.mxu0 0.0
        %1881 = vmatpush2.xpose.msra.mxu0 0.0
        %1882 = vmatprep.subr.mxu0 0.0
        %1883 = vmatpush2.xpose.msra.mxu0 0.0
        %1884 = vmatprep.subr.mxu0 0.0
        %1885 = vmatpush2.xpose.msra.mxu0 0.0
        %1886 = vmatprep.subr.mxu0 0.0
        %1887 = vmatpush2.xpose.msra.mxu0 0.0
        %1888 = vmatprep.subr.mxu0 0.0
        %1889 = vmatpush2.xpose.msra.mxu0 0.0
        %1890 = vmatprep.subr.mxu0 0.0
        %1891 = vmatpush2.xpose.msra.mxu0 0.0
        %1892 = vmatprep.subr.mxu0 0.0
        %1893 = vmatpush2.xpose.msra.mxu0 0.0
        %1894 = vmatprep.subr.mxu0 0.0
        %1895 = vmatpush2.xpose.msra.mxu0 0.0
        %1896 = vmatprep.subr.mxu0 0.0
        %1897 = vmatpush2.xpose.msra.mxu0 0.0
        %1898 = vmatprep.subr.mxu0 0.0
        %1899 = vmatpush2.xpose.msra.mxu0 0.0
        %1900 = vmatprep.subr.mxu0 0.0
        %1901 = vmatpush2.xpose.msra.mxu0 0.0
        %1902 = vmatprep.subr.mxu0 0.0
        %1903 = vmatpush2.xpose.msra.mxu0 0.0
        %1904 = vmatprep.subr.mxu0 0.0
        %1905 = vmatpush2.xpose.msra.mxu0 0.0
        %1906 = vmatprep.mubr.f32.mxu0 0.0
        %1907 = vmatmul.mubr.f32.gmra.mxu0 %v1837
        %v1908 = vpop.f32.mrf.mxu0
        %v1909 = vadd.f32 %v1677, %v1908
        %v1910 = vpop.f32.mrf.mxu0
        %1911 = vdwg.mxu0
        %v1913 = vsel %vm1683, %v1022, 0
        %v1916 = vsel %vm1683, %v1314, 0
        %1918 = vmatprep.subr.mxu0 0.0
        %1919 = vmatpush1.xpose.msra.mxu0 0.0
        %1920 = vmatprep.subr.mxu0 0.0
        %1921 = vmatpush1.xpose.msra.mxu0 0.0
        %1922 = vmatprep.subr.mxu0 0.0
        %1923 = vmatpush1.xpose.msra.mxu0 0.0
        %1924 = vmatprep.subr.mxu0 0.0
        %1925 = vmatpush1.xpose.msra.mxu0 0.0
        %1926 = vmatprep.subr.mxu0 0.0
        %1927 = vmatpush1.xpose.msra.mxu0 0.0
        %1928 = vmatprep.subr.mxu0 0.0
        %1929 = vmatpush1.xpose.msra.mxu0 0.0
        %1930 = vmatprep.subr.mxu0 0.0
        %1931 = vmatpush1.xpose.msra.mxu0 0.0
        %1932 = vmatprep.subr.mxu0 0.0
        %1933 = vmatpush1.xpose.msra.mxu0 0.0
        %1934 = vmatprep.subr.mxu0 0.0
        %1935 = vmatpush1.xpose.msra.mxu0 0.0
        %1936 = vmatprep.subr.mxu0 0.0
        %1937 = vmatpush1.xpose.msra.mxu0 0.0
        %1938 = vmatprep.subr.mxu0 0.0
        %1939 = vmatpush1.xpose.msra.mxu0 0.0
        %1940 = vmatprep.subr.mxu0 0.0
        %1941 = vmatpush1.xpose.msra.mxu0 0.0
        %1942 = vmatprep.subr.mxu0 0.0
        %1943 = vmatpush1.xpose.msra.mxu0 0.0
        %1944 = vmatprep.subr.mxu0 0.0
        %1945 = vmatpush1.xpose.msra.mxu0 0.0
        %1946 = vmatprep.subr.mxu0 0.0
        %1947 = vmatpush1.xpose.msra.mxu0 0.0
        %1948 = vmatprep.subr.mxu0 0.0
        %1949 = vmatpush1.xpose.msra.mxu0 %v1916
        %1950 = vmatprep.subr.mxu0 0.0
        %1951 = vmatpush2.xpose.msra.mxu0 0.0
        %1952 = vmatprep.subr.mxu0 0.0
        %1953 = vmatpush2.xpose.msra.mxu0 0.0
        %1954 = vmatprep.subr.mxu0 0.0
        %1955 = vmatpush2.xpose.msra.mxu0 0.0
        %1956 = vmatprep.subr.mxu0 0.0
        %1957 = vmatpush2.xpose.msra.mxu0 0.0
        %1958 = vmatprep.subr.mxu0 0.0
        %1959 = vmatpush2.xpose.msra.mxu0 0.0
        %1960 = vmatprep.subr.mxu0 0.0
        %1961 = vmatpush2.xpose.msra.mxu0 0.0
        %1962 = vmatprep.subr.mxu0 0.0
        %1963 = vmatpush2.xpose.msra.mxu0 0.0
        %1964 = vmatprep.subr.mxu0 0.0
        %1965 = vmatpush2.xpose.msra.mxu0 0.0
        %1966 = vmatprep.subr.mxu0 0.0
        %1967 = vmatpush2.xpose.msra.mxu0 0.0
        %1968 = vmatprep.subr.mxu0 0.0
        %1969 = vmatpush2.xpose.msra.mxu0 0.0
        %1970 = vmatprep.subr.mxu0 0.0
        %1971 = vmatpush2.xpose.msra.mxu0 0.0
        %1972 = vmatprep.subr.mxu0 0.0
        %1973 = vmatpush2.xpose.msra.mxu0 0.0
        %1974 = vmatprep.subr.mxu0 0.0
        %1975 = vmatpush2.xpose.msra.mxu0 0.0
        %1976 = vmatprep.subr.mxu0 0.0
        %1977 = vmatpush2.xpose.msra.mxu0 0.0
        %1978 = vmatprep.subr.mxu0 0.0
        %1979 = vmatpush2.xpose.msra.mxu0 0.0
        %1980 = vmatprep.subr.mxu0 0.0
        %1981 = vmatpush2.xpose.msra.mxu0 0.0
        %1982 = vmatprep.mubr.f32.mxu0 0.0
        %1983 = vmatmul.mubr.f32.gmra.mxu0 %v1913
        %v1984 = vpop.f32.mrf.mxu0
        %v1985 = vadd.f32 %v1678, %v1984
        %v1986 = vpop.f32.mrf.mxu0
        %1987 = vdwg.mxu0
        %v1989 = vsel %vm1683, %v1087, 0
        %v1992 = vsel %vm1683, %v1379, 0
        %1994 = vmatprep.subr.mxu0 0.0
        %1995 = vmatpush1.xpose.msra.mxu0 0.0
        %1996 = vmatprep.subr.mxu0 0.0
        %1997 = vmatpush1.xpose.msra.mxu0 0.0
        %1998 = vmatprep.subr.mxu0 0.0
        %1999 = vmatpush1.xpose.msra.mxu0 0.0
        %2000 = vmatprep.subr.mxu0 0.0
        %2001 = vmatpush1.xpose.msra.mxu0 0.0
        %2002 = vmatprep.subr.mxu0 0.0
        %2003 = vmatpush1.xpose.msra.mxu0 0.0
        %2004 = vmatprep.subr.mxu0 0.0
        %2005 = vmatpush1.xpose.msra.mxu0 0.0
        %2006 = vmatprep.subr.mxu0 0.0
        %2007 = vmatpush1.xpose.msra.mxu0 0.0
        %2008 = vmatprep.subr.mxu0 0.0
        %2009 = vmatpush1.xpose.msra.mxu0 0.0
        %2010 = vmatprep.subr.mxu0 0.0
        %2011 = vmatpush1.xpose.msra.mxu0 0.0
        %2012 = vmatprep.subr.mxu0 0.0
        %2013 = vmatpush1.xpose.msra.mxu0 0.0
        %2014 = vmatprep.subr.mxu0 0.0
        %2015 = vmatpush1.xpose.msra.mxu0 0.0
        %2016 = vmatprep.subr.mxu0 0.0
        %2017 = vmatpush1.xpose.msra.mxu0 0.0
        %2018 = vmatprep.subr.mxu0 0.0
        %2019 = vmatpush1.xpose.msra.mxu0 0.0
        %2020 = vmatprep.subr.mxu0 0.0
        %2021 = vmatpush1.xpose.msra.mxu0 0.0
        %2022 = vmatprep.subr.mxu0 0.0
        %2023 = vmatpush1.xpose.msra.mxu0 0.0
        %2024 = vmatprep.subr.mxu0 0.0
        %2025 = vmatpush1.xpose.msra.mxu0 %v1992
        %2026 = vmatprep.subr.mxu0 0.0
        %2027 = vmatpush2.xpose.msra.mxu0 0.0
        %2028 = vmatprep.subr.mxu0 0.0
        %2029 = vmatpush2.xpose.msra.mxu0 0.0
        %2030 = vmatprep.subr.mxu0 0.0
        %2031 = vmatpush2.xpose.msra.mxu0 0.0
        %2032 = vmatprep.subr.mxu0 0.0
        %2033 = vmatpush2.xpose.msra.mxu0 0.0
        %2034 = vmatprep.subr.mxu0 0.0
        %2035 = vmatpush2.xpose.msra.mxu0 0.0
        %2036 = vmatprep.subr.mxu0 0.0
        %2037 = vmatpush2.xpose.msra.mxu0 0.0
        %2038 = vmatprep.subr.mxu0 0.0
        %2039 = vmatpush2.xpose.msra.mxu0 0.0
        %2040 = vmatprep.subr.mxu0 0.0
        %2041 = vmatpush2.xpose.msra.mxu0 0.0
        %2042 = vmatprep.subr.mxu0 0.0
        %2043 = vmatpush2.xpose.msra.mxu0 0.0
        %2044 = vmatprep.subr.mxu0 0.0
        %2045 = vmatpush2.xpose.msra.mxu0 0.0
        %2046 = vmatprep.subr.mxu0 0.0
        %2047 = vmatpush2.xpose.msra.mxu0 0.0
        %2048 = vmatprep.subr.mxu0 0.0
        %2049 = vmatpush2.xpose.msra.mxu0 0.0
        %2050 = vmatprep.subr.mxu0 0.0
        %2051 = vmatpush2.xpose.msra.mxu0 0.0
        %2052 = vmatprep.subr.mxu0 0.0
        %2053 = vmatpush2.xpose.msra.mxu0 0.0
        %2054 = vmatprep.subr.mxu0 0.0
        %2055 = vmatpush2.xpose.msra.mxu0 0.0
        %2056 = vmatprep.subr.mxu0 0.0
        %2057 = vmatpush2.xpose.msra.mxu0 0.0
        %2058 = vmatprep.mubr.f32.mxu0 0.0
        %2059 = vmatmul.mubr.f32.gmra.mxu0 %v1989
        %v2060 = vpop.f32.mrf.mxu0
        %v2061 = vadd.f32 %v1679, %v2060
        %v2062 = vpop.f32.mrf.mxu0
        %2063 = vdwg.mxu0
        %v2065 = vsel %vm1683, %v1088, 0
        %v2068 = vsel %vm1683, %v1380, 0
        %2070 = vmatprep.subr.mxu0 0.0
        %2071 = vmatpush1.xpose.msra.mxu0 0.0
        %2072 = vmatprep.subr.mxu0 0.0
        %2073 = vmatpush1.xpose.msra.mxu0 0.0
        %2074 = vmatprep.subr.mxu0 0.0
        %2075 = vmatpush1.xpose.msra.mxu0 0.0
        %2076 = vmatprep.subr.mxu0 0.0
        %2077 = vmatpush1.xpose.msra.mxu0 0.0
        %2078 = vmatprep.subr.mxu0 0.0
        %2079 = vmatpush1.xpose.msra.mxu0 0.0
        %2080 = vmatprep.subr.mxu0 0.0
        %2081 = vmatpush1.xpose.msra.mxu0 0.0
        %2082 = vmatprep.subr.mxu0 0.0
        %2083 = vmatpush1.xpose.msra.mxu0 0.0
        %2084 = vmatprep.subr.mxu0 0.0
        %2085 = vmatpush1.xpose.msra.mxu0 0.0
        %2086 = vmatprep.subr.mxu0 0.0
        %2087 = vmatpush1.xpose.msra.mxu0 0.0
        %2088 = vmatprep.subr.mxu0 0.0
        %2089 = vmatpush1.xpose.msra.mxu0 0.0
        %2090 = vmatprep.subr.mxu0 0.0
        %2091 = vmatpush1.xpose.msra.mxu0 0.0
        %2092 = vmatprep.subr.mxu0 0.0
        %2093 = vmatpush1.xpose.msra.mxu0 0.0
        %2094 = vmatprep.subr.mxu0 0.0
        %2095 = vmatpush1.xpose.msra.mxu0 0.0
        %2096 = vmatprep.subr.mxu0 0.0
        %2097 = vmatpush1.xpose.msra.mxu0 0.0
        %2098 = vmatprep.subr.mxu0 0.0
        %2099 = vmatpush1.xpose.msra.mxu0 0.0
        %2100 = vmatprep.subr.mxu0 0.0
        %2101 = vmatpush1.xpose.msra.mxu0 %v2068
        %2102 = vmatprep.subr.mxu0 0.0
        %2103 = vmatpush2.xpose.msra.mxu0 0.0
        %2104 = vmatprep.subr.mxu0 0.0
        %2105 = vmatpush2.xpose.msra.mxu0 0.0
        %2106 = vmatprep.subr.mxu0 0.0
        %2107 = vmatpush2.xpose.msra.mxu0 0.0
        %2108 = vmatprep.subr.mxu0 0.0
        %2109 = vmatpush2.xpose.msra.mxu0 0.0
        %2110 = vmatprep.subr.mxu0 0.0
        %2111 = vmatpush2.xpose.msra.mxu0 0.0
        %2112 = vmatprep.subr.mxu0 0.0
        %2113 = vmatpush2.xpose.msra.mxu0 0.0
        %2114 = vmatprep.subr.mxu0 0.0
        %2115 = vmatpush2.xpose.msra.mxu0 0.0
        %2116 = vmatprep.subr.mxu0 0.0
        %2117 = vmatpush2.xpose.msra.mxu0 0.0
        %2118 = vmatprep.subr.mxu0 0.0
        %2119 = vmatpush2.xpose.msra.mxu0 0.0
        %2120 = vmatprep.subr.mxu0 0.0
        %2121 = vmatpush2.xpose.msra.mxu0 0.0
        %2122 = vmatprep.subr.mxu0 0.0
        %2123 = vmatpush2.xpose.msra.mxu0 0.0
        %2124 = vmatprep.subr.mxu0 0.0
        %2125 = vmatpush2.xpose.msra.mxu0 0.0
        %2126 = vmatprep.subr.mxu0 0.0
        %2127 = vmatpush2.xpose.msra.mxu0 0.0
        %2128 = vmatprep.subr.mxu0 0.0
        %2129 = vmatpush2.xpose.msra.mxu0 0.0
        %2130 = vmatprep.subr.mxu0 0.0
        %2131 = vmatpush2.xpose.msra.mxu0 0.0
        %2132 = vmatprep.subr.mxu0 0.0
        %2133 = vmatpush2.xpose.msra.mxu0 0.0
        %2134 = vmatprep.mubr.f32.mxu0 0.0
        %2135 = vmatmul.mubr.f32.gmra.mxu0 %v2065
        %v2136 = vpop.f32.mrf.mxu0
        %v2137 = vadd.f32 %v1680, %v2136
        %v2138 = vpop.f32.mrf.mxu0
        %2139 = vdwg.mxu0
        %v2141 = vsel %vm1683, %v1089, 0
        %v2144 = vsel %vm1683, %v1381, 0
        %2146 = vmatprep.subr.mxu0 0.0
        %2147 = vmatpush1.xpose.msra.mxu0 0.0
        %2148 = vmatprep.subr.mxu0 0.0
        %2149 = vmatpush1.xpose.msra.mxu0 0.0
        %2150 = vmatprep.subr.mxu0 0.0
        %2151 = vmatpush1.xpose.msra.mxu0 0.0
        %2152 = vmatprep.subr.mxu0 0.0
        %2153 = vmatpush1.xpose.msra.mxu0 0.0
        %2154 = vmatprep.subr.mxu0 0.0
        %2155 = vmatpush1.xpose.msra.mxu0 0.0
        %2156 = vmatprep.subr.mxu0 0.0
        %2157 = vmatpush1.xpose.msra.mxu0 0.0
        %2158 = vmatprep.subr.mxu0 0.0
        %2159 = vmatpush1.xpose.msra.mxu0 0.0
        %2160 = vmatprep.subr.mxu0 0.0
        %2161 = vmatpush1.xpose.msra.mxu0 0.0
        %2162 = vmatprep.subr.mxu0 0.0
        %2163 = vmatpush1.xpose.msra.mxu0 0.0
        %2164 = vmatprep.subr.mxu0 0.0
        %2165 = vmatpush1.xpose.msra.mxu0 0.0
        %2166 = vmatprep.subr.mxu0 0.0
        %2167 = vmatpush1.xpose.msra.mxu0 0.0
        %2168 = vmatprep.subr.mxu0 0.0
        %2169 = vmatpush1.xpose.msra.mxu0 0.0
        %2170 = vmatprep.subr.mxu0 0.0
        %2171 = vmatpush1.xpose.msra.mxu0 0.0
        %2172 = vmatprep.subr.mxu0 0.0
        %2173 = vmatpush1.xpose.msra.mxu0 0.0
        %2174 = vmatprep.subr.mxu0 0.0
        %2175 = vmatpush1.xpose.msra.mxu0 0.0
        %2176 = vmatprep.subr.mxu0 0.0
        %2177 = vmatpush1.xpose.msra.mxu0 %v2144
        %2178 = vmatprep.subr.mxu0 0.0
        %2179 = vmatpush2.xpose.msra.mxu0 0.0
        %2180 = vmatprep.subr.mxu0 0.0
        %2181 = vmatpush2.xpose.msra.mxu0 0.0
        %2182 = vmatprep.subr.mxu0 0.0
        %2183 = vmatpush2.xpose.msra.mxu0 0.0
        %2184 = vmatprep.subr.mxu0 0.0
        %2185 = vmatpush2.xpose.msra.mxu0 0.0
        %2186 = vmatprep.subr.mxu0 0.0
        %2187 = vmatpush2.xpose.msra.mxu0 0.0
        %2188 = vmatprep.subr.mxu0 0.0
        %2189 = vmatpush2.xpose.msra.mxu0 0.0
        %2190 = vmatprep.subr.mxu0 0.0
        %2191 = vmatpush2.xpose.msra.mxu0 0.0
        %2192 = vmatprep.subr.mxu0 0.0
        %2193 = vmatpush2.xpose.msra.mxu0 0.0
        %2194 = vmatprep.subr.mxu0 0.0
        %2195 = vmatpush2.xpose.msra.mxu0 0.0
        %2196 = vmatprep.subr.mxu0 0.0
        %2197 = vmatpush2.xpose.msra.mxu0 0.0
        %2198 = vmatprep.subr.mxu0 0.0
        %2199 = vmatpush2.xpose.msra.mxu0 0.0
        %2200 = vmatprep.subr.mxu0 0.0
        %2201 = vmatpush2.xpose.msra.mxu0 0.0
        %2202 = vmatprep.subr.mxu0 0.0
        %2203 = vmatpush2.xpose.msra.mxu0 0.0
        %2204 = vmatprep.subr.mxu0 0.0
        %2205 = vmatpush2.xpose.msra.mxu0 0.0
        %2206 = vmatprep.subr.mxu0 0.0
        %2207 = vmatpush2.xpose.msra.mxu0 0.0
        %2208 = vmatprep.subr.mxu0 0.0
        %2209 = vmatpush2.xpose.msra.mxu0 0.0
        %2210 = vmatprep.mubr.f32.mxu0 0.0
        %2211 = vmatmul.mubr.f32.gmra.mxu0 %v2141
        %v2212 = vpop.f32.mrf.mxu0
        %v2213 = vadd.f32 %v1681, %v2212
        %v2214 = vpop.f32.mrf.mxu0
        %2215 = vdwg.mxu0
        %v2217 = vsel %vm1683, %v1090, 0
        %v2220 = vsel %vm1683, %v1382, 0
        %2222 = vmatprep.subr.mxu0 0.0
        %2223 = vmatpush1.xpose.msra.mxu0 0.0
        %2224 = vmatprep.subr.mxu0 0.0
        %2225 = vmatpush1.xpose.msra.mxu0 0.0
        %2226 = vmatprep.subr.mxu0 0.0
        %2227 = vmatpush1.xpose.msra.mxu0 0.0
        %2228 = vmatprep.subr.mxu0 0.0
        %2229 = vmatpush1.xpose.msra.mxu0 0.0
        %2230 = vmatprep.subr.mxu0 0.0
        %2231 = vmatpush1.xpose.msra.mxu0 0.0
        %2232 = vmatprep.subr.mxu0 0.0
        %2233 = vmatpush1.xpose.msra.mxu0 0.0
        %2234 = vmatprep.subr.mxu0 0.0
        %2235 = vmatpush1.xpose.msra.mxu0 0.0
        %2236 = vmatprep.subr.mxu0 0.0
        %2237 = vmatpush1.xpose.msra.mxu0 0.0
        %2238 = vmatprep.subr.mxu0 0.0
        %2239 = vmatpush1.xpose.msra.mxu0 0.0
        %2240 = vmatprep.subr.mxu0 0.0
        %2241 = vmatpush1.xpose.msra.mxu0 0.0
        %2242 = vmatprep.subr.mxu0 0.0
        %2243 = vmatpush1.xpose.msra.mxu0 0.0
        %2244 = vmatprep.subr.mxu0 0.0
        %2245 = vmatpush1.xpose.msra.mxu0 0.0
        %2246 = vmatprep.subr.mxu0 0.0
        %2247 = vmatpush1.xpose.msra.mxu0 0.0
        %2248 = vmatprep.subr.mxu0 0.0
        %2249 = vmatpush1.xpose.msra.mxu0 0.0
        %2250 = vmatprep.subr.mxu0 0.0
        %2251 = vmatpush1.xpose.msra.mxu0 0.0
        %2252 = vmatprep.subr.mxu0 0.0
        %2253 = vmatpush1.xpose.msra.mxu0 %v2220
        %2254 = vmatprep.subr.mxu0 0.0
        %2255 = vmatpush2.xpose.msra.mxu0 0.0
        %2256 = vmatprep.subr.mxu0 0.0
        %2257 = vmatpush2.xpose.msra.mxu0 0.0
        %2258 = vmatprep.subr.mxu0 0.0
        %2259 = vmatpush2.xpose.msra.mxu0 0.0
        %2260 = vmatprep.subr.mxu0 0.0
        %2261 = vmatpush2.xpose.msra.mxu0 0.0
        %2262 = vmatprep.subr.mxu0 0.0
        %2263 = vmatpush2.xpose.msra.mxu0 0.0
        %2264 = vmatprep.subr.mxu0 0.0
        %2265 = vmatpush2.xpose.msra.mxu0 0.0
        %2266 = vmatprep.subr.mxu0 0.0
        %2267 = vmatpush2.xpose.msra.mxu0 0.0
        %2268 = vmatprep.subr.mxu0 0.0
        %2269 = vmatpush2.xpose.msra.mxu0 0.0
        %2270 = vmatprep.subr.mxu0 0.0
        %2271 = vmatpush2.xpose.msra.mxu0 0.0
        %2272 = vmatprep.subr.mxu0 0.0
        %2273 = vmatpush2.xpose.msra.mxu0 0.0
        %2274 = vmatprep.subr.mxu0 0.0
        %2275 = vmatpush2.xpose.msra.mxu0 0.0
        %2276 = vmatprep.subr.mxu0 0.0
        %2277 = vmatpush2.xpose.msra.mxu0 0.0
        %2278 = vmatprep.subr.mxu0 0.0
        %2279 = vmatpush2.xpose.msra.mxu0 0.0
        %2280 = vmatprep.subr.mxu0 0.0
        %2281 = vmatpush2.xpose.msra.mxu0 0.0
        %2282 = vmatprep.subr.mxu0 0.0
        %2283 = vmatpush2.xpose.msra.mxu0 0.0
        %2284 = vmatprep.subr.mxu0 0.0
        %2285 = vmatpush2.xpose.msra.mxu0 0.0
        %2286 = vmatprep.mubr.f32.mxu0 0.0
        %2287 = vmatmul.mubr.f32.gmra.mxu0 %v2217
        %v2288 = vpop.f32.mrf.mxu0
        %v2289 = vadd.f32 %v1682, %v2288
        %v2290 = vpop.f32.mrf.mxu0
        %2291 = vdwg.mxu0
        %vm2292 = vcmask 64512
        %v2293 = vsel %vm2292, %v1757, -inf
        %2294 = vmax.xlane.f32.xlu0 %v2293
        %v2295 = vpop.xlane.xlu0 %2294
        %v2296 = vsel %vm2292, %v1833, -inf
        %2297 = vmax.xlane.f32.xlu0 %v2296
        %v2298 = vpop.xlane.xlu0 %2297
        %v2299 = vsel %vm2292, %v1909, -inf
        %2300 = vmax.xlane.f32.xlu0 %v2299
        %v2301 = vpop.xlane.xlu0 %2300
        %v2302 = vsel %vm2292, %v1985, -inf
        %2303 = vmax.xlane.f32.xlu0 %v2302
        %v2304 = vpop.xlane.xlu0 %2303
        %v2305 = vsel %vm2292, %v2061, -inf
        %2306 = vmax.xlane.f32.xlu0 %v2305
        %v2307 = vpop.xlane.xlu0 %2306
        %v2308 = vsel %vm2292, %v2137, -inf
        %2309 = vmax.xlane.f32.xlu0 %v2308
        %v2310 = vpop.xlane.xlu0 %2309
        %v2311 = vsel %vm2292, %v2213, -inf
        %2312 = vmax.xlane.f32.xlu0 %v2311
        %v2313 = vpop.xlane.xlu0 %2312
        %v2314 = vsel %vm2292, %v2289, -inf
        %2315 = vmax.xlane.f32.xlu0 %v2314
        %v2316 = vpop.xlane.xlu0 %2315
        %v2317 = vsub.f32 %v1757, %v2295
        %v2318 = vsub.f32 %v1833, %v2298
        %v2319 = vsub.f32 %v1909, %v2301
        %v2320 = vsub.f32 %v1985, %v2304
        %v2321 = vsub.f32 %v2061, %v2307
        %v2322 = vsub.f32 %v2137, %v2310
        %v2323 = vsub.f32 %v2213, %v2313
        %v2324 = vsub.f32 %v2289, %v2316
        %v2325 = vmul.f32 %v2317, 1.442695
        %v2326 = vpow.pop %v2325
        %v2327 = vmul.f32 %v2318, 1.442695
        %v2328 = vpow.pop %v2327
        %v2329 = vmul.f32 %v2319, 1.442695
        %v2330 = vpow.pop %v2329
        %v2331 = vmul.f32 %v2320, 1.442695
        %v2332 = vpow.pop %v2331
        %v2333 = vmul.f32 %v2321, 1.442695
        %v2334 = vpow.pop %v2333
        %v2335 = vmul.f32 %v2322, 1.442695
        %v2336 = vpow.pop %v2335
        %v2337 = vmul.f32 %v2323, 1.442695
        %v2338 = vpow.pop %v2337
        %v2339 = vmul.f32 %v2324, 1.442695
        %v2340 = vpow.pop %v2339
        %v2341 = vsel %vm2292, %v2326, 0.0
        %2342 = vadd.xlane.f32.xlu0 %v2341
        %v2343 = vpop.xlane.xlu0 %2342
        %v2344 = vsel %vm2292, %v2328, 0.0
        %2345 = vadd.xlane.f32.xlu0 %v2344
        %v2346 = vpop.xlane.xlu0 %2345
        %v2347 = vsel %vm2292, %v2330, 0.0
        %2348 = vadd.xlane.f32.xlu0 %v2347
        %v2349 = vpop.xlane.xlu0 %2348
        %v2350 = vsel %vm2292, %v2332, 0.0
        %2351 = vadd.xlane.f32.xlu0 %v2350
        %v2352 = vpop.xlane.xlu0 %2351
        %v2353 = vsel %vm2292, %v2334, 0.0
        %2354 = vadd.xlane.f32.xlu0 %v2353
        %v2355 = vpop.xlane.xlu0 %2354
        %v2356 = vsel %vm2292, %v2336, 0.0
        %2357 = vadd.xlane.f32.xlu0 %v2356
        %v2358 = vpop.xlane.xlu0 %2357
        %v2359 = vsel %vm2292, %v2338, 0.0
        %2360 = vadd.xlane.f32.xlu0 %v2359
        %v2361 = vpop.xlane.xlu0 %2360
        %v2362 = vsel %vm2292, %v2340, 0.0
        %2363 = vadd.xlane.f32.xlu0 %v2362
        %v2364 = vpop.xlane.xlu0 %2363
        %v2365 = vrcp.pop %v2343
        %v2366 = vrcp.pop %v2346
        %v2367 = vrcp.pop %v2349
        %v2368 = vrcp.pop %v2352
        %v2369 = vrcp.pop %v2355
        %v2370 = vrcp.pop %v2358
        %v2371 = vrcp.pop %v2361
        %v2372 = vrcp.pop %v2364
        %v2373 = vmul.f32 %v2326, %v2365
        %v2374 = vmul.f32 %v2328, %v2366
        %v2375 = vmul.f32 %v2330, %v2367
        %v2376 = vmul.f32 %v2332, %v2368
        %v2377 = vmul.f32 %v2334, %v2369
        %v2378 = vmul.f32 %v2336, %v2370
        %v2379 = vmul.f32 %v2338, %v2371
        %v2380 = vmul.f32 %v2340, %v2372
        %v2382 = vsel %vm2292, %v2373, 0
        %2384 = vmatprep.subr.mxu0 0.0
        %2385 = vmatpush1.msra.mxu0 0.0
        %2386 = vmatprep.subr.mxu0 0.0
        %2387 = vmatpush1.msra.mxu0 0.0
        %2388 = vmatprep.subr.mxu0 0.0
        %2389 = vmatpush1.msra.mxu0 0.0
        %2390 = vmatprep.subr.mxu0 0.0
        %2391 = vmatpush1.msra.mxu0 0.0
        %2392 = vmatprep.subr.mxu0 0.0
        %2393 = vmatpush1.msra.mxu0 0.0
        %2394 = vmatprep.subr.mxu0 0.0
        %2395 = vmatpush1.msra.mxu0 0.0
        %2396 = vmatprep.subr.mxu0 0.0
        %2397 = vmatpush1.msra.mxu0 0.0
        %2398 = vmatprep.subr.mxu0 0.0
        %2399 = vmatpush1.msra.mxu0 0.0
        %2400 = vmatprep.subr.mxu0 0.0
        %2401 = vmatpush1.msra.mxu0 0.0
        %2402 = vmatprep.subr.mxu0 0.0
        %2403 = vmatpush1.msra.mxu0 0.0
        %2404 = vmatprep.subr.mxu0 0.0
        %2405 = vmatpush1.msra.mxu0 0.0
        %2406 = vmatprep.subr.mxu0 0.0
        %2407 = vmatpush1.msra.mxu0 0.0
        %2408 = vmatprep.subr.mxu0 0.0
        %2409 = vmatpush1.msra.mxu0 0.0
        %2410 = vmatprep.subr.mxu0 0.0
        %2411 = vmatpush1.msra.mxu0 0.0
        %2412 = vmatprep.subr.mxu0 0.0
        %2413 = vmatpush1.msra.mxu0 0.0
        %2414 = vmatprep.subr.mxu0 0.0
        %2415 = vmatpush1.msra.mxu0 %v1603
        %2416 = vmatprep.subr.mxu0 0.0
        %2417 = vmatpush2.msra.mxu0 0.0
        %2418 = vmatprep.subr.mxu0 0.0
        %2419 = vmatpush2.msra.mxu0 0.0
        %2420 = vmatprep.subr.mxu0 0.0
        %2421 = vmatpush2.msra.mxu0 0.0
        %2422 = vmatprep.subr.mxu0 0.0
        %2423 = vmatpush2.msra.mxu0 0.0
        %2424 = vmatprep.subr.mxu0 0.0
        %2425 = vmatpush2.msra.mxu0 0.0
        %2426 = vmatprep.subr.mxu0 0.0
        %2427 = vmatpush2.msra.mxu0 0.0
        %2428 = vmatprep.subr.mxu0 0.0
        %2429 = vmatpush2.msra.mxu0 0.0
        %2430 = vmatprep.subr.mxu0 0.0
        %2431 = vmatpush2.msra.mxu0 0.0
        %2432 = vmatprep.subr.mxu0 0.0
        %2433 = vmatpush2.msra.mxu0 0.0
        %2434 = vmatprep.subr.mxu0 0.0
        %2435 = vmatpush2.msra.mxu0 0.0
        %2436 = vmatprep.subr.mxu0 0.0
        %2437 = vmatpush2.msra.mxu0 0.0
        %2438 = vmatprep.subr.mxu0 0.0
        %2439 = vmatpush2.msra.mxu0 0.0
        %2440 = vmatprep.subr.mxu0 0.0
        %2441 = vmatpush2.msra.mxu0 0.0
        %2442 = vmatprep.subr.mxu0 0.0
        %2443 = vmatpush2.msra.mxu0 0.0
        %2444 = vmatprep.subr.mxu0 0.0
        %2445 = vmatpush2.msra.mxu0 0.0
        %2446 = vmatprep.subr.mxu0 0.0
        %2447 = vmatpush2.msra.mxu0 0.0
        %2448 = vmatprep.mubr.f32.mxu0 0.0
        %2449 = vmatmul.mubr.f32.gmra.mxu0 %v2382
        %v2450 = vpop.f32.mrf.mxu0
        %v2451 = vadd.f32 0.0, %v2450
        %v2452 = vpop.f32.mrf.mxu0
        %2453 = vdwg.mxu0
        %v2455 = vsel %vm2292, %v2374, 0
        %2457 = vmatprep.subr.mxu0 0.0
        %2458 = vmatpush1.msra.mxu0 0.0
        %2459 = vmatprep.subr.mxu0 0.0
        %2460 = vmatpush1.msra.mxu0 0.0
        %2461 = vmatprep.subr.mxu0 0.0
        %2462 = vmatpush1.msra.mxu0 0.0
        %2463 = vmatprep.subr.mxu0 0.0
        %2464 = vmatpush1.msra.mxu0 0.0
        %2465 = vmatprep.subr.mxu0 0.0
        %2466 = vmatpush1.msra.mxu0 0.0
        %2467 = vmatprep.subr.mxu0 0.0
        %2468 = vmatpush1.msra.mxu0 0.0
        %2469 = vmatprep.subr.mxu0 0.0
        %2470 = vmatpush1.msra.mxu0 0.0
        %2471 = vmatprep.subr.mxu0 0.0
        %2472 = vmatpush1.msra.mxu0 0.0
        %2473 = vmatprep.subr.mxu0 0.0
        %2474 = vmatpush1.msra.mxu0 0.0
        %2475 = vmatprep.subr.mxu0 0.0
        %2476 = vmatpush1.msra.mxu0 0.0
        %2477 = vmatprep.subr.mxu0 0.0
        %2478 = vmatpush1.msra.mxu0 0.0
        %2479 = vmatprep.subr.mxu0 0.0
        %2480 = vmatpush1.msra.mxu0 0.0
        %2481 = vmatprep.subr.mxu0 0.0
        %2482 = vmatpush1.msra.mxu0 0.0
        %2483 = vmatprep.subr.mxu0 0.0
        %2484 = vmatpush1.msra.mxu0 0.0
        %2485 = vmatprep.subr.mxu0 0.0
        %2486 = vmatpush1.msra.mxu0 0.0
        %2487 = vmatprep.subr.mxu0 0.0
        %2488 = vmatpush1.msra.mxu0 %v1604
        %2489 = vmatprep.subr.mxu0 0.0
        %2490 = vmatpush2.msra.mxu0 0.0
        %2491 = vmatprep.subr.mxu0 0.0
        %2492 = vmatpush2.msra.mxu0 0.0
        %2493 = vmatprep.subr.mxu0 0.0
        %2494 = vmatpush2.msra.mxu0 0.0
        %2495 = vmatprep.subr.mxu0 0.0
        %2496 = vmatpush2.msra.mxu0 0.0
        %2497 = vmatprep.subr.mxu0 0.0
        %2498 = vmatpush2.msra.mxu0 0.0
        %2499 = vmatprep.subr.mxu0 0.0
        %2500 = vmatpush2.msra.mxu0 0.0
        %2501 = vmatprep.subr.mxu0 0.0
        %2502 = vmatpush2.msra.mxu0 0.0
        %2503 = vmatprep.subr.mxu0 0.0
        %2504 = vmatpush2.msra.mxu0 0.0
        %2505 = vmatprep.subr.mxu0 0.0
        %2506 = vmatpush2.msra.mxu0 0.0
        %2507 = vmatprep.subr.mxu0 0.0
        %2508 = vmatpush2.msra.mxu0 0.0
        %2509 = vmatprep.subr.mxu0 0.0
        %2510 = vmatpush2.msra.mxu0 0.0
        %2511 = vmatprep.subr.mxu0 0.0
        %2512 = vmatpush2.msra.mxu0 0.0
        %2513 = vmatprep.subr.mxu0 0.0
        %2514 = vmatpush2.msra.mxu0 0.0
        %2515 = vmatprep.subr.mxu0 0.0
        %2516 = vmatpush2.msra.mxu0 0.0
        %2517 = vmatprep.subr.mxu0 0.0
        %2518 = vmatpush2.msra.mxu0 0.0
        %2519 = vmatprep.subr.mxu0 0.0
        %2520 = vmatpush2.msra.mxu0 0.0
        %2521 = vmatprep.mubr.f32.mxu0 0.0
        %2522 = vmatmul.mubr.f32.gmra.mxu0 %v2455
        %v2523 = vpop.f32.mrf.mxu0
        %v2524 = vadd.f32 0.0, %v2523
        %v2525 = vpop.f32.mrf.mxu0
        %2526 = vdwg.mxu0
        %v2528 = vsel %vm2292, %v2375, 0
        %2530 = vmatprep.subr.mxu0 0.0
        %2531 = vmatpush1.msra.mxu0 0.0
        %2532 = vmatprep.subr.mxu0 0.0
        %2533 = vmatpush1.msra.mxu0 0.0
        %2534 = vmatprep.subr.mxu0 0.0
        %2535 = vmatpush1.msra.mxu0 0.0
        %2536 = vmatprep.subr.mxu0 0.0
        %2537 = vmatpush1.msra.mxu0 0.0
        %2538 = vmatprep.subr.mxu0 0.0
        %2539 = vmatpush1.msra.mxu0 0.0
        %2540 = vmatprep.subr.mxu0 0.0
        %2541 = vmatpush1.msra.mxu0 0.0
        %2542 = vmatprep.subr.mxu0 0.0
        %2543 = vmatpush1.msra.mxu0 0.0
        %2544 = vmatprep.subr.mxu0 0.0
        %2545 = vmatpush1.msra.mxu0 0.0
        %2546 = vmatprep.subr.mxu0 0.0
        %2547 = vmatpush1.msra.mxu0 0.0
        %2548 = vmatprep.subr.mxu0 0.0
        %2549 = vmatpush1.msra.mxu0 0.0
        %2550 = vmatprep.subr.mxu0 0.0
        %2551 = vmatpush1.msra.mxu0 0.0
        %2552 = vmatprep.subr.mxu0 0.0
        %2553 = vmatpush1.msra.mxu0 0.0
        %2554 = vmatprep.subr.mxu0 0.0
        %2555 = vmatpush1.msra.mxu0 0.0
        %2556 = vmatprep.subr.mxu0 0.0
        %2557 = vmatpush1.msra.mxu0 0.0
        %2558 = vmatprep.subr.mxu0 0.0
        %2559 = vmatpush1.msra.mxu0 0.0
        %2560 = vmatprep.subr.mxu0 0.0
        %2561 = vmatpush1.msra.mxu0 %v1605
        %2562 = vmatprep.subr.mxu0 0.0
        %2563 = vmatpush2.msra.mxu0 0.0
        %2564 = vmatprep.subr.mxu0 0.0
        %2565 = vmatpush2.msra.mxu0 0.0
        %2566 = vmatprep.subr.mxu0 0.0
        %2567 = vmatpush2.msra.mxu0 0.0
        %2568 = vmatprep.subr.mxu0 0.0
        %2569 = vmatpush2.msra.mxu0 0.0
        %2570 = vmatprep.subr.mxu0 0.0
        %2571 = vmatpush2.msra.mxu0 0.0
        %2572 = vmatprep.subr.mxu0 0.0
        %2573 = vmatpush2.msra.mxu0 0.0
        %2574 = vmatprep.subr.mxu0 0.0
        %2575 = vmatpush2.msra.mxu0 0.0
        %2576 = vmatprep.subr.mxu0 0.0
        %2577 = vmatpush2.msra.mxu0 0.0
        %2578 = vmatprep.subr.mxu0 0.0
        %2579 = vmatpush2.msra.mxu0 0.0
        %2580 = vmatprep.subr.mxu0 0.0
        %2581 = vmatpush2.msra.mxu0 0.0
        %2582 = vmatprep.subr.mxu0 0.0
        %2583 = vmatpush2.msra.mxu0 0.0
        %2584 = vmatprep.subr.mxu0 0.0
        %2585 = vmatpush2.msra.mxu0 0.0
        %2586 = vmatprep.subr.mxu0 0.0
        %2587 = vmatpush2.msra.mxu0 0.0
        %2588 = vmatprep.subr.mxu0 0.0
        %2589 = vmatpush2.msra.mxu0 0.0
        %2590 = vmatprep.subr.mxu0 0.0
        %2591 = vmatpush2.msra.mxu0 0.0
        %2592 = vmatprep.subr.mxu0 0.0
        %2593 = vmatpush2.msra.mxu0 0.0
        %2594 = vmatprep.mubr.f32.mxu0 0.0
        %2595 = vmatmul.mubr.f32.gmra.mxu0 %v2528
        %v2596 = vpop.f32.mrf.mxu0
        %v2597 = vadd.f32 0.0, %v2596
        %v2598 = vpop.f32.mrf.mxu0
        %2599 = vdwg.mxu0
        %v2601 = vsel %vm2292, %v2376, 0
        %2603 = vmatprep.subr.mxu0 0.0
        %2604 = vmatpush1.msra.mxu0 0.0
        %2605 = vmatprep.subr.mxu0 0.0
        %2606 = vmatpush1.msra.mxu0 0.0
        %2607 = vmatprep.subr.mxu0 0.0
        %2608 = vmatpush1.msra.mxu0 0.0
        %2609 = vmatprep.subr.mxu0 0.0
        %2610 = vmatpush1.msra.mxu0 0.0
        %2611 = vmatprep.subr.mxu0 0.0
        %2612 = vmatpush1.msra.mxu0 0.0
        %2613 = vmatprep.subr.mxu0 0.0
        %2614 = vmatpush1.msra.mxu0 0.0
        %2615 = vmatprep.subr.mxu0 0.0
        %2616 = vmatpush1.msra.mxu0 0.0
        %2617 = vmatprep.subr.mxu0 0.0
        %2618 = vmatpush1.msra.mxu0 0.0
        %2619 = vmatprep.subr.mxu0 0.0
        %2620 = vmatpush1.msra.mxu0 0.0
        %2621 = vmatprep.subr.mxu0 0.0
        %2622 = vmatpush1.msra.mxu0 0.0
        %2623 = vmatprep.subr.mxu0 0.0
        %2624 = vmatpush1.msra.mxu0 0.0
        %2625 = vmatprep.subr.mxu0 0.0
        %2626 = vmatpush1.msra.mxu0 0.0
        %2627 = vmatprep.subr.mxu0 0.0
        %2628 = vmatpush1.msra.mxu0 0.0
        %2629 = vmatprep.subr.mxu0 0.0
        %2630 = vmatpush1.msra.mxu0 0.0
        %2631 = vmatprep.subr.mxu0 0.0
        %2632 = vmatpush1.msra.mxu0 0.0
        %2633 = vmatprep.subr.mxu0 0.0
        %2634 = vmatpush1.msra.mxu0 %v1606
        %2635 = vmatprep.subr.mxu0 0.0
        %2636 = vmatpush2.msra.mxu0 0.0
        %2637 = vmatprep.subr.mxu0 0.0
        %2638 = vmatpush2.msra.mxu0 0.0
        %2639 = vmatprep.subr.mxu0 0.0
        %2640 = vmatpush2.msra.mxu0 0.0
        %2641 = vmatprep.subr.mxu0 0.0
        %2642 = vmatpush2.msra.mxu0 0.0
        %2643 = vmatprep.subr.mxu0 0.0
        %2644 = vmatpush2.msra.mxu0 0.0
        %2645 = vmatprep.subr.mxu0 0.0
        %2646 = vmatpush2.msra.mxu0 0.0
        %2647 = vmatprep.subr.mxu0 0.0
        %2648 = vmatpush2.msra.mxu0 0.0
        %2649 = vmatprep.subr.mxu0 0.0
        %2650 = vmatpush2.msra.mxu0 0.0
        %2651 = vmatprep.subr.mxu0 0.0
        %2652 = vmatpush2.msra.mxu0 0.0
        %2653 = vmatprep.subr.mxu0 0.0
        %2654 = vmatpush2.msra.mxu0 0.0
        %2655 = vmatprep.subr.mxu0 0.0
        %2656 = vmatpush2.msra.mxu0 0.0
        %2657 = vmatprep.subr.mxu0 0.0
        %2658 = vmatpush2.msra.mxu0 0.0
        %2659 = vmatprep.subr.mxu0 0.0
        %2660 = vmatpush2.msra.mxu0 0.0
        %2661 = vmatprep.subr.mxu0 0.0
        %2662 = vmatpush2.msra.mxu0 0.0
        %2663 = vmatprep.subr.mxu0 0.0
        %2664 = vmatpush2.msra.mxu0 0.0
        %2665 = vmatprep.subr.mxu0 0.0
        %2666 = vmatpush2.msra.mxu0 0.0
        %2667 = vmatprep.mubr.f32.mxu0 0.0
        %2668 = vmatmul.mubr.f32.gmra.mxu0 %v2601
        %v2669 = vpop.f32.mrf.mxu0
        %v2670 = vadd.f32 0.0, %v2669
        %v2671 = vpop.f32.mrf.mxu0
        %2672 = vdwg.mxu0
        %v2674 = vsel %vm2292, %v2377, 0
        %2676 = vmatprep.subr.mxu0 0.0
        %2677 = vmatpush1.msra.mxu0 0.0
        %2678 = vmatprep.subr.mxu0 0.0
        %2679 = vmatpush1.msra.mxu0 0.0
        %2680 = vmatprep.subr.mxu0 0.0
        %2681 = vmatpush1.msra.mxu0 0.0
        %2682 = vmatprep.subr.mxu0 0.0
        %2683 = vmatpush1.msra.mxu0 0.0
        %2684 = vmatprep.subr.mxu0 0.0
        %2685 = vmatpush1.msra.mxu0 0.0
        %2686 = vmatprep.subr.mxu0 0.0
        %2687 = vmatpush1.msra.mxu0 0.0
        %2688 = vmatprep.subr.mxu0 0.0
        %2689 = vmatpush1.msra.mxu0 0.0
        %2690 = vmatprep.subr.mxu0 0.0
        %2691 = vmatpush1.msra.mxu0 0.0
        %2692 = vmatprep.subr.mxu0 0.0
        %2693 = vmatpush1.msra.mxu0 0.0
        %2694 = vmatprep.subr.mxu0 0.0
        %2695 = vmatpush1.msra.mxu0 0.0
        %2696 = vmatprep.subr.mxu0 0.0
        %2697 = vmatpush1.msra.mxu0 0.0
        %2698 = vmatprep.subr.mxu0 0.0
        %2699 = vmatpush1.msra.mxu0 0.0
        %2700 = vmatprep.subr.mxu0 0.0
        %2701 = vmatpush1.msra.mxu0 0.0
        %2702 = vmatprep.subr.mxu0 0.0
        %2703 = vmatpush1.msra.mxu0 0.0
        %2704 = vmatprep.subr.mxu0 0.0
        %2705 = vmatpush1.msra.mxu0 0.0
        %2706 = vmatprep.subr.mxu0 0.0
        %2707 = vmatpush1.msra.mxu0 %v1671
        %2708 = vmatprep.subr.mxu0 0.0
        %2709 = vmatpush2.msra.mxu0 0.0
        %2710 = vmatprep.subr.mxu0 0.0
        %2711 = vmatpush2.msra.mxu0 0.0
        %2712 = vmatprep.subr.mxu0 0.0
        %2713 = vmatpush2.msra.mxu0 0.0
        %2714 = vmatprep.subr.mxu0 0.0
        %2715 = vmatpush2.msra.mxu0 0.0
        %2716 = vmatprep.subr.mxu0 0.0
        %2717 = vmatpush2.msra.mxu0 0.0
        %2718 = vmatprep.subr.mxu0 0.0
        %2719 = vmatpush2.msra.mxu0 0.0
        %2720 = vmatprep.subr.mxu0 0.0
        %2721 = vmatpush2.msra.mxu0 0.0
        %2722 = vmatprep.subr.mxu0 0.0
        %2723 = vmatpush2.msra.mxu0 0.0
        %2724 = vmatprep.subr.mxu0 0.0
        %2725 = vmatpush2.msra.mxu0 0.0
        %2726 = vmatprep.subr.mxu0 0.0
        %2727 = vmatpush2.msra.mxu0 0.0
        %2728 = vmatprep.subr.mxu0 0.0
        %2729 = vmatpush2.msra.mxu0 0.0
        %2730 = vmatprep.subr.mxu0 0.0
        %2731 = vmatpush2.msra.mxu0 0.0
        %2732 = vmatprep.subr.mxu0 0.0
        %2733 = vmatpush2.msra.mxu0 0.0
        %2734 = vmatprep.subr.mxu0 0.0
        %2735 = vmatpush2.msra.mxu0 0.0
        %2736 = vmatprep.subr.mxu0 0.0
        %2737 = vmatpush2.msra.mxu0 0.0
        %2738 = vmatprep.subr.mxu0 0.0
        %2739 = vmatpush2.msra.mxu0 0.0
        %2740 = vmatprep.mubr.f32.mxu0 0.0
        %2741 = vmatmul.mubr.f32.gmra.mxu0 %v2674
        %v2742 = vpop.f32.mrf.mxu0
        %v2743 = vadd.f32 0.0, %v2742
        %v2744 = vpop.f32.mrf.mxu0
        %2745 = vdwg.mxu0
        %v2747 = vsel %vm2292, %v2378, 0
        %2749 = vmatprep.subr.mxu0 0.0
        %2750 = vmatpush1.msra.mxu0 0.0
        %2751 = vmatprep.subr.mxu0 0.0
        %2752 = vmatpush1.msra.mxu0 0.0
        %2753 = vmatprep.subr.mxu0 0.0
        %2754 = vmatpush1.msra.mxu0 0.0
        %2755 = vmatprep.subr.mxu0 0.0
        %2756 = vmatpush1.msra.mxu0 0.0
        %2757 = vmatprep.subr.mxu0 0.0
        %2758 = vmatpush1.msra.mxu0 0.0
        %2759 = vmatprep.subr.mxu0 0.0
        %2760 = vmatpush1.msra.mxu0 0.0
        %2761 = vmatprep.subr.mxu0 0.0
        %2762 = vmatpush1.msra.mxu0 0.0
        %2763 = vmatprep.subr.mxu0 0.0
        %2764 = vmatpush1.msra.mxu0 0.0
        %2765 = vmatprep.subr.mxu0 0.0
        %2766 = vmatpush1.msra.mxu0 0.0
        %2767 = vmatprep.subr.mxu0 0.0
        %2768 = vmatpush1.msra.mxu0 0.0
        %2769 = vmatprep.subr.mxu0 0.0
        %2770 = vmatpush1.msra.mxu0 0.0
        %2771 = vmatprep.subr.mxu0 0.0
        %2772 = vmatpush1.msra.mxu0 0.0
        %2773 = vmatprep.subr.mxu0 0.0
        %2774 = vmatpush1.msra.mxu0 0.0
        %2775 = vmatprep.subr.mxu0 0.0
        %2776 = vmatpush1.msra.mxu0 0.0
        %2777 = vmatprep.subr.mxu0 0.0
        %2778 = vmatpush1.msra.mxu0 0.0
        %2779 = vmatprep.subr.mxu0 0.0
        %2780 = vmatpush1.msra.mxu0 %v1672
        %2781 = vmatprep.subr.mxu0 0.0
        %2782 = vmatpush2.msra.mxu0 0.0
        %2783 = vmatprep.subr.mxu0 0.0
        %2784 = vmatpush2.msra.mxu0 0.0
        %2785 = vmatprep.subr.mxu0 0.0
        %2786 = vmatpush2.msra.mxu0 0.0
        %2787 = vmatprep.subr.mxu0 0.0
        %2788 = vmatpush2.msra.mxu0 0.0
        %2789 = vmatprep.subr.mxu0 0.0
        %2790 = vmatpush2.msra.mxu0 0.0
        %2791 = vmatprep.subr.mxu0 0.0
        %2792 = vmatpush2.msra.mxu0 0.0
        %2793 = vmatprep.subr.mxu0 0.0
        %2794 = vmatpush2.msra.mxu0 0.0
        %2795 = vmatprep.subr.mxu0 0.0
        %2796 = vmatpush2.msra.mxu0 0.0
        %2797 = vmatprep.subr.mxu0 0.0
        %2798 = vmatpush2.msra.mxu0 0.0
        %2799 = vmatprep.subr.mxu0 0.0
        %2800 = vmatpush2.msra.mxu0 0.0
        %2801 = vmatprep.subr.mxu0 0.0
        %2802 = vmatpush2.msra.mxu0 0.0
        %2803 = vmatprep.subr.mxu0 0.0
        %2804 = vmatpush2.msra.mxu0 0.0
        %2805 = vmatprep.subr.mxu0 0.0
        %2806 = vmatpush2.msra.mxu0 0.0
        %2807 = vmatprep.subr.mxu0 0.0
        %2808 = vmatpush2.msra.mxu0 0.0
        %2809 = vmatprep.subr.mxu0 0.0
        %2810 = vmatpush2.msra.mxu0 0.0
        %2811 = vmatprep.subr.mxu0 0.0
        %2812 = vmatpush2.msra.mxu0 0.0
        %2813 = vmatprep.mubr.f32.mxu0 0.0
        %2814 = vmatmul.mubr.f32.gmra.mxu0 %v2747
        %v2815 = vpop.f32.mrf.mxu0
        %v2816 = vadd.f32 0.0, %v2815
        %v2817 = vpop.f32.mrf.mxu0
        %2818 = vdwg.mxu0
        %v2820 = vsel %vm2292, %v2379, 0
        %2822 = vmatprep.subr.mxu0 0.0
        %2823 = vmatpush1.msra.mxu0 0.0
        %2824 = vmatprep.subr.mxu0 0.0
        %2825 = vmatpush1.msra.mxu0 0.0
        %2826 = vmatprep.subr.mxu0 0.0
        %2827 = vmatpush1.msra.mxu0 0.0
        %2828 = vmatprep.subr.mxu0 0.0
        %2829 = vmatpush1.msra.mxu0 0.0
        %2830 = vmatprep.subr.mxu0 0.0
        %2831 = vmatpush1.msra.mxu0 0.0
        %2832 = vmatprep.subr.mxu0 0.0
        %2833 = vmatpush1.msra.mxu0 0.0
        %2834 = vmatprep.subr.mxu0 0.0
        %2835 = vmatpush1.msra.mxu0 0.0
        %2836 = vmatprep.subr.mxu0 0.0
        %2837 = vmatpush1.msra.mxu0 0.0
        %2838 = vmatprep.subr.mxu0 0.0
        %2839 = vmatpush1.msra.mxu0 0.0
        %2840 = vmatprep.subr.mxu0 0.0
        %2841 = vmatpush1.msra.mxu0 0.0
        %2842 = vmatprep.subr.mxu0 0.0
        %2843 = vmatpush1.msra.mxu0 0.0
        %2844 = vmatprep.subr.mxu0 0.0
        %2845 = vmatpush1.msra.mxu0 0.0
        %2846 = vmatprep.subr.mxu0 0.0
        %2847 = vmatpush1.msra.mxu0 0.0
        %2848 = vmatprep.subr.mxu0 0.0
        %2849 = vmatpush1.msra.mxu0 0.0
        %2850 = vmatprep.subr.mxu0 0.0
        %2851 = vmatpush1.msra.mxu0 0.0
        %2852 = vmatprep.subr.mxu0 0.0
        %2853 = vmatpush1.msra.mxu0 %v1673
        %2854 = vmatprep.subr.mxu0 0.0
        %2855 = vmatpush2.msra.mxu0 0.0
        %2856 = vmatprep.subr.mxu0 0.0
        %2857 = vmatpush2.msra.mxu0 0.0
        %2858 = vmatprep.subr.mxu0 0.0
        %2859 = vmatpush2.msra.mxu0 0.0
        %2860 = vmatprep.subr.mxu0 0.0
        %2861 = vmatpush2.msra.mxu0 0.0
        %2862 = vmatprep.subr.mxu0 0.0
        %2863 = vmatpush2.msra.mxu0 0.0
        %2864 = vmatprep.subr.mxu0 0.0
        %2865 = vmatpush2.msra.mxu0 0.0
        %2866 = vmatprep.subr.mxu0 0.0
        %2867 = vmatpush2.msra.mxu0 0.0
        %2868 = vmatprep.subr.mxu0 0.0
        %2869 = vmatpush2.msra.mxu0 0.0
        %2870 = vmatprep.subr.mxu0 0.0
        %2871 = vmatpush2.msra.mxu0 0.0
        %2872 = vmatprep.subr.mxu0 0.0
        %2873 = vmatpush2.msra.mxu0 0.0
        %2874 = vmatprep.subr.mxu0 0.0
        %2875 = vmatpush2.msra.mxu0 0.0
        %2876 = vmatprep.subr.mxu0 0.0
        %2877 = vmatpush2.msra.mxu0 0.0
        %2878 = vmatprep.subr.mxu0 0.0
        %2879 = vmatpush2.msra.mxu0 0.0
        %2880 = vmatprep.subr.mxu0 0.0
        %2881 = vmatpush2.msra.mxu0 0.0
        %2882 = vmatprep.subr.mxu0 0.0
        %2883 = vmatpush2.msra.mxu0 0.0
        %2884 = vmatprep.subr.mxu0 0.0
        %2885 = vmatpush2.msra.mxu0 0.0
        %2886 = vmatprep.mubr.f32.mxu0 0.0
        %2887 = vmatmul.mubr.f32.gmra.mxu0 %v2820
        %v2888 = vpop.f32.mrf.mxu0
        %v2889 = vadd.f32 0.0, %v2888
        %v2890 = vpop.f32.mrf.mxu0
        %2891 = vdwg.mxu0
        %v2893 = vsel %vm2292, %v2380, 0
        %2895 = vmatprep.subr.mxu0 0.0
        %2896 = vmatpush1.msra.mxu0 0.0
        %2897 = vmatprep.subr.mxu0 0.0
        %2898 = vmatpush1.msra.mxu0 0.0
        %2899 = vmatprep.subr.mxu0 0.0
        %2900 = vmatpush1.msra.mxu0 0.0
        %2901 = vmatprep.subr.mxu0 0.0
        %2902 = vmatpush1.msra.mxu0 0.0
        %2903 = vmatprep.subr.mxu0 0.0
        %2904 = vmatpush1.msra.mxu0 0.0
        %2905 = vmatprep.subr.mxu0 0.0
        %2906 = vmatpush1.msra.mxu0 0.0
        %2907 = vmatprep.subr.mxu0 0.0
        %2908 = vmatpush1.msra.mxu0 0.0
        %2909 = vmatprep.subr.mxu0 0.0
        %2910 = vmatpush1.msra.mxu0 0.0
        %2911 = vmatprep.subr.mxu0 0.0
        %2912 = vmatpush1.msra.mxu0 0.0
        %2913 = vmatprep.subr.mxu0 0.0
        %2914 = vmatpush1.msra.mxu0 0.0
        %2915 = vmatprep.subr.mxu0 0.0
        %2916 = vmatpush1.msra.mxu0 0.0
        %2917 = vmatprep.subr.mxu0 0.0
        %2918 = vmatpush1.msra.mxu0 0.0
        %2919 = vmatprep.subr.mxu0 0.0
        %2920 = vmatpush1.msra.mxu0 0.0
        %2921 = vmatprep.subr.mxu0 0.0
        %2922 = vmatpush1.msra.mxu0 0.0
        %2923 = vmatprep.subr.mxu0 0.0
        %2924 = vmatpush1.msra.mxu0 0.0
        %2925 = vmatprep.subr.mxu0 0.0
        %2926 = vmatpush1.msra.mxu0 %v1674
        %2927 = vmatprep.subr.mxu0 0.0
        %2928 = vmatpush2.msra.mxu0 0.0
        %2929 = vmatprep.subr.mxu0 0.0
        %2930 = vmatpush2.msra.mxu0 0.0
        %2931 = vmatprep.subr.mxu0 0.0
        %2932 = vmatpush2.msra.mxu0 0.0
        %2933 = vmatprep.subr.mxu0 0.0
        %2934 = vmatpush2.msra.mxu0 0.0
        %2935 = vmatprep.subr.mxu0 0.0
        %2936 = vmatpush2.msra.mxu0 0.0
        %2937 = vmatprep.subr.mxu0 0.0
        %2938 = vmatpush2.msra.mxu0 0.0
        %2939 = vmatprep.subr.mxu0 0.0
        %2940 = vmatpush2.msra.mxu0 0.0
        %2941 = vmatprep.subr.mxu0 0.0
        %2942 = vmatpush2.msra.mxu0 0.0
        %2943 = vmatprep.subr.mxu0 0.0
        %2944 = vmatpush2.msra.mxu0 0.0
        %2945 = vmatprep.subr.mxu0 0.0
        %2946 = vmatpush2.msra.mxu0 0.0
        %2947 = vmatprep.subr.mxu0 0.0
        %2948 = vmatpush2.msra.mxu0 0.0
        %2949 = vmatprep.subr.mxu0 0.0
        %2950 = vmatpush2.msra.mxu0 0.0
        %2951 = vmatprep.subr.mxu0 0.0
        %2952 = vmatpush2.msra.mxu0 0.0
        %2953 = vmatprep.subr.mxu0 0.0
        %2954 = vmatpush2.msra.mxu0 0.0
        %2955 = vmatprep.subr.mxu0 0.0
        %2956 = vmatpush2.msra.mxu0 0.0
        %2957 = vmatprep.subr.mxu0 0.0
        %2958 = vmatpush2.msra.mxu0 0.0
        %2959 = vmatprep.mubr.f32.mxu0 0.0
        %2960 = vmatmul.mubr.f32.gmra.mxu0 %v2893
        %v2961 = vpop.f32.mrf.mxu0
        %v2962 = vadd.f32 0.0, %v2961
        %v2963 = vpop.f32.mrf.mxu0
        %2964 = vdwg.mxu0
        %v2965 = vcombine.low %v2451, %v2597
        %v2966 = vcombine.high %v2451, %v2597
        %v2968 = vunpack.c.l.s4 1983009808
        %v2969 = vunpack.c.0.s8 %v2968
        %v2970 = vlaneseq
        %v2971 = vshrl.u32 %v2970, 7
        %v2972 = vsub.s32 %v2969, %v2971
        %v2973 = vrot.slane %v2965, %v2972
        %v2975 = vunpack.c.l.s4 1983009808
        %v2976 = vunpack.c.0.s8 %v2975
        %v2977 = vlaneseq
        %v2978 = vshrl.u32 %v2977, 7
        %v2979 = vsub.s32 %v2976, %v2978
        %v2980 = vrot.slane %v2966, %v2979
        %v2981 = vcombine.low %v2524, %v2670
        %v2982 = vcombine.high %v2524, %v2670
        %v2984 = vunpack.c.l.s4 1983009808
        %v2985 = vunpack.c.0.s8 %v2984
        %v2986 = vlaneseq
        %v2987 = vshrl.u32 %v2986, 7
        %v2988 = vsub.s32 %v2985, %v2987
        %v2989 = vrot.slane %v2981, %v2988
        %v2991 = vunpack.c.l.s4 1983009808
        %v2992 = vunpack.c.0.s8 %v2991
        %v2993 = vlaneseq
        %v2994 = vshrl.u32 %v2993, 7
        %v2995 = vsub.s32 %v2992, %v2994
        %v2996 = vrot.slane %v2982, %v2995
        %v2997 = vcombine.low %v2973, %v2989
        %v2998 = vcombine.high %v2973, %v2989
        %v3000 = vunpack.c.l.s4 1934713408
        %v3001 = vunpack.c.0.s8 %v3000
        %v3002 = vlaneseq
        %v3003 = vshrl.u32 %v3002, 7
        %v3004 = vsub.s32 %v3001, %v3003
        %v3005 = vrot.slane %v2997, %v3004
        %v3007 = vunpack.c.l.s4 1934713408
        %v3008 = vunpack.c.0.s8 %v3007
        %v3009 = vlaneseq
        %v3010 = vshrl.u32 %v3009, 7
        %v3011 = vsub.s32 %v3008, %v3010
        %v3012 = vrot.slane %v2998, %v3011
        %v3013 = vcombine.low %v2980, %v2996
        %v3014 = vcombine.high %v2980, %v2996
        %v3016 = vunpack.c.l.s4 1934713408
        %v3017 = vunpack.c.0.s8 %v3016
        %v3018 = vlaneseq
        %v3019 = vshrl.u32 %v3018, 7
        %v3020 = vsub.s32 %v3017, %v3019
        %v3021 = vrot.slane %v3013, %v3020
        %v3023 = vunpack.c.l.s4 1934713408
        %v3024 = vunpack.c.0.s8 %v3023
        %v3025 = vlaneseq
        %v3026 = vshrl.u32 %v3025, 7
        %v3027 = vsub.s32 %v3024, %v3026
        %v3028 = vrot.slane %v3014, %v3027
        %v3029 = vcombine.high %v3005, 0.0
        %v3030 = vcombine.high %v3012, 0.0
        %v3031 = vcombine.high %v3021, 0.0
        %v3032 = vcombine.high %v3028, 0.0
        %v3033 = vcombine.low %v2743, %v2889
        %v3034 = vcombine.high %v2743, %v2889
        %v3036 = vunpack.c.l.s4 1983009808
        %v3037 = vunpack.c.0.s8 %v3036
        %v3038 = vlaneseq
        %v3039 = vshrl.u32 %v3038, 7
        %v3040 = vsub.s32 %v3037, %v3039
        %v3041 = vrot.slane %v3033, %v3040
        %v3043 = vunpack.c.l.s4 1983009808
        %v3044 = vunpack.c.0.s8 %v3043
        %v3045 = vlaneseq
        %v3046 = vshrl.u32 %v3045, 7
        %v3047 = vsub.s32 %v3044, %v3046
        %v3048 = vrot.slane %v3034, %v3047
        %v3049 = vcombine.low %v2816, %v2962
        %v3050 = vcombine.high %v2816, %v2962
        %v3052 = vunpack.c.l.s4 1983009808
        %v3053 = vunpack.c.0.s8 %v3052
        %v3054 = vlaneseq
        %v3055 = vshrl.u32 %v3054, 7
        %v3056 = vsub.s32 %v3053, %v3055
        %v3057 = vrot.slane %v3049, %v3056
        %v3059 = vunpack.c.l.s4 1983009808
        %v3060 = vunpack.c.0.s8 %v3059
        %v3061 = vlaneseq
        %v3062 = vshrl.u32 %v3061, 7
        %v3063 = vsub.s32 %v3060, %v3062
        %v3064 = vrot.slane %v3050, %v3063
        %v3065 = vcombine.low %v3041, %v3057
        %v3066 = vcombine.high %v3041, %v3057
        %v3068 = vunpack.c.l.s4 1934713408
        %v3069 = vunpack.c.0.s8 %v3068
        %v3070 = vlaneseq
        %v3071 = vshrl.u32 %v3070, 7
        %v3072 = vsub.s32 %v3069, %v3071
        %v3073 = vrot.slane %v3065, %v3072
        %v3075 = vunpack.c.l.s4 1934713408
        %v3076 = vunpack.c.0.s8 %v3075
        %v3077 = vlaneseq
        %v3078 = vshrl.u32 %v3077, 7
        %v3079 = vsub.s32 %v3076, %v3078
        %v3080 = vrot.slane %v3066, %v3079
        %v3081 = vcombine.low %v3048, %v3064
        %v3082 = vcombine.high %v3048, %v3064
        %v3084 = vunpack.c.l.s4 1934713408
        %v3085 = vunpack.c.0.s8 %v3084
        %v3086 = vlaneseq
        %v3087 = vshrl.u32 %v3086, 7
        %v3088 = vsub.s32 %v3085, %v3087
        %v3089 = vrot.slane %v3081, %v3088
        %v3091 = vunpack.c.l.s4 1934713408
        %v3092 = vunpack.c.0.s8 %v3091
        %v3093 = vlaneseq
        %v3094 = vshrl.u32 %v3093, 7
        %v3095 = vsub.s32 %v3092, %v3094
        %v3096 = vrot.slane %v3082, %v3095
        %v3097 = vcombine.high %v3073, 0.0
        %v3098 = vcombine.high %v3080, 0.0
        %v3099 = vcombine.high %v3089, 0.0
        %v3100 = vcombine.high %v3096, 0.0
        %v3101 = vcombine.low %v3005, %v3012
        %v3103 = vunpack.c.l.s4 1983009808
        %v3104 = vunpack.c.0.s8 %v3103
        %v3105 = vlaneseq
        %v3106 = vshrl.u32 %v3105, 7
        %v3107 = vsub.s32 %v3104, %v3106
        %v3108 = vrot.slane %v3101, %v3107
        %v3109 = vcombine.low %v3029, %v3030
        %v3111 = vunpack.c.l.s4 1983009808
        %v3112 = vunpack.c.0.s8 %v3111
        %v3113 = vlaneseq
        %v3114 = vshrl.u32 %v3113, 7
        %v3115 = vsub.s32 %v3112, %v3114
        %v3116 = vrot.slane %v3109, %v3115
        %v3117 = vcombine.low %v3021, %v3028
        %v3119 = vunpack.c.l.s4 1983009808
        %v3120 = vunpack.c.0.s8 %v3119
        %v3121 = vlaneseq
        %v3122 = vshrl.u32 %v3121, 7
        %v3123 = vsub.s32 %v3120, %v3122
        %v3124 = vrot.slane %v3117, %v3123
        %v3125 = vcombine.low %v3031, %v3032
        %v3127 = vunpack.c.l.s4 1983009808
        %v3128 = vunpack.c.0.s8 %v3127
        %v3129 = vlaneseq
        %v3130 = vshrl.u32 %v3129, 7
        %v3131 = vsub.s32 %v3128, %v3130
        %v3132 = vrot.slane %v3125, %v3131
        %v3133 = vcombine.low %v3108, %v3116
        %v3134 = vcombine.high %v3108, %v3116
        %v3136 = vunpack.c.l.s4 1934713408
        %v3137 = vunpack.c.0.s8 %v3136
        %v3138 = vlaneseq
        %v3139 = vshrl.u32 %v3138, 7
        %v3140 = vsub.s32 %v3137, %v3139
        %v3141 = vrot.slane %v3133, %v3140
        %v3143 = vunpack.c.l.s4 1934713408
        %v3144 = vunpack.c.0.s8 %v3143
        %v3145 = vlaneseq
        %v3146 = vshrl.u32 %v3145, 7
        %v3147 = vsub.s32 %v3144, %v3146
        %v3148 = vrot.slane %v3134, %v3147
        %v3149 = vcombine.low %v3124, %v3132
        %v3150 = vcombine.high %v3124, %v3132
        %v3152 = vunpack.c.l.s4 1934713408
        %v3153 = vunpack.c.0.s8 %v3152
        %v3154 = vlaneseq
        %v3155 = vshrl.u32 %v3154, 7
        %v3156 = vsub.s32 %v3153, %v3155
        %v3157 = vrot.slane %v3149, %v3156
        %v3159 = vunpack.c.l.s4 1934713408
        %v3160 = vunpack.c.0.s8 %v3159
        %v3161 = vlaneseq
        %v3162 = vshrl.u32 %v3161, 7
        %v3163 = vsub.s32 %v3160, %v3162
        %v3164 = vrot.slane %v3150, %v3163
        %v3165 = vcombine.low %v3141, %v3157
        %v3166 = vcombine.high %v3141, %v3157
        %v3167 = vcombine.low %v3148, %v3164
        %v3168 = vcombine.high %v3148, %v3164
        %v3169 = vcombine.low %v3073, %v3080
        %v3171 = vunpack.c.l.s4 1983009808
        %v3172 = vunpack.c.0.s8 %v3171
        %v3173 = vlaneseq
        %v3174 = vshrl.u32 %v3173, 7
        %v3175 = vsub.s32 %v3172, %v3174
        %v3176 = vrot.slane %v3169, %v3175
        %v3177 = vcombine.low %v3097, %v3098
        %v3179 = vunpack.c.l.s4 1983009808
        %v3180 = vunpack.c.0.s8 %v3179
        %v3181 = vlaneseq
        %v3182 = vshrl.u32 %v3181, 7
        %v3183 = vsub.s32 %v3180, %v3182
        %v3184 = vrot.slane %v3177, %v3183
        %v3185 = vcombine.low %v3089, %v3096
        %v3187 = vunpack.c.l.s4 1983009808
        %v3188 = vunpack.c.0.s8 %v3187
        %v3189 = vlaneseq
        %v3190 = vshrl.u32 %v3189, 7
        %v3191 = vsub.s32 %v3188, %v3190
        %v3192 = vrot.slane %v3185, %v3191
        %v3193 = vcombine.low %v3099, %v3100
        %v3195 = vunpack.c.l.s4 1983009808
        %v3196 = vunpack.c.0.s8 %v3195
        %v3197 = vlaneseq
        %v3198 = vshrl.u32 %v3197, 7
        %v3199 = vsub.s32 %v3196, %v3198
        %v3200 = vrot.slane %v3193, %v3199
        %v3201 = vcombine.low %v3176, %v3184
        %v3202 = vcombine.high %v3176, %v3184
        %v3204 = vunpack.c.l.s4 1934713408
        %v3205 = vunpack.c.0.s8 %v3204
        %v3206 = vlaneseq
        %v3207 = vshrl.u32 %v3206, 7
        %v3208 = vsub.s32 %v3205, %v3207
        %v3209 = vrot.slane %v3201, %v3208
        %v3211 = vunpack.c.l.s4 1934713408
        %v3212 = vunpack.c.0.s8 %v3211
        %v3213 = vlaneseq
        %v3214 = vshrl.u32 %v3213, 7
        %v3215 = vsub.s32 %v3212, %v3214
        %v3216 = vrot.slane %v3202, %v3215
        %v3217 = vcombine.low %v3192, %v3200
        %v3218 = vcombine.high %v3192, %v3200
        %v3220 = vunpack.c.l.s4 1934713408
        %v3221 = vunpack.c.0.s8 %v3220
        %v3222 = vlaneseq
        %v3223 = vshrl.u32 %v3222, 7
        %v3224 = vsub.s32 %v3221, %v3223
        %v3225 = vrot.slane %v3217, %v3224
        %v3227 = vunpack.c.l.s4 1934713408
        %v3228 = vunpack.c.0.s8 %v3227
        %v3229 = vlaneseq
        %v3230 = vshrl.u32 %v3229, 7
        %v3231 = vsub.s32 %v3228, %v3230
        %v3232 = vrot.slane %v3218, %v3231
        %v3233 = vcombine.low %v3209, %v3225
        %v3234 = vcombine.high %v3209, %v3225
        %v3235 = vcombine.low %v3216, %v3232
        %v3236 = vcombine.high %v3216, %v3232
        %3239 = vrot.lane.b32.xlu0 %v3166, 32
        %v3240 = vpop.permute.xlu0 %3239
        %3241 = vrot.lane.b32.xlu0 %v3234, 32
        %v3242 = vpop.permute.xlu0 %3241
        %3247 = vrot.lane.b32.xlu0 %v3167, 64
        %v3248 = vpop.permute.xlu0 %3247
        %3249 = vrot.lane.b32.xlu0 %v3235, 64
        %v3250 = vpop.permute.xlu0 %3249
        %3255 = vrot.lane.b32.xlu0 %v3168, 96
        %v3256 = vpop.permute.xlu0 %3255
        %3257 = vrot.lane.b32.xlu0 %v3236, 96
        %v3258 = vpop.permute.xlu0 %3257
        %v3261 = vsel %vm1683, %v3165, %v3240
        %v3262 = vsel %vm1683, %v3233, %v3242
        %vm3263 = vcmask 523264
        %v3264 = vsel %vm3263, %v3261, %v3248
        %v3265 = vsel %vm3263, %v3262, %v3250
        %vm3266 = vcmask 785408
        %v3267 = vsel %vm3266, %v3264, %v3256
        %v3268 = vsel %vm3266, %v3265, %v3258
        %v3269 = vpack.c.bf16 %v3268, %v3267
        %v3270 = vlaneseq
        %v3271 = vshrl.u32 %v3270, 7
        %v3272 = vsub.s32 3, %v3271
        %v3273 = vrot.slane %v556, %v3272
        %v3290 = vunpack.c.l.b16 %v476
        %v3291 = vunpack.c.l.b16 %v477
        %v3292 = vunpack.c.l.b16 %v478
        %v3293 = vunpack.c.l.b16 %v479
        %v3294 = vunpack.c.l.b16 %v480
        %v3295 = vunpack.c.l.b16 %v481
        %v3296 = vunpack.c.l.b16 %v482
        %v3297 = vunpack.c.l.b16 %v483
        %v3298 = vunpack.c.l.b16 %v484
        %v3299 = vunpack.c.l.b16 %v485
        %v3300 = vunpack.c.l.b16 %v486
        %v3301 = vunpack.c.l.b16 %v487
        %v3302 = vunpack.c.l.b16 %v488
        %v3303 = vunpack.c.l.b16 %v489
        %v3304 = vunpack.c.l.b16 %v490
        %v3305 = vunpack.c.l.b16 %v491
        %v3306 = vpack.c.b16 %v3291, %v3290
        %v3307 = vpack.c.b16 %v3293, %v3292
        %v3308 = vpack.c.b16 %v3295, %v3294
        %v3309 = vpack.c.b16 %v3297, %v3296
        %v3310 = vpack.c.b16 %v3299, %v3298
        %v3311 = vpack.c.b16 %v3301, %v3300
        %v3312 = vpack.c.b16 %v3303, %v3302
        %v3313 = vpack.c.b16 %v3305, %v3304
        %3322 = vmatprep.subr.bf16.mxu0 0
        %3323 = vmatpush1.bf16.msra.mxu0 %v3313
        %3324 = vmatprep.subr.bf16.mxu0 0
        %3325 = vmatpush1.bf16.msra.mxu0 %v3312
        %3326 = vmatprep.subr.bf16.mxu0 0
        %3327 = vmatpush1.bf16.msra.mxu0 %v3311
        %3328 = vmatprep.subr.bf16.mxu0 0
        %3329 = vmatpush1.bf16.msra.mxu0 %v3310
        %3330 = vmatprep.subr.bf16.mxu0 0
        %3331 = vmatpush1.bf16.msra.mxu0 %v3309
        %3332 = vmatprep.subr.bf16.mxu0 0
        %3333 = vmatpush1.bf16.msra.mxu0 %v3308
        %3334 = vmatprep.subr.bf16.mxu0 0
        %3335 = vmatpush1.bf16.msra.mxu0 %v3307
        %3336 = vmatprep.subr.bf16.mxu0 0
        %3337 = vmatpush1.bf16.msra.mxu0 %v3306
        %3338 = vmatprep.subr.bf16.mxu0 0
        %3339 = vmatpush2.bf16.msra.mxu0 0
        %3340 = vmatprep.subr.bf16.mxu0 0
        %3341 = vmatpush2.bf16.msra.mxu0 0
        %3342 = vmatprep.subr.bf16.mxu0 0
        %3343 = vmatpush2.bf16.msra.mxu0 0
        %3344 = vmatprep.subr.bf16.mxu0 0
        %3345 = vmatpush2.bf16.msra.mxu0 0
        %3346 = vmatprep.subr.bf16.mxu0 0
        %3347 = vmatpush2.bf16.msra.mxu0 0
        %3348 = vmatprep.subr.bf16.mxu0 0
        %3349 = vmatpush2.bf16.msra.mxu0 0
        %3350 = vmatprep.subr.bf16.mxu0 0
        %3351 = vmatpush2.bf16.msra.mxu0 0
        %3352 = vmatprep.subr.bf16.mxu0 0
        %3353 = vmatpush2.bf16.msra.mxu0 0
        %3354 = vmatprep.mubr.bf16.mxu0 0
        %3355 = vmatmul.mubr.bf16.gmra.mxu0 %v3269
        %v3356 = vpop.f32.mrf.mxu0
        %v3357 = vadd.f32 %v3273, %v3356
        %v3358 = vpop.f32.mrf.mxu0
        %v3359 = vpop.f32.mrf.mxu0
        %v3360 = vadd.f32 %v3273, %v3359
        %v3361 = vpop.f32.mrf.mxu0
        %3362 = vdwg.mxu0
        %v3363 = vadd.f32 %v410, %v3357
        %v3364 = vadd.f32 %v411, %v3360
        %3365 = vadd.xlane.f32.xlu0 %v3363
        %v3366 = vpop.xlane.xlu0 %3365
        %3367 = vadd.xlane.f32.xlu0 %v3364
        %v3368 = vpop.xlane.xlu0 %3367
        %v3369 = vrcp.pop 128.0
        %v3370 = vmul.f32 %v3366, %v3369
        %v3371 = vmul.f32 %v3368, %v3369
        %v3372 = vsub.f32 %v3363, %v3370
        %v3373 = vsub.f32 %v3364, %v3371
        %v3374 = vmul.f32 %v3372, %v3372
        %v3375 = vmul.f32 %v3373, %v3373
        %3376 = vadd.xlane.f32.xlu0 %v3374
        %v3377 = vpop.xlane.xlu0 %3376
        %3378 = vadd.xlane.f32.xlu0 %v3375
        %v3379 = vpop.xlane.xlu0 %3378
        %v3380 = vmul.f32 %v3377, %v3369
        %v3381 = vmul.f32 %v3379, %v3369
        %v3382 = vadd.f32 %v3380, 1e-05
        %v3383 = vadd.f32 %v3381, 1e-05
        %v3384 = vrsqrt.pop %v3382
        %v3385 = vrsqrt.pop %v3383
        %v3386 = vmul.f32 %v3372, %v3384
        %v3387 = vmul.f32 %v3373, %v3385
        %v3388 = vlaneseq
        %v3389 = vshrl.u32 %v3388, 7
        %v3390 = vsub.s32 5, %v3389
        %v3391 = vrot.slane %v556, %v3390
        %v3392 = vmul.f32 %v3386, %v3391
        %v3393 = vmul.f32 %v3387, %v3391
        %v3394 = vlaneseq
        %v3395 = vshrl.u32 %v3394, 7
        %v3396 = vsub.s32 6, %v3395
        %v3397 = vrot.slane %v556, %v3396
        %v3398 = vadd.f32 %v3392, %v3397
        %v3399 = vadd.f32 %v3393, %v3397
        %v3400 = vpack.c.bf16 %v3399, %v3398
        %v3402 = vlaneseq
        %v3403 = vshrl.u32 %v3402, 7
        %v3404 = vsub.s32 0, %v3403
        %v3405 = vrot.slane %v567, %v3404
        %v3406 = vlaneseq
        %v3407 = vshrl.u32 %v3406, 7
        %v3408 = vsub.s32 2, %v3407
        %v3409 = vrot.slane %v567, %v3408
        %v3410 = vlaneseq
        %v3411 = vshrl.u32 %v3410, 7
        %v3412 = vsub.s32 4, %v3411
        %v3413 = vrot.slane %v567, %v3412
        %v3414 = vlaneseq
        %v3415 = vshrl.u32 %v3414, 7
        %v3416 = vsub.s32 6, %v3415
        %v3417 = vrot.slane %v567, %v3416
        %v3422 = vlaneseq
        %v3423 = vshrl.u32 %v3422, 7
        %v3424 = vsub.s32 0, %v3423
        %v3425 = vrot.slane %v3405, %v3424
        %v3426 = vlaneseq
        %v3427 = vshrl.u32 %v3426, 7
        %v3428 = vsub.s32 0, %v3427
        %v3429 = vrot.slane %v3409, %v3428
        %v3430 = vlaneseq
        %v3431 = vshrl.u32 %v3430, 7
        %v3432 = vsub.s32 0, %v3431
        %v3433 = vrot.slane %v3413, %v3432
        %v3434 = vlaneseq
        %v3435 = vshrl.u32 %v3434, 7
        %v3436 = vsub.s32 0, %v3435
        %v3437 = vrot.slane %v3417, %v3436
        %v3470 = vunpack.c.l.b16 %v444
        %v3471 = vunpack.c.h.b16 %v444
        %v3472 = vunpack.c.l.b16 %v445
        %v3473 = vunpack.c.h.b16 %v445
        %v3474 = vunpack.c.l.b16 %v446
        %v3475 = vunpack.c.h.b16 %v446
        %v3476 = vunpack.c.l.b16 %v447
        %v3477 = vunpack.c.h.b16 %v447
        %v3478 = vunpack.c.l.b16 %v448
        %v3479 = vunpack.c.h.b16 %v448
        %v3480 = vunpack.c.l.b16 %v449
        %v3481 = vunpack.c.h.b16 %v449
        %v3482 = vunpack.c.l.b16 %v450
        %v3483 = vunpack.c.h.b16 %v450
        %v3484 = vunpack.c.l.b16 %v451
        %v3485 = vunpack.c.h.b16 %v451
        %v3486 = vunpack.c.l.b16 %v452
        %v3487 = vunpack.c.h.b16 %v452
        %v3488 = vunpack.c.l.b16 %v453
        %v3489 = vunpack.c.h.b16 %v453
        %v3490 = vunpack.c.l.b16 %v454
        %v3491 = vunpack.c.h.b16 %v454
        %v3492 = vunpack.c.l.b16 %v455
        %v3493 = vunpack.c.h.b16 %v455
        %v3494 = vunpack.c.l.b16 %v456
        %v3495 = vunpack.c.h.b16 %v456
        %v3496 = vunpack.c.l.b16 %v457
        %v3497 = vunpack.c.h.b16 %v457
        %v3498 = vunpack.c.l.b16 %v458
        %v3499 = vunpack.c.h.b16 %v458
        %v3500 = vunpack.c.l.b16 %v459
        %v3501 = vunpack.c.h.b16 %v459
        %v3502 = vunpack.c.l.b16 %v460
        %v3503 = vunpack.c.h.b16 %v460
        %v3504 = vunpack.c.l.b16 %v461
        %v3505 = vunpack.c.h.b16 %v461
        %v3506 = vunpack.c.l.b16 %v462
        %v3507 = vunpack.c.h.b16 %v462
        %v3508 = vunpack.c.l.b16 %v463
        %v3509 = vunpack.c.h.b16 %v463
        %v3510 = vunpack.c.l.b16 %v464
        %v3511 = vunpack.c.h.b16 %v464
        %v3512 = vunpack.c.l.b16 %v465
        %v3513 = vunpack.c.h.b16 %v465
        %v3514 = vunpack.c.l.b16 %v466
        %v3515 = vunpack.c.h.b16 %v466
        %v3516 = vunpack.c.l.b16 %v467
        %v3517 = vunpack.c.h.b16 %v467
        %v3518 = vunpack.c.l.b16 %v468
        %v3519 = vunpack.c.h.b16 %v468
        %v3520 = vunpack.c.l.b16 %v469
        %v3521 = vunpack.c.h.b16 %v469
        %v3522 = vunpack.c.l.b16 %v470
        %v3523 = vunpack.c.h.b16 %v470
        %v3524 = vunpack.c.l.b16 %v471
        %v3525 = vunpack.c.h.b16 %v471
        %v3526 = vunpack.c.l.b16 %v472
        %v3527 = vunpack.c.h.b16 %v472
        %v3528 = vunpack.c.l.b16 %v473
        %v3529 = vunpack.c.h.b16 %v473
        %v3530 = vunpack.c.l.b16 %v474
        %v3531 = vunpack.c.h.b16 %v474
        %v3532 = vunpack.c.l.b16 %v475
        %v3533 = vunpack.c.h.b16 %v475
        %v3534 = vpack.c.b16 %v3474, %v3470
        %v3535 = vpack.c.b16 %v3475, %v3471
        %v3536 = vpack.c.b16 %v3476, %v3472
        %v3537 = vpack.c.b16 %v3477, %v3473
        %v3538 = vpack.c.b16 %v3482, %v3478
        %v3539 = vpack.c.b16 %v3483, %v3479
        %v3540 = vpack.c.b16 %v3484, %v3480
        %v3541 = vpack.c.b16 %v3485, %v3481
        %v3542 = vpack.c.b16 %v3490, %v3486
        %v3543 = vpack.c.b16 %v3491, %v3487
        %v3544 = vpack.c.b16 %v3492, %v3488
        %v3545 = vpack.c.b16 %v3493, %v3489
        %v3546 = vpack.c.b16 %v3498, %v3494
        %v3547 = vpack.c.b16 %v3499, %v3495
        %v3548 = vpack.c.b16 %v3500, %v3496
        %v3549 = vpack.c.b16 %v3501, %v3497
        %v3550 = vpack.c.b16 %v3506, %v3502
        %v3551 = vpack.c.b16 %v3507, %v3503
        %v3552 = vpack.c.b16 %v3508, %v3504
        %v3553 = vpack.c.b16 %v3509, %v3505
        %v3554 = vpack.c.b16 %v3514, %v3510
        %v3555 = vpack.c.b16 %v3515, %v3511
        %v3556 = vpack.c.b16 %v3516, %v3512
        %v3557 = vpack.c.b16 %v3517, %v3513
        %v3558 = vpack.c.b16 %v3522, %v3518
        %v3559 = vpack.c.b16 %v3523, %v3519
        %v3560 = vpack.c.b16 %v3524, %v3520
        %v3561 = vpack.c.b16 %v3525, %v3521
        %v3562 = vpack.c.b16 %v3530, %v3526
        %v3563 = vpack.c.b16 %v3531, %v3527
        %v3564 = vpack.c.b16 %v3532, %v3528
        %v3565 = vpack.c.b16 %v3533, %v3529
        %3598 = vmatprep.subr.bf16.mxu0 %v3563
        %3599 = vmatpush1.bf16.msra.mxu0 %v3562
        %3600 = vmatprep.subr.bf16.mxu0 %v3559
        %3601 = vmatpush1.bf16.msra.mxu0 %v3558
        %3602 = vmatprep.subr.bf16.mxu0 %v3555
        %3603 = vmatpush1.bf16.msra.mxu0 %v3554
        %3604 = vmatprep.subr.bf16.mxu0 %v3551
        %3605 = vmatpush1.bf16.msra.mxu0 %v3550
        %3606 = vmatprep.subr.bf16.mxu0 %v3547
        %3607 = vmatpush1.bf16.msra.mxu0 %v3546
        %3608 = vmatprep.subr.bf16.mxu0 %v3543
        %3609 = vmatpush1.bf16.msra.mxu0 %v3542
        %3610 = vmatprep.subr.bf16.mxu0 %v3539
        %3611 = vmatpush1.bf16.msra.mxu0 %v3538
        %3612 = vmatprep.subr.bf16.mxu0 %v3535
        %3613 = vmatpush1.bf16.msra.mxu0 %v3534
        %3614 = vmatprep.subr.bf16.mxu0 0
        %3615 = vmatpush2.bf16.msra.mxu0 0
        %3616 = vmatprep.subr.bf16.mxu0 0
        %3617 = vmatpush2.bf16.msra.mxu0 0
        %3618 = vmatprep.subr.bf16.mxu0 0
        %3619 = vmatpush2.bf16.msra.mxu0 0
        %3620 = vmatprep.subr.bf16.mxu0 0
        %3621 = vmatpush2.bf16.msra.mxu0 0
        %3622 = vmatprep.subr.bf16.mxu0 0
        %3623 = vmatpush2.bf16.msra.mxu0 0
        %3624 = vmatprep.subr.bf16.mxu0 0
        %3625 = vmatpush2.bf16.msra.mxu0 0
        %3626 = vmatprep.subr.bf16.mxu0 0
        %3627 = vmatpush2.bf16.msra.mxu0 0
        %3628 = vmatprep.subr.bf16.mxu0 0
        %3629 = vmatpush2.bf16.msra.mxu0 0
        %3630 = vmatprep.mubr.bf16.mxu0 0
        %3631 = vmatmul.mubr.bf16.gmra.mxu0 %v3400
        %v3632 = vpop.f32.mrf.mxu0
        %v3633 = vadd.f32 %v3425, %v3632
        %v3634 = vpop.f32.mrf.mxu0
        %v3635 = vadd.f32 %v3429, %v3634
        %v3636 = vpop.f32.mrf.mxu0
        %v3637 = vadd.f32 %v3425, %v3636
        %v3638 = vpop.f32.mrf.mxu0
        %v3639 = vadd.f32 %v3429, %v3638
        %3640 = vdwg.mxu0
        %3641 = vmatprep.subr.bf16.mxu0 %v3565
        %3642 = vmatpush1.bf16.msra.mxu0 %v3564
        %3643 = vmatprep.subr.bf16.mxu0 %v3561
        %3644 = vmatpush1.bf16.msra.mxu0 %v3560
        %3645 = vmatprep.subr.bf16.mxu0 %v3557
        %3646 = vmatpush1.bf16.msra.mxu0 %v3556
        %3647 = vmatprep.subr.bf16.mxu0 %v3553
        %3648 = vmatpush1.bf16.msra.mxu0 %v3552
        %3649 = vmatprep.subr.bf16.mxu0 %v3549
        %3650 = vmatpush1.bf16.msra.mxu0 %v3548
        %3651 = vmatprep.subr.bf16.mxu0 %v3545
        %3652 = vmatpush1.bf16.msra.mxu0 %v3544
        %3653 = vmatprep.subr.bf16.mxu0 %v3541
        %3654 = vmatpush1.bf16.msra.mxu0 %v3540
        %3655 = vmatprep.subr.bf16.mxu0 %v3537
        %3656 = vmatpush1.bf16.msra.mxu0 %v3536
        %3657 = vmatprep.subr.bf16.mxu0 0
        %3658 = vmatpush2.bf16.msra.mxu0 0
        %3659 = vmatprep.subr.bf16.mxu0 0
        %3660 = vmatpush2.bf16.msra.mxu0 0
        %3661 = vmatprep.subr.bf16.mxu0 0
        %3662 = vmatpush2.bf16.msra.mxu0 0
        %3663 = vmatprep.subr.bf16.mxu0 0
        %3664 = vmatpush2.bf16.msra.mxu0 0
        %3665 = vmatprep.subr.bf16.mxu0 0
        %3666 = vmatpush2.bf16.msra.mxu0 0
        %3667 = vmatprep.subr.bf16.mxu0 0
        %3668 = vmatpush2.bf16.msra.mxu0 0
        %3669 = vmatprep.subr.bf16.mxu0 0
        %3670 = vmatpush2.bf16.msra.mxu0 0
        %3671 = vmatprep.subr.bf16.mxu0 0
        %3672 = vmatpush2.bf16.msra.mxu0 0
        %3673 = vmatprep.mubr.bf16.mxu0 0
        %3674 = vmatmul.mubr.bf16.gmra.mxu0 %v3400
        %v3675 = vpop.f32.mrf.mxu0
        %v3676 = vadd.f32 %v3433, %v3675
        %v3677 = vpop.f32.mrf.mxu0
        %v3678 = vadd.f32 %v3437, %v3677
        %v3679 = vpop.f32.mrf.mxu0
        %v3680 = vadd.f32 %v3433, %v3679
        %v3681 = vpop.f32.mrf.mxu0
        %v3682 = vadd.f32 %v3437, %v3681
        %3683 = vdwg.mxu0
        %v3684 = vmul.f32 %v3633, 0.5
        %v3685 = vmul.f32 %v3635, 0.5
        %v3686 = vmul.f32 %v3676, 0.5
        %v3687 = vmul.f32 %v3678, 0.5
        %v3688 = vmul.f32 %v3637, 0.5
        %v3689 = vmul.f32 %v3639, 0.5
        %v3690 = vmul.f32 %v3680, 0.5
        %v3691 = vmul.f32 %v3682, 0.5
        %v3692 = vmul.f32 %v3633, 0.044715
        %v3693 = vmul.f32 %v3635, 0.044715
        %v3694 = vmul.f32 %v3676, 0.044715
        %v3695 = vmul.f32 %v3678, 0.044715
        %v3696 = vmul.f32 %v3637, 0.044715
        %v3697 = vmul.f32 %v3639, 0.044715
        %v3698 = vmul.f32 %v3680, 0.044715
        %v3699 = vmul.f32 %v3682, 0.044715
        %v3700 = vmul.f32 %v3692, %v3633
        %v3701 = vmul.f32 %v3693, %v3635
        %v3702 = vmul.f32 %v3694, %v3676
        %v3703 = vmul.f32 %v3695, %v3678
        %v3704 = vmul.f32 %v3696, %v3637
        %v3705 = vmul.f32 %v3697, %v3639
        %v3706 = vmul.f32 %v3698, %v3680
        %v3707 = vmul.f32 %v3699, %v3682
        %v3708 = vmul.f32 %v3700, %v3633
        %v3709 = vmul.f32 %v3701, %v3635
        %v3710 = vmul.f32 %v3702, %v3676
        %v3711 = vmul.f32 %v3703, %v3678
        %v3712 = vmul.f32 %v3704, %v3637
        %v3713 = vmul.f32 %v3705, %v3639
        %v3714 = vmul.f32 %v3706, %v3680
        %v3715 = vmul.f32 %v3707, %v3682
        %v3716 = vadd.f32 %v3633, %v3708
        %v3717 = vadd.f32 %v3635, %v3709
        %v3718 = vadd.f32 %v3676, %v3710
        %v3719 = vadd.f32 %v3678, %v3711
        %v3720 = vadd.f32 %v3637, %v3712
        %v3721 = vadd.f32 %v3639, %v3713
        %v3722 = vadd.f32 %v3680, %v3714
        %v3723 = vadd.f32 %v3682, %v3715
        %v3724 = vmul.f32 %v3716, 0.7978846
        %v3725 = vmul.f32 %v3717, 0.7978846
        %v3726 = vmul.f32 %v3718, 0.7978846
        %v3727 = vmul.f32 %v3719, 0.7978846
        %v3728 = vmul.f32 %v3720, 0.7978846
        %v3729 = vmul.f32 %v3721, 0.7978846
        %v3730 = vmul.f32 %v3722, 0.7978846
        %v3731 = vmul.f32 %v3723, 0.7978846
        %v3732 = vtanh.pop %v3724
        %v3733 = vtanh.pop %v3725
        %v3734 = vtanh.pop %v3726
        %v3735 = vtanh.pop %v3727
        %v3736 = vtanh.pop %v3728
        %v3737 = vtanh.pop %v3729
        %v3738 = vtanh.pop %v3730
        %v3739 = vtanh.pop %v3731
        %v3740 = vadd.f32 %v3732, 1.0
        %v3741 = vadd.f32 %v3733, 1.0
        %v3742 = vadd.f32 %v3734, 1.0
        %v3743 = vadd.f32 %v3735, 1.0
        %v3744 = vadd.f32 %v3736, 1.0
        %v3745 = vadd.f32 %v3737, 1.0
        %v3746 = vadd.f32 %v3738, 1.0
        %v3747 = vadd.f32 %v3739, 1.0
        %v3748 = vmul.f32 %v3684, %v3740
        %v3749 = vmul.f32 %v3685, %v3741
        %v3750 = vmul.f32 %v3686, %v3742
        %v3751 = vmul.f32 %v3687, %v3743
        %v3752 = vmul.f32 %v3688, %v3744
        %v3753 = vmul.f32 %v3689, %v3745
        %v3754 = vmul.f32 %v3690, %v3746
        %v3755 = vmul.f32 %v3691, %v3747
        %v3756 = vpack.c.bf16 %v3752, %v3748
        %v3757 = vpack.c.bf16 %v3753, %v3749
        %v3758 = vpack.c.bf16 %v3754, %v3750
        %v3759 = vpack.c.bf16 %v3755, %v3751
        %v3760 = vlaneseq
        %v3761 = vshrl.u32 %v3760, 7
        %v3762 = vsub.s32 4, %v3761
        %v3763 = vrot.slane %v556, %v3762
        %v3828 = vunpack.c.l.b16 %v492
        %v3829 = vunpack.c.l.b16 %v493
        %v3830 = vunpack.c.l.b16 %v494
        %v3831 = vunpack.c.l.b16 %v495
        %v3832 = vunpack.c.l.b16 %v496
        %v3833 = vunpack.c.l.b16 %v497
        %v3834 = vunpack.c.l.b16 %v498
        %v3835 = vunpack.c.l.b16 %v499
        %v3836 = vunpack.c.l.b16 %v500
        %v3837 = vunpack.c.l.b16 %v501
        %v3838 = vunpack.c.l.b16 %v502
        %v3839 = vunpack.c.l.b16 %v503
        %v3840 = vunpack.c.l.b16 %v504
        %v3841 = vunpack.c.l.b16 %v505
        %v3842 = vunpack.c.l.b16 %v506
        %v3843 = vunpack.c.l.b16 %v507
        %v3844 = vunpack.c.l.b16 %v508
        %v3845 = vunpack.c.l.b16 %v509
        %v3846 = vunpack.c.l.b16 %v510
        %v3847 = vunpack.c.l.b16 %v511
        %v3848 = vunpack.c.l.b16 %v512
        %v3849 = vunpack.c.l.b16 %v513
        %v3850 = vunpack.c.l.b16 %v514
        %v3851 = vunpack.c.l.b16 %v515
        %v3852 = vunpack.c.l.b16 %v516
        %v3853 = vunpack.c.l.b16 %v517
        %v3854 = vunpack.c.l.b16 %v518
        %v3855 = vunpack.c.l.b16 %v519
        %v3856 = vunpack.c.l.b16 %v520
        %v3857 = vunpack.c.l.b16 %v521
        %v3858 = vunpack.c.l.b16 %v522
        %v3859 = vunpack.c.l.b16 %v523
        %v3860 = vunpack.c.l.b16 %v524
        %v3861 = vunpack.c.l.b16 %v525
        %v3862 = vunpack.c.l.b16 %v526
        %v3863 = vunpack.c.l.b16 %v527
        %v3864 = vunpack.c.l.b16 %v528
        %v3865 = vunpack.c.l.b16 %v529
        %v3866 = vunpack.c.l.b16 %v530
        %v3867 = vunpack.c.l.b16 %v531
        %v3868 = vunpack.c.l.b16 %v532
        %v3869 = vunpack.c.l.b16 %v533
        %v3870 = vunpack.c.l.b16 %v534
        %v3871 = vunpack.c.l.b16 %v535
        %v3872 = vunpack.c.l.b16 %v536
        %v3873 = vunpack.c.l.b16 %v537
        %v3874 = vunpack.c.l.b16 %v538
        %v3875 = vunpack.c.l.b16 %v539
        %v3876 = vunpack.c.l.b16 %v540
        %v3877 = vunpack.c.l.b16 %v541
        %v3878 = vunpack.c.l.b16 %v542
        %v3879 = vunpack.c.l.b16 %v543
        %v3880 = vunpack.c.l.b16 %v544
        %v3881 = vunpack.c.l.b16 %v545
        %v3882 = vunpack.c.l.b16 %v546
        %v3883 = vunpack.c.l.b16 %v547
        %v3884 = vunpack.c.l.b16 %v548
        %v3885 = vunpack.c.l.b16 %v549
        %v3886 = vunpack.c.l.b16 %v550
        %v3887 = vunpack.c.l.b16 %v551
        %v3888 = vunpack.c.l.b16 %v552
        %v3889 = vunpack.c.l.b16 %v553
        %v3890 = vunpack.c.l.b16 %v554
        %v3891 = vunpack.c.l.b16 %v555
        %v3892 = vpack.c.b16 %v3829, %v3828
        %v3893 = vpack.c.b16 %v3831, %v3830
        %v3894 = vpack.c.b16 %v3833, %v3832
        %v3895 = vpack.c.b16 %v3835, %v3834
        %v3896 = vpack.c.b16 %v3837, %v3836
        %v3897 = vpack.c.b16 %v3839, %v3838
        %v3898 = vpack.c.b16 %v3841, %v3840
        %v3899 = vpack.c.b16 %v3843, %v3842
        %v3900 = vpack.c.b16 %v3845, %v3844
        %v3901 = vpack.c.b16 %v3847, %v3846
        %v3902 = vpack.c.b16 %v3849, %v3848
        %v3903 = vpack.c.b16 %v3851, %v3850
        %v3904 = vpack.c.b16 %v3853, %v3852
        %v3905 = vpack.c.b16 %v3855, %v3854
        %v3906 = vpack.c.b16 %v3857, %v3856
        %v3907 = vpack.c.b16 %v3859, %v3858
        %v3908 = vpack.c.b16 %v3861, %v3860
        %v3909 = vpack.c.b16 %v3863, %v3862
        %v3910 = vpack.c.b16 %v3865, %v3864
        %v3911 = vpack.c.b16 %v3867, %v3866
        %v3912 = vpack.c.b16 %v3869, %v3868
        %v3913 = vpack.c.b16 %v3871, %v3870
        %v3914 = vpack.c.b16 %v3873, %v3872
        %v3915 = vpack.c.b16 %v3875, %v3874
        %v3916 = vpack.c.b16 %v3877, %v3876
        %v3917 = vpack.c.b16 %v3879, %v3878
        %v3918 = vpack.c.b16 %v3881, %v3880
        %v3919 = vpack.c.b16 %v3883, %v3882
        %v3920 = vpack.c.b16 %v3885, %v3884
        %v3921 = vpack.c.b16 %v3887, %v3886
        %v3922 = vpack.c.b16 %v3889, %v3888
        %v3923 = vpack.c.b16 %v3891, %v3890
        %3956 = vmatprep.subr.bf16.mxu0 0
        %3957 = vmatpush1.bf16.msra.mxu0 %v3899
        %3958 = vmatprep.subr.bf16.mxu0 0
        %3959 = vmatpush1.bf16.msra.mxu0 %v3898
        %3960 = vmatprep.subr.bf16.mxu0 0
        %3961 = vmatpush1.bf16.msra.mxu0 %v3897
        %3962 = vmatprep.subr.bf16.mxu0 0
        %3963 = vmatpush1.bf16.msra.mxu0 %v3896
        %3964 = vmatprep.subr.bf16.mxu0 0
        %3965 = vmatpush1.bf16.msra.mxu0 %v3895
        %3966 = vmatprep.subr.bf16.mxu0 0
        %3967 = vmatpush1.bf16.msra.mxu0 %v3894
        %3968 = vmatprep.subr.bf16.mxu0 0
        %3969 = vmatpush1.bf16.msra.mxu0 %v3893
        %3970 = vmatprep.subr.bf16.mxu0 0
        %3971 = vmatpush1.bf16.msra.mxu0 %v3892
        %3972 = vmatprep.subr.bf16.mxu0 0
        %3973 = vmatpush2.bf16.msra.mxu0 %v3907
        %3974 = vmatprep.subr.bf16.mxu0 0
        %3975 = vmatpush2.bf16.msra.mxu0 %v3906
        %3976 = vmatprep.subr.bf16.mxu0 0
        %3977 = vmatpush2.bf16.msra.mxu0 %v3905
        %3978 = vmatprep.subr.bf16.mxu0 0
        %3979 = vmatpush2.bf16.msra.mxu0 %v3904
        %3980 = vmatprep.subr.bf16.mxu0 0
        %3981 = vmatpush2.bf16.msra.mxu0 %v3903
        %3982 = vmatprep.subr.bf16.mxu0 0
        %3983 = vmatpush2.bf16.msra.mxu0 %v3902
        %3984 = vmatprep.subr.bf16.mxu0 0
        %3985 = vmatpush2.bf16.msra.mxu0 %v3901
        %3986 = vmatprep.subr.bf16.mxu0 0
        %3987 = vmatpush2.bf16.msra.mxu0 %v3900
        %3988 = vmatprep.mubr.bf16.mxu0 %v3757
        %3989 = vmatmul.mubr.bf16.gmra.mxu0 %v3756
        %v3990 = vpop.f32.mrf.mxu0
        %v3991 = vadd.f32 %v3763, %v3990
        %v3992 = vpop.f32.mrf.mxu0
        %v3993 = vpop.f32.mrf.mxu0
        %v3994 = vadd.f32 %v3763, %v3993
        %v3995 = vpop.f32.mrf.mxu0
        %3996 = vdwg.mxu0
        %3997 = vmatprep.subr.bf16.mxu0 0
        %3998 = vmatpush1.bf16.msra.mxu0 %v3915
        %3999 = vmatprep.subr.bf16.mxu0 0
        %4000 = vmatpush1.bf16.msra.mxu0 %v3914
        %4001 = vmatprep.subr.bf16.mxu0 0
        %4002 = vmatpush1.bf16.msra.mxu0 %v3913
        %4003 = vmatprep.subr.bf16.mxu0 0
        %4004 = vmatpush1.bf16.msra.mxu0 %v3912
        %4005 = vmatprep.subr.bf16.mxu0 0
        %4006 = vmatpush1.bf16.msra.mxu0 %v3911
        %4007 = vmatprep.subr.bf16.mxu0 0
        %4008 = vmatpush1.bf16.msra.mxu0 %v3910
        %4009 = vmatprep.subr.bf16.mxu0 0
        %4010 = vmatpush1.bf16.msra.mxu0 %v3909
        %4011 = vmatprep.subr.bf16.mxu0 0
        %4012 = vmatpush1.bf16.msra.mxu0 %v3908
        %4013 = vmatprep.subr.bf16.mxu0 0
        %4014 = vmatpush2.bf16.msra.mxu0 %v3923
        %4015 = vmatprep.subr.bf16.mxu0 0
        %4016 = vmatpush2.bf16.msra.mxu0 %v3922
        %4017 = vmatprep.subr.bf16.mxu0 0
        %4018 = vmatpush2.bf16.msra.mxu0 %v3921
        %4019 = vmatprep.subr.bf16.mxu0 0
        %4020 = vmatpush2.bf16.msra.mxu0 %v3920
        %4021 = vmatprep.subr.bf16.mxu0 0
        %4022 = vmatpush2.bf16.msra.mxu0 %v3919
        %4023 = vmatprep.subr.bf16.mxu0 0
        %4024 = vmatpush2.bf16.msra.mxu0 %v3918
        %4025 = vmatprep.subr.bf16.mxu0 0
        %4026 = vmatpush2.bf16.msra.mxu0 %v3917
        %4027 = vmatprep.subr.bf16.mxu0 0
        %4028 = vmatpush2.bf16.msra.mxu0 %v3916
        %4029 = vmatprep.mubr.bf16.mxu0 %v3759
        %4030 = vmatmul.mubr.bf16.gmra.mxu0 %v3758
        %v4031 = vpop.f32.mrf.mxu0
        %v4032 = vadd.f32 %v3991, %v4031
        %v4033 = vpop.f32.mrf.mxu0
        %v4034 = vpop.f32.mrf.mxu0
        %v4035 = vadd.f32 %v3994, %v4034
        %v4036 = vpop.f32.mrf.mxu0
        %4037 = vdwg.mxu0
        %v4038 = vadd.f32 %v3398, %v4032
        %v4039 = vadd.f32 %v3399, %v4035
        %4040 = vadd.xlane.f32.xlu0 %v4038
        %v4041 = vpop.xlane.xlu0 %4040
        %4042 = vadd.xlane.f32.xlu0 %v4039
        %v4043 = vpop.xlane.xlu0 %4042
        %v4044 = vmul.f32 %v4041, %v3369
        %v4045 = vmul.f32 %v4043, %v3369
        %v4046 = vsub.f32 %v4038, %v4044
        %v4047 = vsub.f32 %v4039, %v4045
        %v4048 = vmul.f32 %v4046, %v4046
        %v4049 = vmul.f32 %v4047, %v4047
        %4050 = vadd.xlane.f32.xlu0 %v4048
        %v4051 = vpop.xlane.xlu0 %4050
        %4052 = vadd.xlane.f32.xlu0 %v4049
        %v4053 = vpop.xlane.xlu0 %4052
        %v4054 = vmul.f32 %v4051, %v3369
        %v4055 = vmul.f32 %v4053, %v3369
        %v4056 = vadd.f32 %v4054, 1e-05
        %v4057 = vadd.f32 %v4055, 1e-05
        %v4058 = vrsqrt.pop %v4056
        %v4059 = vrsqrt.pop %v4057
        %v4060 = vmul.f32 %v4046, %v4058
        %v4061 = vmul.f32 %v4047, %v4059
        %v4062 = vlaneseq
        %v4063 = vshrl.u32 %v4062, 7
        %v4064 = vsub.s32 7, %v4063
        %v4065 = vrot.slane %v556, %v4064
        %v4066 = vmul.f32 %v4060, %v4065
        %v4067 = vmul.f32 %v4061, %v4065
        %v4068 = vlaneseq
        %v4069 = vshrl.u32 %v4068, 7
        %v4070 = vsub.s32 0, %v4069
        %v4071 = vrot.slane %v557, %v4070
        %v4072 = vadd.f32 %v4066, %v4071
        %v4073 = vadd.f32 %v4067, %v4071
        %4074 = vst [vmem:[%s7] sm:$0xff] %v4072
        %4075 = vst [vmem:[%s7 + $0x8] sm:$0xff] %v4073
        // Predicated region
        $region65: #{_gpt_forward.1} parent=47 // pred_check
          %p4076 = pneg %p209
        $region66: #{_gpt_forward.1} parent=47 // pred_check_branch
          %4078 = sbr.rel (%p4076) target = $region68
        $region67: #{_gpt_forward.1} parent=47 // pred_region
          _
        $region68: #{_gpt_forward.1} parent=47 // pred_fallthru
          _
        // Predicated region
        $region69: #{_gpt_forward.1} parent=47 // pred_check
          %p4079 = pneg %p209
        $region70: #{_gpt_forward.1} parent=47 // pred_check_branch
          %4081 = sbr.rel (%p4079) target = $region72
        $region71: #{_gpt_forward.1} parent=47 // pred_region
          _
        $region72: #{_gpt_forward.1} parent=47 // pred_fallthru
          _
      $region48: #{_gpt_forward.1} parent=5 // pred_fallthru
        _
      %p4082 = scmp.le.s32.totalorder 2, %s19
      // Predicated region
      $region73: #{_gpt_forward.1} parent=5 // pred_check
        %p4083 = pneg %p4082
      $region74: #{_gpt_forward.1} parent=5 // pred_check_branch
        %4085 = sbr.rel (%p4083) target = $region76
      $region75: #{_gpt_forward.1} parent=5 // pred_region
        %s4086 = ssub.s32 %s19, 2
      $region76: #{_gpt_forward.1} parent=5 // pred_fallthru
        _
    $region6: #{_gpt_forward.1} parent=1 // loop_footer
      %s23 = sadd.s32 1, %s19
    $region7: #{_gpt_forward.1} parent=1 // loop_footer_branch
      %18 = sbr.rel target = $region3
    $region8: #{_gpt_forward.1} parent=1 // loop_exit
      _
    %4087 = vsyncpa [#allocation3], 1
    %s4088 = scalar_lea.sflag [#allocation3], 1
    %4089 = vsyncpa %s4088, 1
    %4090 = vsyncpa [#allocation5], 1
    %s4091 = scalar_lea.sflag [#allocation5], 1
    %4092 = vsyncpa %s4091, 1

</llo_original>
